<compile_context>
chip_gen: v6e
topology: v6e:2x2x1
jax: 0.10.0
libtpu: 0.0.40
codegen_flags: <defaults>
</compile_context>

<pallas_src>
import functools

import jax
import jax.numpy as jnp
from jax.experimental import pallas as pl
from jax.experimental.pallas import tpu as pltpu


_VMEM_LIMIT = 48 * 1024 * 1024  # explicit scoped-VMEM limit; below physical on v5e/v6e (128MiB) and v7x (64MiB)


def _cparams(semantics):
    return pltpu.CompilerParams(dimension_semantics=semantics,
                                vmem_limit_bytes=_VMEM_LIMIT)


# ----------------------------- small helpers -----------------------------

def _row_tile(m, target=512):
    """Largest divisor of m that is a multiple of 8 and <= target (else m)."""
    for bm in range(min(m, target), 7, -1):
        if m % bm == 0 and bm % 8 == 0:
            return bm
    return m


def _chan_tile(c, target=128):
    """Largest divisor of c that is a multiple of 128 and <= target (else c)."""
    for bc in range(min(c, target), 127, -1):
        if c % bc == 0 and bc % 128 == 0:
            return bc
    return c


def _gelu_tanh(x):
    # tanh-approx GELU: the expensive op (tanh) runs on the EUP slot.
    # TODO(synk): PyTorch nn.GELU() defaults to the exact erf form (~1e-3 max abs difference).
    c = 0.7978845608028654  # sqrt(2/pi)
    return 0.5 * x * (1.0 + jnp.tanh(c * (x + 0.044715 * x * x * x)))


# ----------------------------- LayerNorm + fused projection -----------------------------

def _ln_matmul_split_kernel(x_ref, lnw_ref, lnb_ref, w_ref, b_ref, *out_refs,
                            splits, write_xn, eps=1e-5):
    x = x_ref[...].astype(jnp.float32)
    mean = jnp.mean(x, axis=-1, keepdims=True)
    var = jnp.mean(jnp.square(x - mean), axis=-1, keepdims=True)
    xn = (x - mean) * jax.lax.rsqrt(var + eps)
    xn = xn * lnw_ref[...].astype(jnp.float32) + lnb_ref[...].astype(jnp.float32)
    idx = 0
    if write_xn:
        out_refs[0][...] = xn.astype(out_refs[0].dtype)
        idx = 1
    # bf16 operands into the MXU, f32 accumulation.
    acc = jnp.dot(xn.astype(w_ref.dtype), w_ref[...],
                  preferred_element_type=jnp.float32) + b_ref[...].astype(jnp.float32)
    off = 0
    for r, sz in zip(out_refs[idx:], splits):
        r[...] = acc[:, off:off + sz].astype(r.dtype)
        off += sz


def ln_matmul_split(x, ln_w, ln_b, w, b, splits, *, out_dtypes=None,
                    write_xn=False, block_m=512):
    M, K = x.shape
    Nout = w.shape[1]
    bm = _row_tile(M, block_m)
    if out_dtypes is None:
        out_dtypes = tuple(x.dtype for _ in splits)
    out_shapes, out_specs = [], []
    if write_xn:
        out_shapes.append(jax.ShapeDtypeStruct((M, K), x.dtype))
        out_specs.append(pl.BlockSpec((bm, K), lambda i: (i, 0)))
    for sz, dt in zip(splits, out_dtypes):
        out_shapes.append(jax.ShapeDtypeStruct((M, sz), dt))
        out_specs.append(pl.BlockSpec((bm, sz), lambda i: (i, 0)))
    bytes_acc = (M * K * x.dtype.itemsize + K * Nout * w.dtype.itemsize
                 + sum(M * s.shape[-1] * s.dtype.itemsize for s in out_shapes))
    cost = pl.CostEstimate(flops=2 * M * K * Nout, transcendentals=0,
                           bytes_accessed=int(bytes_acc))
    return pl.pallas_call(
        functools.partial(_ln_matmul_split_kernel, splits=tuple(splits), write_xn=write_xn),
        out_shape=tuple(out_shapes),
        grid=(M // bm,),
        in_specs=[pl.BlockSpec((bm, K), lambda i: (i, 0)),
                  pl.BlockSpec((1, K), lambda i: (0, 0)),
                  pl.BlockSpec((1, K), lambda i: (0, 0)),
                  pl.BlockSpec((K, Nout), lambda i: (0, 0)),
                  pl.BlockSpec((1, Nout), lambda i: (0, 0))],
        out_specs=tuple(out_specs),
        compiler_params=_cparams(("parallel",)),
        cost_estimate=cost,
    )(x, ln_w, ln_b, w, b)


# ----------------------------- flash-style token attention -----------------------------

def _token_attn_kernel(q_ref, kv_ref, o_ref, m_sc, l_sc, acc_sc, *, num_heads, scale):
    C = o_ref.shape[-1]
    dh = C // num_heads
    tq = q_ref.shape[1]
    ki = pl.program_id(2)

    @pl.when(ki == 0)
    def _():
        m_sc[...] = jnp.full(m_sc.shape, -1e30, m_sc.dtype)
        l_sc[...] = jnp.zeros(l_sc.shape, l_sc.dtype)
        acc_sc[...] = jnp.zeros(acc_sc.shape, acc_sc.dtype)

    qq = q_ref[0]                      # (tq, C)  bf16, head channels c = h*dh + d
    kk = kv_ref[0]                     # (tk, 2C) bf16, [k | v]
    m_prev = m_sc[...]                 # (tq, nh) f32
    l_prev = l_sc[...]

    m_cols, l_cols, alpha_parts, pv_parts = [], [], [], []
    for h in range(num_heads):
        q = qq[:, h * dh:(h + 1) * dh]
        k = kk[:, h * dh:(h + 1) * dh]
        v = kk[:, C + h * dh:C + (h + 1) * dh]
        s = jax.lax.dot_general(q, k, (((1,), (1,)), ((), ())),
                                preferred_element_type=jnp.float32) * scale     # (tq, tk)
        m_p = m_prev[:, h:h + 1]
        m_n = jnp.maximum(m_p, jnp.max(s, axis=-1, keepdims=True))
        alpha = jnp.exp(m_p - m_n)
        p = jnp.exp(s - m_n)
        m_cols.append(m_n)
        l_cols.append(alpha * l_prev[:, h:h + 1] + jnp.sum(p, axis=-1, keepdims=True))
        alpha_parts.append(jnp.broadcast_to(alpha, (tq, dh)))
        pv_parts.append(jnp.dot(p.astype(kk.dtype), v, preferred_element_type=jnp.float32))

    m_sc[...] = jnp.concatenate(m_cols, axis=-1)
    l_sc[...] = jnp.concatenate(l_cols, axis=-1)
    # single lane-dense (tq, C) accumulator update per kv step
    acc_sc[...] = (jnp.concatenate(alpha_parts, axis=-1) * acc_sc[...]
                   + jnp.concatenate(pv_parts, axis=-1))

    @pl.when(ki == pl.num_programs(2) - 1)
    def _():
        inv = pl.reciprocal(l_sc[...], approx=True)                              # (tq, nh)
        inv_full = jnp.concatenate(
            [jnp.broadcast_to(inv[:, h:h + 1], (tq, dh)) for h in range(num_heads)], axis=-1)
        o_ref[0] = (acc_sc[...] * inv_full).astype(o_ref.dtype)


def token_attention(q, kv, *, num_heads, scale, block_q=512, block_k=256):
    B, N, C = q.shape
    tq = _row_tile(N, block_q)
    tk = _row_tile(N, block_k)
    return pl.pallas_call(
        functools.partial(_token_attn_kernel, num_heads=num_heads, scale=scale),
        out_shape=jax.ShapeDtypeStruct((B, N, C), q.dtype),
        grid=(B, N // tq, N // tk),
        in_specs=[pl.BlockSpec((1, tq, C), lambda b, qi, ki: (b, qi, 0)),
                  pl.BlockSpec((1, tk, 2 * C), lambda b, qi, ki: (b, ki, 0))],
        out_specs=pl.BlockSpec((1, tq, C), lambda b, qi, ki: (b, qi, 0)),
        scratch_shapes=[pltpu.VMEM((tq, num_heads), jnp.float32),
                        pltpu.VMEM((tq, num_heads), jnp.float32),
                        pltpu.VMEM((tq, C), jnp.float32)],
        compiler_params=_cparams(("parallel", "parallel", "arbitrary")),
    )(q, kv)


# ----------------------------- projection + residual epilogue -----------------------------

def _matmul_residual_kernel(y_ref, w_ref, b_ref, x_ref, g_ref, o_ref):
    acc = jnp.dot(y_ref[...].astype(w_ref.dtype), w_ref[...],
                  preferred_element_type=jnp.float32) + b_ref[...].astype(jnp.float32)
    o_ref[...] = (x_ref[...].astype(jnp.float32)
                  + g_ref[...].astype(jnp.float32) * acc).astype(o_ref.dtype)


def matmul_residual(y, w, b, x, gamma, *, block_m=512):
    M, K = y.shape
    N = w.shape[1]
    bm = _row_tile(M, block_m)
    cost = pl.CostEstimate(
        flops=2 * M * K * N, transcendentals=0,
        bytes_accessed=int(M * K * y.dtype.itemsize + K * N * w.dtype.itemsize
                           + 2 * M * N * x.dtype.itemsize))
    return pl.pallas_call(
        _matmul_residual_kernel,
        out_shape=jax.ShapeDtypeStruct((M, N), x.dtype),
        grid=(M // bm,),
        in_specs=[pl.BlockSpec((bm, K), lambda i: (i, 0)),
                  pl.BlockSpec((K, N), lambda i: (0, 0)),
                  pl.BlockSpec((1, N), lambda i: (0, 0)),
                  pl.BlockSpec((bm, N), lambda i: (i, 0)),
                  pl.BlockSpec((1, N), lambda i: (0, 0))],
        out_specs=pl.BlockSpec((bm, N), lambda i: (i, 0)),
        compiler_params=_cparams(("parallel",)),
        cost_estimate=cost,
    )(y, w, b, x, gamma)


# ----------------------------- channel attention (lane-dense (B,1,C)) -----------------------------

def _channel_attn_kernel(q_ref, k_ref, t_ref, o_ref, *, num_heads):
    C = q_ref.shape[-1]
    dh = C // num_heads
    q = q_ref[0].astype(jnp.float32)                     # (N, C)
    k = k_ref[0].astype(jnp.float32)                     # (N, C)
    # softmax over the token axis (dim -2 of (B, h, N, dh))
    q = jnp.exp(q - jnp.max(q, axis=0, keepdims=True))
    q = q / jnp.sum(q, axis=0, keepdims=True)
    k = jnp.exp(k - jnp.max(k, axis=0, keepdims=True))
    k = k / jnp.sum(k, axis=0, keepdims=True)
    parts = []
    for h in range(num_heads):
        k_pool = jnp.mean(k[:, h * dh:(h + 1) * dh], axis=-1, keepdims=True)     # (N, 1)
        parts.append(jnp.sum(q[:, h * dh:(h + 1) * dh] * k_pool, axis=0,
                             keepdims=True))                                     # (1, dh)
    attn = jnp.concatenate(parts, axis=-1)                                       # (1, C)
    o_ref[0] = (jax.nn.sigmoid(attn) * t_ref[0].astype(jnp.float32)).astype(o_ref.dtype)


def channel_attention(qc, kc, temp_c, *, num_heads):
    # TODO(synk): full-N block per batch (softmax over tokens); two-pass N-tiling for very large N (v7x).
    B, N, C = qc.shape
    return pl.pallas_call(
        functools.partial(_channel_attn_kernel, num_heads=num_heads),
        out_shape=jax.ShapeDtypeStruct((B, 1, C), qc.dtype),
        grid=(B,),
        in_specs=[pl.BlockSpec((1, N, C), lambda b: (b, 0, 0)),
                  pl.BlockSpec((1, N, C), lambda b: (b, 0, 0)),
                  pl.BlockSpec((1, 1, C), lambda b: (0, 0, 0))],
        out_specs=pl.BlockSpec((1, 1, C), lambda b: (b, 0, 0)),
        compiler_params=_cparams(("parallel",)),
    )(qc, kc, temp_c)


# ----------------------------- fused DWConv MLP: conv1 -> GELU -> BN -> conv2 -> gamma*+skip -----------

def _dwconv_mlp_kernel(x_ref, w1_ref, b1_ref, s_ref, t_ref, w2_ref, b2_ref, g_ref,
                       mr_ref, ml_ref, o_ref, *, W):
    x = x_ref[0].astype(jnp.float32)                     # (H*W, bc), rows n = h*W + w
    bc = x.shape[-1]
    m_right = mr_ref[...].astype(jnp.float32)            # (H*W, 1): 1 where w < W-1
    m_left = ml_ref[...].astype(jnp.float32)             # (H*W, 1): 1 where w >= 1

    def shift(v, dh, dw):
        # result[n] = v[n + dh*W + dw] when (h+dh, w+dw) is in bounds, else 0.
        s = dh * W + dw
        if s == 0:
            y = v
        elif s > 0:
            y = jnp.concatenate([v[s:], jnp.zeros((s, bc), v.dtype)], axis=0)
        else:
            y = jnp.concatenate([jnp.zeros((-s, bc), v.dtype), v[:s]], axis=0)
        if dw == 1:
            y = y * m_right
        elif dw == -1:
            y = y * m_left
        return y

    def conv3x3(v, wref, bref):
        w = wref[...].astype(jnp.float32)                # (9, bc), tap k = (dh+1)*3 + (dw+1)
        acc = v * w[4:5, :]
        for dh in (-1, 0, 1):
            for dw in (-1, 0, 1):
                if dh == 0 and dw == 0:
                    continue
                k = (dh + 1) * 3 + (dw + 1)
                acc = acc + shift(v, dh, dw) * w[k:k + 1, :]
        return acc + bref[...].astype(jnp.float32)

    y = conv3x3(x, w1_ref, b1_ref)                                               # conv1
    y = _gelu_tanh(y)                                                            # act
    y = y * s_ref[...].astype(jnp.float32) + t_ref[...].astype(jnp.float32)      # inference BN
    y = conv3x3(y, w2_ref, b2_ref)                                               # conv2
    o_ref[0] = (x + g_ref[...].astype(jnp.float32) * y).astype(o_ref.dtype)      # gamma*dwconv + skip


def dwconv_mlp(h1, w1, b1, bn_scale, bn_shift, w2, b2, gamma, *, H, W):
    B, N, Ch = h1.shape
    assert N == H * W  # TODO(synk): FAN variants with a class token must strip it before dwconv
    bc = _chan_tile(Ch, target=128)   # 128-wide channel tiles keep blocks small enough for v7x VMEM
    wcol = jax.lax.broadcasted_iota(jnp.int32, (N, 1), 0) % W
    m_right = (wcol < (W - 1)).astype(jnp.float32)
    m_left = (wcol >= 1).astype(jnp.float32)
    return pl.pallas_call(
        functools.partial(_dwconv_mlp_kernel, W=W),
        out_shape=jax.ShapeDtypeStruct((B, N, Ch), h1.dtype),
        grid=(B, Ch // bc),
        in_specs=[pl.BlockSpec((1, N, bc), lambda b, c: (b, 0, c)),
                  pl.BlockSpec((9, bc), lambda b, c: (0, c)),
                  pl.BlockSpec((1, bc), lambda b, c: (0, c)),
                  pl.BlockSpec((1, bc), lambda b, c: (0, c)),
                  pl.BlockSpec((1, bc), lambda b, c: (0, c)),
                  pl.BlockSpec((9, bc), lambda b, c: (0, c)),
                  pl.BlockSpec((1, bc), lambda b, c: (0, c)),
                  pl.BlockSpec((1, bc), lambda b, c: (0, c)),
                  pl.BlockSpec((N, 1), lambda b, c: (0, 0)),
                  pl.BlockSpec((N, 1), lambda b, c: (0, 0))],
        out_specs=pl.BlockSpec((1, N, bc), lambda b, c: (b, 0, c)),
        compiler_params=_cparams(("parallel", "parallel")),
    )(h1, w1, b1, bn_scale, bn_shift, w2, b2, gamma, m_right, m_left)


# ----------------------------- fc2 + norm_v + attn*v + gamma2 residual -----------------------------

def _fc2_ln_attn_residual_kernel(h_ref, w_ref, b_ref, lnw_ref, lnb_ref,
                                 a_ref, x_ref, g_ref, o_ref, *, eps=1e-5):
    y = jnp.dot(h_ref[...].astype(w_ref.dtype), w_ref[...],
                preferred_element_type=jnp.float32) + b_ref[...].astype(jnp.float32)
    mean = jnp.mean(y, axis=-1, keepdims=True)
    var = jnp.mean(jnp.square(y - mean), axis=-1, keepdims=True)
    yn = (y - mean) * jax.lax.rsqrt(var + eps)
    yn = yn * lnw_ref[...].astype(jnp.float32) + lnb_ref[...].astype(jnp.float32)
    attn = a_ref[0].astype(jnp.float32)                  # (1, C) per-batch channel gate
    o_ref[...] = (x_ref[...].astype(jnp.float32)
                  + g_ref[...].astype(jnp.float32) * (attn * yn)).astype(o_ref.dtype)


def fc2_ln_attn_residual(h2, w, b, ln_w, ln_b, attn, x, gamma, *, batch, block_m=512):
    M, K = h2.shape
    C = w.shape[1]
    n_tok = M // batch
    tm = _row_tile(n_tok, block_m)
    nt = n_tok // tm

    def row_map(bi, ti):
        return (bi * nt + ti, 0)

    cost = pl.CostEstimate(
        flops=2 * M * K * C, transcendentals=0,
        bytes_accessed=int(M * K * h2.dtype.itemsize + K * C * w.dtype.itemsize
                           + 2 * M * C * x.dtype.itemsize))
    return pl.pallas_call(
        _fc2_ln_attn_residual_kernel,
        out_shape=jax.ShapeDtypeStruct((M, C), x.dtype),
        grid=(batch, nt),
        in_specs=[pl.BlockSpec((tm, K), row_map),
                  pl.BlockSpec((K, C), lambda bi, ti: (0, 0)),
                  pl.BlockSpec((1, C), lambda bi, ti: (0, 0)),
                  pl.BlockSpec((1, C), lambda bi, ti: (0, 0)),
                  pl.BlockSpec((1, C), lambda bi, ti: (0, 0)),
                  pl.BlockSpec((1, 1, C), lambda bi, ti: (bi, 0, 0)),
                  pl.BlockSpec((tm, C), row_map),
                  pl.BlockSpec((1, C), lambda bi, ti: (0, 0))],
        out_specs=pl.BlockSpec((tm, C), row_map),
        compiler_params=_cparams(("parallel", "parallel")),
        cost_estimate=cost,
    )(h2, w, b, ln_w, ln_b, attn, x, gamma)


# ----------------------------- parameters -----------------------------

def init_params(key, dim, num_heads, mlp_ratio=4.0, eta=1.0):
    hidden = int(dim * mlp_ratio)
    keys = jax.random.split(key, 8)
    std = 0.02

    def trunc(k, shape):  # trunc_normal_(std=0.02)
        return std * jax.random.truncated_normal(k, -2.0, 2.0, shape, jnp.float32)

    conv_std = (2.0 / 9.0) ** 0.5  # fan_out = k*k*out/groups = 9 for depthwise 3x3
    return dict(
        norm1_w=jnp.ones((1, dim)), norm1_b=jnp.zeros((1, dim)),
        attn_q_w=trunc(keys[0], (dim, dim)), attn_q_b=jnp.zeros((1, dim)),
        attn_kv_w=trunc(keys[1], (dim, 2 * dim)), attn_kv_b=jnp.zeros((1, 2 * dim)),
        attn_proj_w=trunc(keys[2], (dim, dim)), attn_proj_b=jnp.zeros((1, dim)),
        gamma1=eta * jnp.ones((1, dim)),
        norm2_w=jnp.ones((1, dim)), norm2_b=jnp.zeros((1, dim)),
        temperature=jnp.ones((num_heads, 1, 1)),
        cp_q_w=trunc(keys[3], (dim, dim)), cp_q_b=jnp.zeros((1, dim)),
        fc1_w=trunc(keys[4], (dim, hidden)), fc1_b=jnp.zeros((1, hidden)),
        mlp_gamma=jnp.ones((1, hidden)),
        conv1_w=conv_std * jax.random.normal(keys[5], (3, 3, hidden), jnp.float32),
        conv1_b=jnp.zeros((1, hidden)),
        bn_w=jnp.ones((hidden,)), bn_b=jnp.zeros((hidden,)),
        bn_rm=jnp.zeros((hidden,)), bn_rv=jnp.ones((hidden,)),
        conv2_w=conv_std * jax.random.normal(keys[6], (3, 3, hidden), jnp.float32),
        conv2_b=jnp.zeros((1, hidden)),
        fc2_w=trunc(keys[7], (hidden, dim)), fc2_b=jnp.zeros((1, dim)),
        normv_w=jnp.ones((1, dim)), normv_b=jnp.zeros((1, dim)),
        gamma2=eta * jnp.ones((1, dim)),
    )


def prepare_params(p, *, num_heads):
    """One-time prep: fuse weights, fold BN, cast GEMM weights to bf16 (done outside jit/step)."""
    dim = p['attn_q_w'].shape[0]
    hidden = p['fc1_w'].shape[1]
    dh = dim // num_heads
    wdt = jnp.bfloat16
    bn_scale = (p['bn_w'] / jnp.sqrt(p['bn_rv'] + 1e-5)).reshape(1, hidden)
    bn_shift = p['bn_b'].reshape(1, hidden) - p['bn_rm'].reshape(1, hidden) * bn_scale
    return dict(
        norm1_w=p['norm1_w'], norm1_b=p['norm1_b'],
        w_qkv=jnp.concatenate([p['attn_q_w'], p['attn_kv_w']], axis=1).astype(wdt),   # (C, 3C)
        b_qkv=jnp.concatenate([p['attn_q_b'], p['attn_kv_b']], axis=1),
        proj_w=p['attn_proj_w'].astype(wdt), proj_b=p['attn_proj_b'],
        gamma1=p['gamma1'],
        norm2_w=p['norm2_w'], norm2_b=p['norm2_b'],
        w_cp=jnp.concatenate([p['cp_q_w'], p['fc1_w']], axis=1).astype(wdt),          # (C, C+hidden)
        b_cp=jnp.concatenate([p['cp_q_b'], p['fc1_b']], axis=1),
        temp_c=jnp.repeat(p['temperature'].reshape(num_heads), dh).reshape(1, 1, dim),
        conv1_w=p['conv1_w'].reshape(9, hidden), conv1_b=p['conv1_b'],
        bn_scale=bn_scale, bn_shift=bn_shift,
        conv2_w=p['conv2_w'].reshape(9, hidden), conv2_b=p['conv2_b'],
        mlp_gamma=p['mlp_gamma'],
        fc2_w=p['fc2_w'].astype(wdt), fc2_b=p['fc2_b'],
        normv_w=p['normv_w'], normv_b=p['normv_b'],
        gamma2=p['gamma2'],
    )


# ----------------------------- FANBlock forward -----------------------------

def fan_block_forward(x, p, *, H, W, num_heads):
    B, N, C = x.shape
    dh = C // num_heads
    hidden = p['fc2_w'].shape[0]
    x2 = x.reshape(B * N, C)

    # -------- TokenMixing: x = x + gamma1 * proj(attn(norm1(x))) --------
    q, kv = ln_matmul_split(x2, p['norm1_w'], p['norm1_b'], p['w_qkv'], p['b_qkv'],
                            splits=(C, 2 * C), out_dtypes=(jnp.bfloat16, jnp.bfloat16))
    o = token_attention(q.reshape(B, N, C), kv.reshape(B, N, 2 * C),
                        num_heads=num_heads, scale=float(dh) ** -0.5)            # (B, N, C) bf16
    x2 = matmul_residual(o.reshape(B * N, C), p['proj_w'], p['proj_b'], x2, p['gamma1'])

    # -------- ChannelProcessing: x = x + gamma2 * (attn * norm_v(mlp_v(norm2(x)))) --------
    xn, qc, h1 = ln_matmul_split(x2, p['norm2_w'], p['norm2_b'], p['w_cp'], p['b_cp'],
                                 splits=(C, hidden), write_xn=True)
    attn = channel_attention(qc.reshape(B, N, C), xn.reshape(B, N, C),
                             p['temp_c'], num_heads=num_heads)                   # (B, 1, C)

    # mlp_v: fc1 -> (gamma * DWConv(.) + skip) -> fc2, with the whole DWConv branch fused
    h2 = dwconv_mlp(h1.reshape(B, N, hidden), p['conv1_w'], p['conv1_b'],
                    p['bn_scale'], p['bn_shift'], p['conv2_w'], p['conv2_b'],
                    p['mlp_gamma'], H=H, W=W)                                    # (B, N, hidden)
    x2 = fc2_ln_attn_residual(h2.reshape(B * N, hidden), p['fc2_w'], p['fc2_b'],
                              p['normv_w'], p['normv_b'], attn, x2, p['gamma2'], batch=B)
    return x2.reshape(B, N, C)


# ----------------------------- main -----------------------------

if __name__ == "__main__":
    B, H, W = 2, 4, 4
    dim, num_heads = 64, 4
    N = H * W

    key = jax.random.PRNGKey(0)
    kx, kp = jax.random.split(key)
    x = jax.random.normal(kx, (B, N, dim), jnp.float32)
    raw = init_params(kp, dim, num_heads, mlp_ratio=4.0, eta=1.0)
    params = prepare_params(raw, num_heads=num_heads)

    fwd = jax.jit(functools.partial(fan_block_forward, H=H, W=W, num_heads=num_heads))
    out = fwd(x, params)
    jax.block_until_ready(out)
    assert out.shape == (B, N, dim)
    assert bool(jnp.all(jnp.isfinite(out)))
    print("KERNEL_OK")
</pallas_src>

<mosaic_0001>
module attributes {stable_mosaic.version = 11 : i64} {
  func.func @_ln_matmul_split_kernel(%arg0: i32, %arg1: memref<32x64xf32, #tpu.memory_space<vmem>>, %arg2: memref<1x64xf32, #tpu.memory_space<vmem>>, %arg3: memref<1x64xf32, #tpu.memory_space<vmem>>, %arg4: memref<64x320xbf16, #tpu.memory_space<vmem>>, %arg5: memref<1x320xf32, #tpu.memory_space<vmem>>, %arg6: memref<32x64xf32, #tpu.memory_space<vmem>>, %arg7: memref<32x64xf32, #tpu.memory_space<vmem>>, %arg8: memref<32x256xf32, #tpu.memory_space<vmem>>) attributes {dimension_semantics = [#tpu.dimension_semantics<parallel>], iteration_bounds = array<i64: 1>, scalar_prefetch = 0 : i64, scratch_operands = 0 : i64, tpu.core_type = #tpu.core_type<tc>, window_params = [{transform_indices = @transform_0, window_bounds = array<i64: 32, 64>}, {pipeline_mode = #tpu.pipeline_mode<synchronous>, transform_indices = @transform_1, window_bounds = array<i64: 1, 64>}, {pipeline_mode = #tpu.pipeline_mode<synchronous>, transform_indices = @transform_2, window_bounds = array<i64: 1, 64>}, {pipeline_mode = #tpu.pipeline_mode<synchronous>, transform_indices = @transform_3, window_bounds = array<i64: 64, 320>}, {pipeline_mode = #tpu.pipeline_mode<synchronous>, transform_indices = @transform_4, window_bounds = array<i64: 1, 320>}, {transform_indices = @transform_5, window_bounds = array<i64: 32, 64>}, {transform_indices = @transform_6, window_bounds = array<i64: 32, 64>}, {transform_indices = @transform_7, window_bounds = array<i64: 32, 256>}]} {
    %c0 = arith.constant 0 : index
    %c0_0 = arith.constant 0 : index
    %0 = vector.load %arg1[%c0, %c0_0] : memref<32x64xf32, #tpu.memory_space<vmem>>, vector<32x64xf32>
    %cst = arith.constant dense<0.000000e+00> : vector<32xf32>
    %1 = vector.multi_reduction <add>, %0, %cst [1] : vector<32x64xf32> to vector<32xf32>
    %2 = vector.shape_cast %1 : vector<32xf32> to vector<32x1xf32>
    %cst_1 = arith.constant 6.400000e+01 : f32
    %3 = vector.broadcast %cst_1 : f32 to vector<32x1xf32>
    %4 = arith.divf %2, %3 : vector<32x1xf32>
    %5 = vector.broadcast %4 : vector<32x1xf32> to vector<32x64xf32>
    %6 = arith.subf %0, %5 : vector<32x64xf32>
    %7 = arith.mulf %6, %6 : vector<32x64xf32>
    %cst_2 = arith.constant dense<0.000000e+00> : vector<32xf32>
    %8 = vector.multi_reduction <add>, %7, %cst_2 [1] : vector<32x64xf32> to vector<32xf32>
    %9 = vector.shape_cast %8 : vector<32xf32> to vector<32x1xf32>
    %cst_3 = arith.constant 6.400000e+01 : f32
    %10 = vector.broadcast %cst_3 : f32 to vector<32x1xf32>
    %11 = arith.divf %9, %10 : vector<32x1xf32>
    %12 = vector.broadcast %4 : vector<32x1xf32> to vector<32x64xf32>
    %13 = arith.subf %0, %12 : vector<32x64xf32>
    %cst_4 = arith.constant 9.99999974E-6 : f32
    %14 = vector.broadcast %cst_4 : f32 to vector<32x1xf32>
    %15 = arith.addf %11, %14 : vector<32x1xf32>
    %16 = math.rsqrt %15 : vector<32x1xf32>
    %17 = vector.broadcast %16 : vector<32x1xf32> to vector<32x64xf32>
    %18 = arith.mulf %13, %17 : vector<32x64xf32>
    %c0_5 = arith.constant 0 : index
    %c0_6 = arith.constant 0 : index
    %19 = vector.load %arg2[%c0_5, %c0_6] : memref<1x64xf32, #tpu.memory_space<vmem>>, vector<1x64xf32>
    %20 = vector.broadcast %19 : vector<1x64xf32> to vector<32x64xf32>
    %21 = arith.mulf %18, %20 : vector<32x64xf32>
    %c0_7 = arith.constant 0 : index
    %c0_8 = arith.constant 0 : index
    %22 = vector.load %arg3[%c0_7, %c0_8] : memref<1x64xf32, #tpu.memory_space<vmem>>, vector<1x64xf32>
    %23 = vector.broadcast %22 : vector<1x64xf32> to vector<32x64xf32>
    %24 = arith.addf %21, %23 : vector<32x64xf32>
    %c0_9 = arith.constant 0 : index
    %c0_10 = arith.constant 0 : index
    %25 = vector.load %arg6[%c0_9, %c0_10] : memref<32x64xf32, #tpu.memory_space<vmem>>, vector<32x64xf32>
    tpu.vector_store %arg6[%c0_9, %c0_10], %24 {strides = array<i32>} : memref<32x64xf32, #tpu.memory_space<vmem>>, vector<32x64xf32>,
    %26 = arith.truncf %24 : vector<32x64xf32> to vector<32x64xbf16>
    %c0_11 = arith.constant 0 : index
    %c0_12 = arith.constant 0 : index
    %27 = vector.load %arg4[%c0_11, %c0_12] : memref<64x320xbf16, #tpu.memory_space<vmem>>, vector<64x320xbf16>
    %cst_13 = arith.constant dense<0.000000e+00> : vector<32x320xf32>
    %28 = tpu.matmul %26, %27, %cst_13 {dimension_numbers = #tpu.dot_dimension_numbers<[1], [0], [0], [1], [0, 0, 1, 1], [], []>} : vector<32x64xbf16>, vector<64x320xbf16>, vector<32x320xf32> -> vector<32x320xf32>
    %c0_14 = arith.constant 0 : index
    %c0_15 = arith.constant 0 : index
    %29 = vector.load %arg5[%c0_14, %c0_15] : memref<1x320xf32, #tpu.memory_space<vmem>>, vector<1x320xf32>
    %30 = vector.broadcast %29 : vector<1x320xf32> to vector<32x320xf32>
    %31 = arith.addf %28, %30 : vector<32x320xf32>
    %32 = vector.extract_strided_slice %31 {offsets = [0, 0], sizes = [32, 64], strides = [1, 1]} : vector<32x320xf32> to vector<32x64xf32>
    %c0_16 = arith.constant 0 : index
    %c0_17 = arith.constant 0 : index
    %33 = vector.load %arg7[%c0_16, %c0_17] : memref<32x64xf32, #tpu.memory_space<vmem>>, vector<32x64xf32>
    tpu.vector_store %arg7[%c0_16, %c0_17], %32 {strides = array<i32>} : memref<32x64xf32, #tpu.memory_space<vmem>>, vector<32x64xf32>,
    %34 = vector.extract_strided_slice %31 {offsets = [0, 64], sizes = [32, 256], strides = [1, 1]} : vector<32x320xf32> to vector<32x256xf32>
    %c0_18 = arith.constant 0 : index
    %c0_19 = arith.constant 0 : index
    %35 = vector.load %arg8[%c0_18, %c0_19] : memref<32x256xf32, #tpu.memory_space<vmem>>, vector<32x256xf32>
    tpu.vector_store %arg8[%c0_18, %c0_19], %34 {strides = array<i32>} : memref<32x256xf32, #tpu.memory_space<vmem>>, vector<32x256xf32>,
    return
  }
  func.func @transform_0(%arg0: i32) -> (i32, i32) {
    %c0_i32 = arith.constant 0 : i32
    %c0_i32_0 = arith.constant 0 : i32
    return %arg0, %c0_i32 : i32, i32
  }
  func.func @transform_1(%arg0: i32) -> (i32, i32) {
    %c0_i32 = arith.constant 0 : i32
    %c0_i32_0 = arith.constant 0 : i32
    %c0_i32_1 = arith.constant 0 : i32
    return %c0_i32, %c0_i32_0 : i32, i32
  }
  func.func @transform_2(%arg0: i32) -> (i32, i32) {
    %c0_i32 = arith.constant 0 : i32
    %c0_i32_0 = arith.constant 0 : i32
    %c0_i32_1 = arith.constant 0 : i32
    return %c0_i32, %c0_i32_0 : i32, i32
  }
  func.func @transform_3(%arg0: i32) -> (i32, i32) {
    %c0_i32 = arith.constant 0 : i32
    %c0_i32_0 = arith.constant 0 : i32
    %c0_i32_1 = arith.constant 0 : i32
    return %c0_i32, %c0_i32_0 : i32, i32
  }
  func.func @transform_4(%arg0: i32) -> (i32, i32) {
    %c0_i32 = arith.constant 0 : i32
    %c0_i32_0 = arith.constant 0 : i32
    %c0_i32_1 = arith.constant 0 : i32
    return %c0_i32, %c0_i32_0 : i32, i32
  }
  func.func @transform_5(%arg0: i32) -> (i32, i32) {
    %c0_i32 = arith.constant 0 : i32
    %c0_i32_0 = arith.constant 0 : i32
    return %arg0, %c0_i32 : i32, i32
  }
  func.func @transform_6(%arg0: i32) -> (i32, i32) {
    %c0_i32 = arith.constant 0 : i32
    %c0_i32_0 = arith.constant 0 : i32
    return %arg0, %c0_i32 : i32, i32
  }
  func.func @transform_7(%arg0: i32) -> (i32, i32) {
    %c0_i32 = arith.constant 0 : i32
    %c0_i32_0 = arith.constant 0 : i32
    return %arg0, %c0_i32 : i32, i32
  }
}

module attributes {stable_mosaic.version = 11 : i64} {
  func.func @_token_attn_kernel(%arg0: i32, %arg1: i32, %arg2: i32, %arg3: memref<1x16x64xbf16, #tpu.memory_space<vmem>>, %arg4: memref<1x16x128xbf16, #tpu.memory_space<vmem>>, %arg5: memref<1x16x64xbf16, #tpu.memory_space<vmem>>, %arg6: memref<16x4xf32, #tpu.memory_space<vmem>>, %arg7: memref<16x4xf32, #tpu.memory_space<vmem>>, %arg8: memref<16x64xf32, #tpu.memory_space<vmem>>) attributes {dimension_semantics = [#tpu.dimension_semantics<parallel>, #tpu.dimension_semantics<parallel>, #tpu.dimension_semantics<arbitrary>], iteration_bounds = array<i64: 2, 1, 1>, scalar_prefetch = 0 : i64, scratch_operands = 3 : i64, tpu.core_type = #tpu.core_type<tc>, window_params = [{transform_indices = @transform_0, window_bounds = array<i64: 1, 16, 64>}, {transform_indices = @transform_1, window_bounds = array<i64: 1, 16, 128>}, {transform_indices = @transform_2, window_bounds = array<i64: 1, 16, 64>}]} {
    %c0_i32 = arith.constant 0 : i32
    %0 = arith.cmpi eq, %arg2, %c0_i32 : i32
    %1 = arith.extui %0 : i1 to i32
    %c0_i32_0 = arith.constant 0 : i32
    %2 = arith.cmpi ne, %1, %c0_i32_0 : i32
    scf.if %2 {
      %cst_39 = arith.constant -1.000000e+30 : f32
      %118 = vector.broadcast %cst_39 : f32 to vector<16x4xf32>
      %c0_40 = arith.constant 0 : index
      %c0_41 = arith.constant 0 : index
      %119 = vector.load %arg6[%c0_40, %c0_41] : memref<16x4xf32, #tpu.memory_space<vmem>>, vector<16x4xf32>
      tpu.vector_store %arg6[%c0_40, %c0_41], %118 {strides = array<i32>} : memref<16x4xf32, #tpu.memory_space<vmem>>, vector<16x4xf32>,
      %cst_42 = arith.constant 0.000000e+00 : f32
      %120 = vector.broadcast %cst_42 : f32 to vector<16x4xf32>
      %c0_43 = arith.constant 0 : index
      %c0_44 = arith.constant 0 : index
      %121 = vector.load %arg7[%c0_43, %c0_44] : memref<16x4xf32, #tpu.memory_space<vmem>>, vector<16x4xf32>
      tpu.vector_store %arg7[%c0_43, %c0_44], %120 {strides = array<i32>} : memref<16x4xf32, #tpu.memory_space<vmem>>, vector<16x4xf32>,
      %cst_45 = arith.constant 0.000000e+00 : f32
      %122 = vector.broadcast %cst_45 : f32 to vector<16x64xf32>
      %c0_46 = arith.constant 0 : index
      %c0_47 = arith.constant 0 : index
      %123 = vector.load %arg8[%c0_46, %c0_47] : memref<16x64xf32, #tpu.memory_space<vmem>>, vector<16x64xf32>
      tpu.vector_store %arg8[%c0_46, %c0_47], %122 {strides = array<i32>} : memref<16x64xf32, #tpu.memory_space<vmem>>, vector<16x64xf32>,
    } else {
    }
    %c0 = arith.constant 0 : index
    %c0_1 = arith.constant 0 : index
    %c0_2 = arith.constant 0 : index
    %3 = vector.load %arg3[%c0, %c0_1, %c0_2] : memref<1x16x64xbf16, #tpu.memory_space<vmem>>, vector<1x16x64xbf16>
    %4 = vector.shape_cast %3 : vector<1x16x64xbf16> to vector<16x64xbf16>
    %c0_3 = arith.constant 0 : index
    %c0_4 = arith.constant 0 : index
    %c0_5 = arith.constant 0 : index
    %5 = vector.load %arg4[%c0_3, %c0_4, %c0_5] : memref<1x16x128xbf16, #tpu.memory_space<vmem>>, vector<1x16x128xbf16>
    %6 = vector.shape_cast %5 : vector<1x16x128xbf16> to vector<16x128xbf16>
    %c0_6 = arith.constant 0 : index
    %c0_7 = arith.constant 0 : index
    %7 = vector.load %arg6[%c0_6, %c0_7] : memref<16x4xf32, #tpu.memory_space<vmem>>, vector<16x4xf32>
    %c0_8 = arith.constant 0 : index
    %c0_9 = arith.constant 0 : index
    %8 = vector.load %arg7[%c0_8, %c0_9] : memref<16x4xf32, #tpu.memory_space<vmem>>, vector<16x4xf32>
    %9 = vector.extract_strided_slice %4 {offsets = [0, 0], sizes = [16, 16], strides = [1, 1]} : vector<16x64xbf16> to vector<16x16xbf16>
    %10 = vector.extract_strided_slice %6 {offsets = [0, 0], sizes = [16, 16], strides = [1, 1]} : vector<16x128xbf16> to vector<16x16xbf16>
    %11 = vector.extract_strided_slice %6 {offsets = [0, 64], sizes = [16, 16], strides = [1, 1]} : vector<16x128xbf16> to vector<16x16xbf16>
    %cst = arith.constant dense<0.000000e+00> : vector<16x16xf32>
    %12 = tpu.matmul %9, %10, %cst {dimension_numbers = #tpu.dot_dimension_numbers<[1], [1], [0], [0], [0, 0, 1, 0], [], []>} : vector<16x16xbf16>, vector<16x16xbf16>, vector<16x16xf32> -> vector<16x16xf32>
    %cst_10 = arith.constant 2.500000e-01 : f32
    %13 = vector.broadcast %cst_10 : f32 to vector<16x16xf32>
    %14 = arith.mulf %12, %13 : vector<16x16xf32>
    %15 = vector.extract_strided_slice %7 {offsets = [0, 0], sizes = [16, 1], strides = [1, 1]} : vector<16x4xf32> to vector<16x1xf32>
    %cst_11 = arith.constant dense<0xFF800000> : vector<16xf32>
    %16 = vector.multi_reduction <maximumf>, %14, %cst_11 [1] : vector<16x16xf32> to vector<16xf32>
    %17 = vector.shape_cast %16 : vector<16xf32> to vector<16x1xf32>
    %18 = arith.maximumf %15, %17 : vector<16x1xf32>
    %19 = arith.subf %15, %18 : vector<16x1xf32>
    %20 = math.exp %19 : vector<16x1xf32>
    %21 = vector.broadcast %18 : vector<16x1xf32> to vector<16x16xf32>
    %22 = arith.subf %14, %21 : vector<16x16xf32>
    %23 = math.exp %22 : vector<16x16xf32>
    %24 = vector.extract_strided_slice %8 {offsets = [0, 0], sizes = [16, 1], strides = [1, 1]} : vector<16x4xf32> to vector<16x1xf32>
    %25 = arith.mulf %20, %24 : vector<16x1xf32>
    %cst_12 = arith.constant dense<0.000000e+00> : vector<16xf32>
    %26 = vector.multi_reduction <add>, %23, %cst_12 [1] : vector<16x16xf32> to vector<16xf32>
    %27 = vector.shape_cast %26 : vector<16xf32> to vector<16x1xf32>
    %28 = arith.addf %25, %27 : vector<16x1xf32>
    %29 = vector.shape_cast %20 : vector<16x1xf32> to vector<16x1xf32>
    %30 = vector.broadcast %29 : vector<16x1xf32> to vector<16x16xf32>
    %31 = arith.truncf %23 : vector<16x16xf32> to vector<16x16xbf16>
    %cst_13 = arith.constant dense<0.000000e+00> : vector<16x16xf32>
    %32 = tpu.matmul %31, %11, %cst_13 {dimension_numbers = #tpu.dot_dimension_numbers<[1], [0], [0], [1], [0, 0, 1, 1], [], []>} : vector<16x16xbf16>, vector<16x16xbf16>, vector<16x16xf32> -> vector<16x16xf32>
    %33 = vector.extract_strided_slice %4 {offsets = [0, 16], sizes = [16, 16], strides = [1, 1]} : vector<16x64xbf16> to vector<16x16xbf16>
    %34 = vector.extract_strided_slice %6 {offsets = [0, 16], sizes = [16, 16], strides = [1, 1]} : vector<16x128xbf16> to vector<16x16xbf16>
    %35 = vector.extract_strided_slice %6 {offsets = [0, 80], sizes = [16, 16], strides = [1, 1]} : vector<16x128xbf16> to vector<16x16xbf16>
    %cst_14 = arith.constant dense<0.000000e+00> : vector<16x16xf32>
    %36 = tpu.matmul %33, %34, %cst_14 {dimension_numbers = #tpu.dot_dimension_numbers<[1], [1], [0], [0], [0, 0, 1, 0], [], []>} : vector<16x16xbf16>, vector<16x16xbf16>, vector<16x16xf32> -> vector<16x16xf32>
    %cst_15 = arith.constant 2.500000e-01 : f32
    %37 = vector.broadcast %cst_15 : f32 to vector<16x16xf32>
    %38 = arith.mulf %36, %37 : vector<16x16xf32>
    %39 = vector.extract_strided_slice %7 {offsets = [0, 1], sizes = [16, 1], strides = [1, 1]} : vector<16x4xf32> to vector<16x1xf32>
    %cst_16 = arith.constant dense<0xFF800000> : vector<16xf32>
    %40 = vector.multi_reduction <maximumf>, %38, %cst_16 [1] : vector<16x16xf32> to vector<16xf32>
    %41 = vector.shape_cast %40 : vector<16xf32> to vector<16x1xf32>
    %42 = arith.maximumf %39, %41 : vector<16x1xf32>
    %43 = arith.subf %39, %42 : vector<16x1xf32>
    %44 = math.exp %43 : vector<16x1xf32>
    %45 = vector.broadcast %42 : vector<16x1xf32> to vector<16x16xf32>
    %46 = arith.subf %38, %45 : vector<16x16xf32>
    %47 = math.exp %46 : vector<16x16xf32>
    %48 = vector.extract_strided_slice %8 {offsets = [0, 1], sizes = [16, 1], strides = [1, 1]} : vector<16x4xf32> to vector<16x1xf32>
    %49 = arith.mulf %44, %48 : vector<16x1xf32>
    %cst_17 = arith.constant dense<0.000000e+00> : vector<16xf32>
    %50 = vector.multi_reduction <add>, %47, %cst_17 [1] : vector<16x16xf32> to vector<16xf32>
    %51 = vector.shape_cast %50 : vector<16xf32> to vector<16x1xf32>
    %52 = arith.addf %49, %51 : vector<16x1xf32>
    %53 = vector.shape_cast %44 : vector<16x1xf32> to vector<16x1xf32>
    %54 = vector.broadcast %53 : vector<16x1xf32> to vector<16x16xf32>
    %55 = arith.truncf %47 : vector<16x16xf32> to vector<16x16xbf16>
    %cst_18 = arith.constant dense<0.000000e+00> : vector<16x16xf32>
    %56 = tpu.matmul %55, %35, %cst_18 {dimension_numbers = #tpu.dot_dimension_numbers<[1], [0], [0], [1], [0, 0, 1, 1], [], []>} : vector<16x16xbf16>, vector<16x16xbf16>, vector<16x16xf32> -> vector<16x16xf32>
    %57 = vector.extract_strided_slice %4 {offsets = [0, 32], sizes = [16, 16], strides = [1, 1]} : vector<16x64xbf16> to vector<16x16xbf16>
    %58 = vector.extract_strided_slice %6 {offsets = [0, 32], sizes = [16, 16], strides = [1, 1]} : vector<16x128xbf16> to vector<16x16xbf16>
    %59 = vector.extract_strided_slice %6 {offsets = [0, 96], sizes = [16, 16], strides = [1, 1]} : vector<16x128xbf16> to vector<16x16xbf16>
    %cst_19 = arith.constant dense<0.000000e+00> : vector<16x16xf32>
    %60 = tpu.matmul %57, %58, %cst_19 {dimension_numbers = #tpu.dot_dimension_numbers<[1], [1], [0], [0], [0, 0, 1, 0], [], []>} : vector<16x16xbf16>, vector<16x16xbf16>, vector<16x16xf32> -> vector<16x16xf32>
    %cst_20 = arith.constant 2.500000e-01 : f32
    %61 = vector.broadcast %cst_20 : f32 to vector<16x16xf32>
    %62 = arith.mulf %60, %61 : vector<16x16xf32>
    %63 = vector.extract_strided_slice %7 {offsets = [0, 2], sizes = [16, 1], strides = [1, 1]} : vector<16x4xf32> to vector<16x1xf32>
    %cst_21 = arith.constant dense<0xFF800000> : vector<16xf32>
    %64 = vector.multi_reduction <maximumf>, %62, %cst_21 [1] : vector<16x16xf32> to vector<16xf32>
    %65 = vector.shape_cast %64 : vector<16xf32> to vector<16x1xf32>
    %66 = arith.maximumf %63, %65 : vector<16x1xf32>
    %67 = arith.subf %63, %66 : vector<16x1xf32>
    %68 = math.exp %67 : vector<16x1xf32>
    %69 = vector.broadcast %66 : vector<16x1xf32> to vector<16x16xf32>
    %70 = arith.subf %62, %69 : vector<16x16xf32>
    %71 = math.exp %70 : vector<16x16xf32>
    %72 = vector.extract_strided_slice %8 {offsets = [0, 2], sizes = [16, 1], strides = [1, 1]} : vector<16x4xf32> to vector<16x1xf32>
    %73 = arith.mulf %68, %72 : vector<16x1xf32>
    %cst_22 = arith.constant dense<0.000000e+00> : vector<16xf32>
    %74 = vector.multi_reduction <add>, %71, %cst_22 [1] : vector<16x16xf32> to vector<16xf32>
    %75 = vector.shape_cast %74 : vector<16xf32> to vector<16x1xf32>
    %76 = arith.addf %73, %75 : vector<16x1xf32>
    %77 = vector.shape_cast %68 : vector<16x1xf32> to vector<16x1xf32>
    %78 = vector.broadcast %77 : vector<16x1xf32> to vector<16x16xf32>
    %79 = arith.truncf %71 : vector<16x16xf32> to vector<16x16xbf16>
    %cst_23 = arith.constant dense<0.000000e+00> : vector<16x16xf32>
    %80 = tpu.matmul %79, %59, %cst_23 {dimension_numbers = #tpu.dot_dimension_numbers<[1], [0], [0], [1], [0, 0, 1, 1], [], []>} : vector<16x16xbf16>, vector<16x16xbf16>, vector<16x16xf32> -> vector<16x16xf32>
    %81 = vector.extract_strided_slice %4 {offsets = [0, 48], sizes = [16, 16], strides = [1, 1]} : vector<16x64xbf16> to vector<16x16xbf16>
    %82 = vector.extract_strided_slice %6 {offsets = [0, 48], sizes = [16, 16], strides = [1, 1]} : vector<16x128xbf16> to vector<16x16xbf16>
    %83 = vector.extract_strided_slice %6 {offsets = [0, 112], sizes = [16, 16], strides = [1, 1]} : vector<16x128xbf16> to vector<16x16xbf16>
    %cst_24 = arith.constant dense<0.000000e+00> : vector<16x16xf32>
    %84 = tpu.matmul %81, %82, %cst_24 {dimension_numbers = #tpu.dot_dimension_numbers<[1], [1], [0], [0], [0, 0, 1, 0], [], []>} : vector<16x16xbf16>, vector<16x16xbf16>, vector<16x16xf32> -> vector<16x16xf32>
    %cst_25 = arith.constant 2.500000e-01 : f32
    %85 = vector.broadcast %cst_25 : f32 to vector<16x16xf32>
    %86 = arith.mulf %84, %85 : vector<16x16xf32>
    %87 = vector.extract_strided_slice %7 {offsets = [0, 3], sizes = [16, 1], strides = [1, 1]} : vector<16x4xf32> to vector<16x1xf32>
    %cst_26 = arith.constant dense<0xFF800000> : vector<16xf32>
    %88 = vector.multi_reduction <maximumf>, %86, %cst_26 [1] : vector<16x16xf32> to vector<16xf32>
    %89 = vector.shape_cast %88 : vector<16xf32> to vector<16x1xf32>
    %90 = arith.maximumf %87, %89 : vector<16x1xf32>
    %91 = arith.subf %87, %90 : vector<16x1xf32>
    %92 = math.exp %91 : vector<16x1xf32>
    %93 = vector.broadcast %90 : vector<16x1xf32> to vector<16x16xf32>
    %94 = arith.subf %86, %93 : vector<16x16xf32>
    %95 = math.exp %94 : vector<16x16xf32>
    %96 = vector.extract_strided_slice %8 {offsets = [0, 3], sizes = [16, 1], strides = [1, 1]} : vector<16x4xf32> to vector<16x1xf32>
    %97 = arith.mulf %92, %96 : vector<16x1xf32>
    %cst_27 = arith.constant dense<0.000000e+00> : vector<16xf32>
    %98 = vector.multi_reduction <add>, %95, %cst_27 [1] : vector<16x16xf32> to vector<16xf32>
    %99 = vector.shape_cast %98 : vector<16xf32> to vector<16x1xf32>
    %100 = arith.addf %97, %99 : vector<16x1xf32>
    %101 = vector.shape_cast %92 : vector<16x1xf32> to vector<16x1xf32>
    %102 = vector.broadcast %101 : vector<16x1xf32> to vector<16x16xf32>
    %103 = arith.truncf %95 : vector<16x16xf32> to vector<16x16xbf16>
    %cst_28 = arith.constant dense<0.000000e+00> : vector<16x16xf32>
    %104 = tpu.matmul %103, %83, %cst_28 {dimension_numbers = #tpu.dot_dimension_numbers<[1], [0], [0], [1], [0, 0, 1, 1], [], []>} : vector<16x16xbf16>, vector<16x16xbf16>, vector<16x16xf32> -> vector<16x16xf32>
    %105 = tpu.concatenate %18, %42, %66, %90 in 1 : vector<16x1xf32>, vector<16x1xf32>, vector<16x1xf32>, vector<16x1xf32> -> vector<16x4xf32>
    %c0_29 = arith.constant 0 : index
    %c0_30 = arith.constant 0 : index
    %106 = vector.load %arg6[%c0_29, %c0_30] : memref<16x4xf32, #tpu.memory_space<vmem>>, vector<16x4xf32>
    tpu.vector_store %arg6[%c0_29, %c0_30], %105 {strides = array<i32>} : memref<16x4xf32, #tpu.memory_space<vmem>>, vector<16x4xf32>,
    %107 = tpu.concatenate %28, %52, %76, %100 in 1 : vector<16x1xf32>, vector<16x1xf32>, vector<16x1xf32>, vector<16x1xf32> -> vector<16x4xf32>
    %c0_31 = arith.constant 0 : index
    %c0_32 = arith.constant 0 : index
    %108 = vector.load %arg7[%c0_31, %c0_32] : memref<16x4xf32, #tpu.memory_space<vmem>>, vector<16x4xf32>
    tpu.vector_store %arg7[%c0_31, %c0_32], %107 {strides = array<i32>} : memref<16x4xf32, #tpu.memory_space<vmem>>, vector<16x4xf32>,
    %109 = tpu.concatenate %30, %54, %78, %102 in 1 : vector<16x16xf32>, vector<16x16xf32>, vector<16x16xf32>, vector<16x16xf32> -> vector<16x64xf32>
    %c0_33 = arith.constant 0 : index
    %c0_34 = arith.constant 0 : index
    %110 = vector.load %arg8[%c0_33, %c0_34] : memref<16x64xf32, #tpu.memory_space<vmem>>, vector<16x64xf32>
    %111 = arith.mulf %109, %110 : vector<16x64xf32>
    %112 = tpu.concatenate %32, %56, %80, %104 in 1 : vector<16x16xf32>, vector<16x16xf32>, vector<16x16xf32>, vector<16x16xf32> -> vector<16x64xf32>
    %113 = arith.addf %111, %112 : vector<16x64xf32>
    %c0_35 = arith.constant 0 : index
    %c0_36 = arith.constant 0 : index
    %114 = vector.load %arg8[%c0_35, %c0_36] : memref<16x64xf32, #tpu.memory_space<vmem>>, vector<16x64xf32>
    tpu.vector_store %arg8[%c0_35, %c0_36], %113 {strides = array<i32>} : memref<16x64xf32, #tpu.memory_space<vmem>>, vector<16x64xf32>,
    %c0_i32_37 = arith.constant 0 : i32
    %115 = arith.cmpi eq, %arg2, %c0_i32_37 : i32
    %116 = arith.extui %115 : i1 to i32
    %c0_i32_38 = arith.constant 0 : i32
    %117 = arith.cmpi ne, %116, %c0_i32_38 : i32
    scf.if %117 {
      %c0_39 = arith.constant 0 : index
      %c0_40 = arith.constant 0 : index
      %118 = vector.load %arg7[%c0_39, %c0_40] : memref<16x4xf32, #tpu.memory_space<vmem>>, vector<16x4xf32>
      %119 = tpu.reciprocal %118 {approx = true} : vector<16x4xf32> -> vector<16x4xf32>
      %120 = vector.extract_strided_slice %119 {offsets = [0, 0], sizes = [16, 1], strides = [1, 1]} : vector<16x4xf32> to vector<16x1xf32>
      %121 = vector.shape_cast %120 : vector<16x1xf32> to vector<16x1xf32>
      %122 = vector.broadcast %121 : vector<16x1xf32> to vector<16x16xf32>
      %123 = vector.extract_strided_slice %119 {offsets = [0, 1], sizes = [16, 1], strides = [1, 1]} : vector<16x4xf32> to vector<16x1xf32>
      %124 = vector.shape_cast %123 : vector<16x1xf32> to vector<16x1xf32>
      %125 = vector.broadcast %124 : vector<16x1xf32> to vector<16x16xf32>
      %126 = vector.extract_strided_slice %119 {offsets = [0, 2], sizes = [16, 1], strides = [1, 1]} : vector<16x4xf32> to vector<16x1xf32>
      %127 = vector.shape_cast %126 : vector<16x1xf32> to vector<16x1xf32>
      %128 = vector.broadcast %127 : vector<16x1xf32> to vector<16x16xf32>
      %129 = vector.extract_strided_slice %119 {offsets = [0, 3], sizes = [16, 1], strides = [1, 1]} : vector<16x4xf32> to vector<16x1xf32>
      %130 = vector.shape_cast %129 : vector<16x1xf32> to vector<16x1xf32>
      %131 = vector.broadcast %130 : vector<16x1xf32> to vector<16x16xf32>
      %132 = tpu.concatenate %122, %125, %128, %131 in 1 : vector<16x16xf32>, vector<16x16xf32>, vector<16x16xf32>, vector<16x16xf32> -> vector<16x64xf32>
      %c0_41 = arith.constant 0 : index
      %c0_42 = arith.constant 0 : index
      %133 = vector.load %arg8[%c0_41, %c0_42] : memref<16x64xf32, #tpu.memory_space<vmem>>, vector<16x64xf32>
      %134 = arith.mulf %133, %132 : vector<16x64xf32>
      %135 = arith.truncf %134 : vector<16x64xf32> to vector<16x64xbf16>
      %c0_43 = arith.constant 0 : index
      %c0_44 = arith.constant 0 : index
      %c0_45 = arith.constant 0 : index
      %136 = vector.load %arg5[%c0_43, %c0_44, %c0_45] : memref<1x16x64xbf16, #tpu.memory_space<vmem>>, vector<1x16x64xbf16>
      %137 = vector.shape_cast %136 : vector<1x16x64xbf16> to vector<16x64xbf16>
      %138 = vector.shape_cast %135 : vector<16x64xbf16> to vector<1x16x64xbf16>
      tpu.vector_store %arg5[%c0_43, %c0_44, %c0_45], %138 {strides = array<i32>} : memref<1x16x64xbf16, #tpu.memory_space<vmem>>, vector<1x16x64xbf16>,
    } else {
    }
    return
  }
  func.func @transform_0(%arg0: i32, %arg1: i32, %arg2: i32) -> (i32, i32, i32) {
    %c0_i32 = arith.constant 0 : i32
    %c0_i32_0 = arith.constant 0 : i32
    return %arg0, %arg1, %c0_i32 : i32, i32, i32
  }
  func.func @transform_1(%arg0: i32, %arg1: i32, %arg2: i32) -> (i32, i32, i32) {
    %c0_i32 = arith.constant 0 : i32
    %c0_i32_0 = arith.constant 0 : i32
    return %arg0, %arg2, %c0_i32 : i32, i32, i32
  }
  func.func @transform_2(%arg0: i32, %arg1: i32, %arg2: i32) -> (i32, i32, i32) {
    %c0_i32 = arith.constant 0 : i32
    %c0_i32_0 = arith.constant 0 : i32
    return %arg0, %arg1, %c0_i32 : i32, i32, i32
  }
}

module attributes {stable_mosaic.version = 11 : i64} {
  func.func @_matmul_residual_kernel(%arg0: i32, %arg1: memref<32x64xbf16, #tpu.memory_space<vmem>>, %arg2: memref<64x64xbf16, #tpu.memory_space<vmem>>, %arg3: memref<1x64xf32, #tpu.memory_space<vmem>>, %arg4: memref<32x64xf32, #tpu.memory_space<vmem>>, %arg5: memref<1x64xf32, #tpu.memory_space<vmem>>, %arg6: memref<32x64xf32, #tpu.memory_space<vmem>>) attributes {dimension_semantics = [#tpu.dimension_semantics<parallel>], iteration_bounds = array<i64: 1>, scalar_prefetch = 0 : i64, scratch_operands = 0 : i64, tpu.core_type = #tpu.core_type<tc>, window_params = [{transform_indices = @transform_0, window_bounds = array<i64: 32, 64>}, {pipeline_mode = #tpu.pipeline_mode<synchronous>, transform_indices = @transform_1, window_bounds = array<i64: 64, 64>}, {pipeline_mode = #tpu.pipeline_mode<synchronous>, transform_indices = @transform_2, window_bounds = array<i64: 1, 64>}, {transform_indices = @transform_3, window_bounds = array<i64: 32, 64>}, {pipeline_mode = #tpu.pipeline_mode<synchronous>, transform_indices = @transform_4, window_bounds = array<i64: 1, 64>}, {transform_indices = @transform_5, window_bounds = array<i64: 32, 64>}]} {
    %c0 = arith.constant 0 : index
    %c0_0 = arith.constant 0 : index
    %0 = vector.load %arg1[%c0, %c0_0] : memref<32x64xbf16, #tpu.memory_space<vmem>>, vector<32x64xbf16>
    %c0_1 = arith.constant 0 : index
    %c0_2 = arith.constant 0 : index
    %1 = vector.load %arg2[%c0_1, %c0_2] : memref<64x64xbf16, #tpu.memory_space<vmem>>, vector<64x64xbf16>
    %cst = arith.constant dense<0.000000e+00> : vector<32x64xf32>
    %2 = tpu.matmul %0, %1, %cst {dimension_numbers = #tpu.dot_dimension_numbers<[1], [0], [0], [1], [0, 0, 1, 1], [], []>} : vector<32x64xbf16>, vector<64x64xbf16>, vector<32x64xf32> -> vector<32x64xf32>
    %c0_3 = arith.constant 0 : index
    %c0_4 = arith.constant 0 : index
    %3 = vector.load %arg3[%c0_3, %c0_4] : memref<1x64xf32, #tpu.memory_space<vmem>>, vector<1x64xf32>
    %4 = vector.broadcast %3 : vector<1x64xf32> to vector<32x64xf32>
    %5 = arith.addf %2, %4 : vector<32x64xf32>
    %c0_5 = arith.constant 0 : index
    %c0_6 = arith.constant 0 : index
    %6 = vector.load %arg4[%c0_5, %c0_6] : memref<32x64xf32, #tpu.memory_space<vmem>>, vector<32x64xf32>
    %c0_7 = arith.constant 0 : index
    %c0_8 = arith.constant 0 : index
    %7 = vector.load %arg5[%c0_7, %c0_8] : memref<1x64xf32, #tpu.memory_space<vmem>>, vector<1x64xf32>
    %8 = vector.broadcast %7 : vector<1x64xf32> to vector<32x64xf32>
    %9 = arith.mulf %8, %5 : vector<32x64xf32>
    %10 = arith.addf %6, %9 : vector<32x64xf32>
    %c0_9 = arith.constant 0 : index
    %c0_10 = arith.constant 0 : index
    %11 = vector.load %arg6[%c0_9, %c0_10] : memref<32x64xf32, #tpu.memory_space<vmem>>, vector<32x64xf32>
    tpu.vector_store %arg6[%c0_9, %c0_10], %10 {strides = array<i32>} : memref<32x64xf32, #tpu.memory_space<vmem>>, vector<32x64xf32>,
    return
  }
  func.func @transform_0(%arg0: i32) -> (i32, i32) {
    %c0_i32 = arith.constant 0 : i32
    %c0_i32_0 = arith.constant 0 : i32
    return %arg0, %c0_i32 : i32, i32
  }
  func.func @transform_1(%arg0: i32) -> (i32, i32) {
    %c0_i32 = arith.constant 0 : i32
    %c0_i32_0 = arith.constant 0 : i32
    %c0_i32_1 = arith.constant 0 : i32
    return %c0_i32, %c0_i32_0 : i32, i32
  }
  func.func @transform_2(%arg0: i32) -> (i32, i32) {
    %c0_i32 = arith.constant 0 : i32
    %c0_i32_0 = arith.constant 0 : i32
    %c0_i32_1 = arith.constant 0 : i32
    return %c0_i32, %c0_i32_0 : i32, i32
  }
  func.func @transform_3(%arg0: i32) -> (i32, i32) {
    %c0_i32 = arith.constant 0 : i32
    %c0_i32_0 = arith.constant 0 : i32
    return %arg0, %c0_i32 : i32, i32
  }
  func.func @transform_4(%arg0: i32) -> (i32, i32) {
    %c0_i32 = arith.constant 0 : i32
    %c0_i32_0 = arith.constant 0 : i32
    %c0_i32_1 = arith.constant 0 : i32
    return %c0_i32, %c0_i32_0 : i32, i32
  }
  func.func @transform_5(%arg0: i32) -> (i32, i32) {
    %c0_i32 = arith.constant 0 : i32
    %c0_i32_0 = arith.constant 0 : i32
    return %arg0, %c0_i32 : i32, i32
  }
}

module attributes {stable_mosaic.version = 11 : i64} {
  func.func @_ln_matmul_split_kernel(%arg0: i32, %arg1: memref<32x64xf32, #tpu.memory_space<vmem>>, %arg2: memref<1x64xf32, #tpu.memory_space<vmem>>, %arg3: memref<1x64xf32, #tpu.memory_space<vmem>>, %arg4: memref<64x192xbf16, #tpu.memory_space<vmem>>, %arg5: memref<1x192xf32, #tpu.memory_space<vmem>>, %arg6: memref<32x64xbf16, #tpu.memory_space<vmem>>, %arg7: memref<32x128xbf16, #tpu.memory_space<vmem>>) attributes {dimension_semantics = [#tpu.dimension_semantics<parallel>], iteration_bounds = array<i64: 1>, scalar_prefetch = 0 : i64, scratch_operands = 0 : i64, tpu.core_type = #tpu.core_type<tc>, window_params = [{transform_indices = @transform_0, window_bounds = array<i64: 32, 64>}, {pipeline_mode = #tpu.pipeline_mode<synchronous>, transform_indices = @transform_1, window_bounds = array<i64: 1, 64>}, {pipeline_mode = #tpu.pipeline_mode<synchronous>, transform_indices = @transform_2, window_bounds = array<i64: 1, 64>}, {pipeline_mode = #tpu.pipeline_mode<synchronous>, transform_indices = @transform_3, window_bounds = array<i64: 64, 192>}, {pipeline_mode = #tpu.pipeline_mode<synchronous>, transform_indices = @transform_4, window_bounds = array<i64: 1, 192>}, {transform_indices = @transform_5, window_bounds = array<i64: 32, 64>}, {transform_indices = @transform_6, window_bounds = array<i64: 32, 128>}]} {
    %c0 = arith.constant 0 : index
    %c0_0 = arith.constant 0 : index
    %0 = vector.load %arg1[%c0, %c0_0] : memref<32x64xf32, #tpu.memory_space<vmem>>, vector<32x64xf32>
    %cst = arith.constant dense<0.000000e+00> : vector<32xf32>
    %1 = vector.multi_reduction <add>, %0, %cst [1] : vector<32x64xf32> to vector<32xf32>
    %2 = vector.shape_cast %1 : vector<32xf32> to vector<32x1xf32>
    %cst_1 = arith.constant 6.400000e+01 : f32
    %3 = vector.broadcast %cst_1 : f32 to vector<32x1xf32>
    %4 = arith.divf %2, %3 : vector<32x1xf32>
    %5 = vector.broadcast %4 : vector<32x1xf32> to vector<32x64xf32>
    %6 = arith.subf %0, %5 : vector<32x64xf32>
    %7 = arith.mulf %6, %6 : vector<32x64xf32>
    %cst_2 = arith.constant dense<0.000000e+00> : vector<32xf32>
    %8 = vector.multi_reduction <add>, %7, %cst_2 [1] : vector<32x64xf32> to vector<32xf32>
    %9 = vector.shape_cast %8 : vector<32xf32> to vector<32x1xf32>
    %cst_3 = arith.constant 6.400000e+01 : f32
    %10 = vector.broadcast %cst_3 : f32 to vector<32x1xf32>
    %11 = arith.divf %9, %10 : vector<32x1xf32>
    %12 = vector.broadcast %4 : vector<32x1xf32> to vector<32x64xf32>
    %13 = arith.subf %0, %12 : vector<32x64xf32>
    %cst_4 = arith.constant 9.99999974E-6 : f32
    %14 = vector.broadcast %cst_4 : f32 to vector<32x1xf32>
    %15 = arith.addf %11, %14 : vector<32x1xf32>
    %16 = math.rsqrt %15 : vector<32x1xf32>
    %17 = vector.broadcast %16 : vector<32x1xf32> to vector<32x64xf32>
    %18 = arith.mulf %13, %17 : vector<32x64xf32>
    %c0_5 = arith.constant 0 : index
    %c0_6 = arith.constant 0 : index
    %19 = vector.load %arg2[%c0_5, %c0_6] : memref<1x64xf32, #tpu.memory_space<vmem>>, vector<1x64xf32>
    %20 = vector.broadcast %19 : vector<1x64xf32> to vector<32x64xf32>
    %21 = arith.mulf %18, %20 : vector<32x64xf32>
    %c0_7 = arith.constant 0 : index
    %c0_8 = arith.constant 0 : index
    %22 = vector.load %arg3[%c0_7, %c0_8] : memref<1x64xf32, #tpu.memory_space<vmem>>, vector<1x64xf32>
    %23 = vector.broadcast %22 : vector<1x64xf32> to vector<32x64xf32>
    %24 = arith.addf %21, %23 : vector<32x64xf32>
    %25 = arith.truncf %24 : vector<32x64xf32> to vector<32x64xbf16>
    %c0_9 = arith.constant 0 : index
    %c0_10 = arith.constant 0 : index
    %26 = vector.load %arg4[%c0_9, %c0_10] : memref<64x192xbf16, #tpu.memory_space<vmem>>, vector<64x192xbf16>
    %cst_11 = arith.constant dense<0.000000e+00> : vector<32x192xf32>
    %27 = tpu.matmul %25, %26, %cst_11 {dimension_numbers = #tpu.dot_dimension_numbers<[1], [0], [0], [1], [0, 0, 1, 1], [], []>} : vector<32x64xbf16>, vector<64x192xbf16>, vector<32x192xf32> -> vector<32x192xf32>
    %c0_12 = arith.constant 0 : index
    %c0_13 = arith.constant 0 : index
    %28 = vector.load %arg5[%c0_12, %c0_13] : memref<1x192xf32, #tpu.memory_space<vmem>>, vector<1x192xf32>
    %29 = vector.broadcast %28 : vector<1x192xf32> to vector<32x192xf32>
    %30 = arith.addf %27, %29 : vector<32x192xf32>
    %31 = vector.extract_strided_slice %30 {offsets = [0, 0], sizes = [32, 64], strides = [1, 1]} : vector<32x192xf32> to vector<32x64xf32>
    %32 = arith.truncf %31 : vector<32x64xf32> to vector<32x64xbf16>
    %c0_14 = arith.constant 0 : index
    %c0_15 = arith.constant 0 : index
    %33 = vector.load %arg6[%c0_14, %c0_15] : memref<32x64xbf16, #tpu.memory_space<vmem>>, vector<32x64xbf16>
    tpu.vector_store %arg6[%c0_14, %c0_15], %32 {strides = array<i32>} : memref<32x64xbf16, #tpu.memory_space<vmem>>, vector<32x64xbf16>,
    %34 = vector.extract_strided_slice %30 {offsets = [0, 64], sizes = [32, 128], strides = [1, 1]} : vector<32x192xf32> to vector<32x128xf32>
    %35 = arith.truncf %34 : vector<32x128xf32> to vector<32x128xbf16>
    %c0_16 = arith.constant 0 : index
    %c0_17 = arith.constant 0 : index
    %36 = vector.load %arg7[%c0_16, %c0_17] : memref<32x128xbf16, #tpu.memory_space<vmem>>, vector<32x128xbf16>
    tpu.vector_store %arg7[%c0_16, %c0_17], %35 {strides = array<i32>} : memref<32x128xbf16, #tpu.memory_space<vmem>>, vector<32x128xbf16>,
    return
  }
  func.func @transform_0(%arg0: i32) -> (i32, i32) {
    %c0_i32 = arith.constant 0 : i32
    %c0_i32_0 = arith.constant 0 : i32
    return %arg0, %c0_i32 : i32, i32
  }
  func.func @transform_1(%arg0: i32) -> (i32, i32) {
    %c0_i32 = arith.constant 0 : i32
    %c0_i32_0 = arith.constant 0 : i32
    %c0_i32_1 = arith.constant 0 : i32
    return %c0_i32, %c0_i32_0 : i32, i32
  }
  func.func @transform_2(%arg0: i32) -> (i32, i32) {
    %c0_i32 = arith.constant 0 : i32
    %c0_i32_0 = arith.constant 0 : i32
    %c0_i32_1 = arith.constant 0 : i32
    return %c0_i32, %c0_i32_0 : i32, i32
  }
  func.func @transform_3(%arg0: i32) -> (i32, i32) {
    %c0_i32 = arith.constant 0 : i32
    %c0_i32_0 = arith.constant 0 : i32
    %c0_i32_1 = arith.constant 0 : i32
    return %c0_i32, %c0_i32_0 : i32, i32
  }
  func.func @transform_4(%arg0: i32) -> (i32, i32) {
    %c0_i32 = arith.constant 0 : i32
    %c0_i32_0 = arith.constant 0 : i32
    %c0_i32_1 = arith.constant 0 : i32
    return %c0_i32, %c0_i32_0 : i32, i32
  }
  func.func @transform_5(%arg0: i32) -> (i32, i32) {
    %c0_i32 = arith.constant 0 : i32
    %c0_i32_0 = arith.constant 0 : i32
    return %arg0, %c0_i32 : i32, i32
  }
  func.func @transform_6(%arg0: i32) -> (i32, i32) {
    %c0_i32 = arith.constant 0 : i32
    %c0_i32_0 = arith.constant 0 : i32
    return %arg0, %c0_i32 : i32, i32
  }
}

module attributes {stable_mosaic.version = 11 : i64} {
  func.func @_channel_attn_kernel(%arg0: i32, %arg1: memref<1x16x64xf32, #tpu.memory_space<vmem>>, %arg2: memref<1x16x64xf32, #tpu.memory_space<vmem>>, %arg3: memref<1x1x64xf32, #tpu.memory_space<vmem>>, %arg4: memref<1x1x64xf32, #tpu.memory_space<vmem>>) attributes {dimension_semantics = [#tpu.dimension_semantics<parallel>], iteration_bounds = array<i64: 2>, scalar_prefetch = 0 : i64, scratch_operands = 0 : i64, tpu.core_type = #tpu.core_type<tc>, window_params = [{transform_indices = @transform_0, window_bounds = array<i64: 1, 16, 64>}, {transform_indices = @transform_1, window_bounds = array<i64: 1, 16, 64>}, {pipeline_mode = #tpu.pipeline_mode<synchronous>, transform_indices = @transform_2, window_bounds = array<i64: 1, 1, 64>}, {transform_indices = @transform_3, window_bounds = array<i64: 1, 1, 64>}]} {
    %c0 = arith.constant 0 : index
    %c0_0 = arith.constant 0 : index
    %c0_1 = arith.constant 0 : index
    %0 = vector.load %arg1[%c0, %c0_0, %c0_1] : memref<1x16x64xf32, #tpu.memory_space<vmem>>, vector<1x16x64xf32>
    %1 = vector.shape_cast %0 : vector<1x16x64xf32> to vector<16x64xf32>
    %c0_2 = arith.constant 0 : index
    %c0_3 = arith.constant 0 : index
    %c0_4 = arith.constant 0 : index
    %2 = vector.load %arg2[%c0_2, %c0_3, %c0_4] : memref<1x16x64xf32, #tpu.memory_space<vmem>>, vector<1x16x64xf32>
    %3 = vector.shape_cast %2 : vector<1x16x64xf32> to vector<16x64xf32>
    %cst = arith.constant dense<0xFF800000> : vector<64xf32>
    %4 = vector.multi_reduction <maximumf>, %1, %cst [0] : vector<16x64xf32> to vector<64xf32>
    %5 = vector.shape_cast %4 : vector<64xf32> to vector<1x64xf32>
    %6 = vector.broadcast %5 : vector<1x64xf32> to vector<16x64xf32>
    %7 = arith.subf %1, %6 : vector<16x64xf32>
    %8 = math.exp %7 : vector<16x64xf32>
    %cst_5 = arith.constant dense<0.000000e+00> : vector<64xf32>
    %9 = vector.multi_reduction <add>, %8, %cst_5 [0] : vector<16x64xf32> to vector<64xf32>
    %10 = vector.shape_cast %9 : vector<64xf32> to vector<1x64xf32>
    %11 = vector.broadcast %10 : vector<1x64xf32> to vector<16x64xf32>
    %12 = arith.divf %8, %11 : vector<16x64xf32>
    %cst_6 = arith.constant dense<0xFF800000> : vector<64xf32>
    %13 = vector.multi_reduction <maximumf>, %3, %cst_6 [0] : vector<16x64xf32> to vector<64xf32>
    %14 = vector.shape_cast %13 : vector<64xf32> to vector<1x64xf32>
    %15 = vector.broadcast %14 : vector<1x64xf32> to vector<16x64xf32>
    %16 = arith.subf %3, %15 : vector<16x64xf32>
    %17 = math.exp %16 : vector<16x64xf32>
    %cst_7 = arith.constant dense<0.000000e+00> : vector<64xf32>
    %18 = vector.multi_reduction <add>, %17, %cst_7 [0] : vector<16x64xf32> to vector<64xf32>
    %19 = vector.shape_cast %18 : vector<64xf32> to vector<1x64xf32>
    %20 = vector.broadcast %19 : vector<1x64xf32> to vector<16x64xf32>
    %21 = arith.divf %17, %20 : vector<16x64xf32>
    %22 = vector.extract_strided_slice %21 {offsets = [0, 0], sizes = [16, 16], strides = [1, 1]} : vector<16x64xf32> to vector<16x16xf32>
    %cst_8 = arith.constant dense<0.000000e+00> : vector<16xf32>
    %23 = vector.multi_reduction <add>, %22, %cst_8 [1] : vector<16x16xf32> to vector<16xf32>
    %24 = vector.shape_cast %23 : vector<16xf32> to vector<16x1xf32>
    %cst_9 = arith.constant 1.600000e+01 : f32
    %25 = vector.broadcast %cst_9 : f32 to vector<16x1xf32>
    %26 = arith.divf %24, %25 : vector<16x1xf32>
    %27 = vector.extract_strided_slice %12 {offsets = [0, 0], sizes = [16, 16], strides = [1, 1]} : vector<16x64xf32> to vector<16x16xf32>
    %28 = vector.broadcast %26 : vector<16x1xf32> to vector<16x16xf32>
    %29 = arith.mulf %27, %28 : vector<16x16xf32>
    %cst_10 = arith.constant dense<0.000000e+00> : vector<16xf32>
    %30 = vector.multi_reduction <add>, %29, %cst_10 [0] : vector<16x16xf32> to vector<16xf32>
    %31 = vector.shape_cast %30 : vector<16xf32> to vector<1x16xf32>
    %32 = vector.extract_strided_slice %21 {offsets = [0, 16], sizes = [16, 16], strides = [1, 1]} : vector<16x64xf32> to vector<16x16xf32>
    %cst_11 = arith.constant dense<0.000000e+00> : vector<16xf32>
    %33 = vector.multi_reduction <add>, %32, %cst_11 [1] : vector<16x16xf32> to vector<16xf32>
    %34 = vector.shape_cast %33 : vector<16xf32> to vector<16x1xf32>
    %cst_12 = arith.constant 1.600000e+01 : f32
    %35 = vector.broadcast %cst_12 : f32 to vector<16x1xf32>
    %36 = arith.divf %34, %35 : vector<16x1xf32>
    %37 = vector.extract_strided_slice %12 {offsets = [0, 16], sizes = [16, 16], strides = [1, 1]} : vector<16x64xf32> to vector<16x16xf32>
    %38 = vector.broadcast %36 : vector<16x1xf32> to vector<16x16xf32>
    %39 = arith.mulf %37, %38 : vector<16x16xf32>
    %cst_13 = arith.constant dense<0.000000e+00> : vector<16xf32>
    %40 = vector.multi_reduction <add>, %39, %cst_13 [0] : vector<16x16xf32> to vector<16xf32>
    %41 = vector.shape_cast %40 : vector<16xf32> to vector<1x16xf32>
    %42 = vector.extract_strided_slice %21 {offsets = [0, 32], sizes = [16, 16], strides = [1, 1]} : vector<16x64xf32> to vector<16x16xf32>
    %cst_14 = arith.constant dense<0.000000e+00> : vector<16xf32>
    %43 = vector.multi_reduction <add>, %42, %cst_14 [1] : vector<16x16xf32> to vector<16xf32>
    %44 = vector.shape_cast %43 : vector<16xf32> to vector<16x1xf32>
    %cst_15 = arith.constant 1.600000e+01 : f32
    %45 = vector.broadcast %cst_15 : f32 to vector<16x1xf32>
    %46 = arith.divf %44, %45 : vector<16x1xf32>
    %47 = vector.extract_strided_slice %12 {offsets = [0, 32], sizes = [16, 16], strides = [1, 1]} : vector<16x64xf32> to vector<16x16xf32>
    %48 = vector.broadcast %46 : vector<16x1xf32> to vector<16x16xf32>
    %49 = arith.mulf %47, %48 : vector<16x16xf32>
    %cst_16 = arith.constant dense<0.000000e+00> : vector<16xf32>
    %50 = vector.multi_reduction <add>, %49, %cst_16 [0] : vector<16x16xf32> to vector<16xf32>
    %51 = vector.shape_cast %50 : vector<16xf32> to vector<1x16xf32>
    %52 = vector.extract_strided_slice %21 {offsets = [0, 48], sizes = [16, 16], strides = [1, 1]} : vector<16x64xf32> to vector<16x16xf32>
    %cst_17 = arith.constant dense<0.000000e+00> : vector<16xf32>
    %53 = vector.multi_reduction <add>, %52, %cst_17 [1] : vector<16x16xf32> to vector<16xf32>
    %54 = vector.shape_cast %53 : vector<16xf32> to vector<16x1xf32>
    %cst_18 = arith.constant 1.600000e+01 : f32
    %55 = vector.broadcast %cst_18 : f32 to vector<16x1xf32>
    %56 = arith.divf %54, %55 : vector<16x1xf32>
    %57 = vector.extract_strided_slice %12 {offsets = [0, 48], sizes = [16, 16], strides = [1, 1]} : vector<16x64xf32> to vector<16x16xf32>
    %58 = vector.broadcast %56 : vector<16x1xf32> to vector<16x16xf32>
    %59 = arith.mulf %57, %58 : vector<16x16xf32>
    %cst_19 = arith.constant dense<0.000000e+00> : vector<16xf32>
    %60 = vector.multi_reduction <add>, %59, %cst_19 [0] : vector<16x16xf32> to vector<16xf32>
    %61 = vector.shape_cast %60 : vector<16xf32> to vector<1x16xf32>
    %62 = tpu.concatenate %31, %41, %51, %61 in 1 : vector<1x16xf32>, vector<1x16xf32>, vector<1x16xf32>, vector<1x16xf32> -> vector<1x64xf32>
    %63 = arith.negf %62 : vector<1x64xf32>
    %64 = math.exp %63 : vector<1x64xf32>
    %cst_20 = arith.constant 1.000000e+00 : f32
    %65 = vector.broadcast %cst_20 : f32 to vector<1x64xf32>
    %66 = arith.addf %65, %64 : vector<1x64xf32>
    %67 = arith.divf %65, %66 : vector<1x64xf32>
    %c0_21 = arith.constant 0 : index
    %c0_22 = arith.constant 0 : index
    %c0_23 = arith.constant 0 : index
    %68 = vector.load %arg3[%c0_21, %c0_22, %c0_23] : memref<1x1x64xf32, #tpu.memory_space<vmem>>, vector<1x1x64xf32>
    %69 = vector.shape_cast %68 : vector<1x1x64xf32> to vector<1x64xf32>
    %70 = arith.mulf %67, %69 : vector<1x64xf32>
    %c0_24 = arith.constant 0 : index
    %c0_25 = arith.constant 0 : index
    %c0_26 = arith.constant 0 : index
    %71 = vector.load %arg4[%c0_24, %c0_25, %c0_26] : memref<1x1x64xf32, #tpu.memory_space<vmem>>, vector<1x1x64xf32>
    %72 = vector.shape_cast %71 : vector<1x1x64xf32> to vector<1x64xf32>
    %73 = vector.shape_cast %70 : vector<1x64xf32> to vector<1x1x64xf32>
    tpu.vector_store %arg4[%c0_24, %c0_25, %c0_26], %73 {strides = array<i32>} : memref<1x1x64xf32, #tpu.memory_space<vmem>>, vector<1x1x64xf32>,
    return
  }
  func.func @transform_0(%arg0: i32) -> (i32, i32, i32) {
    %c0_i32 = arith.constant 0 : i32
    %c0_i32_0 = arith.constant 0 : i32
    %c0_i32_1 = arith.constant 0 : i32
    return %arg0, %c0_i32, %c0_i32_0 : i32, i32, i32
  }
  func.func @transform_1(%arg0: i32) -> (i32, i32, i32) {
    %c0_i32 = arith.constant 0 : i32
    %c0_i32_0 = arith.constant 0 : i32
    %c0_i32_1 = arith.constant 0 : i32
    return %arg0, %c0_i32, %c0_i32_0 : i32, i32, i32
  }
  func.func @transform_2(%arg0: i32) -> (i32, i32, i32) {
    %c0_i32 = arith.constant 0 : i32
    %c0_i32_0 = arith.constant 0 : i32
    %c0_i32_1 = arith.constant 0 : i32
    %c0_i32_2 = arith.constant 0 : i32
    return %c0_i32, %c0_i32_0, %c0_i32_1 : i32, i32, i32
  }
  func.func @transform_3(%arg0: i32) -> (i32, i32, i32) {
    %c0_i32 = arith.constant 0 : i32
    %c0_i32_0 = arith.constant 0 : i32
    %c0_i32_1 = arith.constant 0 : i32
    return %arg0, %c0_i32, %c0_i32_0 : i32, i32, i32
  }
}

module attributes {stable_mosaic.version = 11 : i64} {
  func.func @_dwconv_mlp_kernel(%arg0: i32, %arg1: i32, %arg2: memref<1x16x128xf32, #tpu.memory_space<vmem>>, %arg3: memref<9x128xf32, #tpu.memory_space<vmem>>, %arg4: memref<1x128xf32, #tpu.memory_space<vmem>>, %arg5: memref<1x128xf32, #tpu.memory_space<vmem>>, %arg6: memref<1x128xf32, #tpu.memory_space<vmem>>, %arg7: memref<9x128xf32, #tpu.memory_space<vmem>>, %arg8: memref<1x128xf32, #tpu.memory_space<vmem>>, %arg9: memref<1x128xf32, #tpu.memory_space<vmem>>, %arg10: memref<16x1xf32, #tpu.memory_space<vmem>>, %arg11: memref<16x1xf32, #tpu.memory_space<vmem>>, %arg12: memref<1x16x128xf32, #tpu.memory_space<vmem>>) attributes {dimension_semantics = [#tpu.dimension_semantics<parallel>, #tpu.dimension_semantics<parallel>], iteration_bounds = array<i64: 2, 2>, scalar_prefetch = 0 : i64, scratch_operands = 0 : i64, tpu.core_type = #tpu.core_type<tc>, window_params = [{transform_indices = @transform_0, window_bounds = array<i64: 1, 16, 128>}, {transform_indices = @transform_1, window_bounds = array<i64: 9, 128>}, {transform_indices = @transform_2, window_bounds = array<i64: 1, 128>}, {transform_indices = @transform_3, window_bounds = array<i64: 1, 128>}, {transform_indices = @transform_4, window_bounds = array<i64: 1, 128>}, {transform_indices = @transform_5, window_bounds = array<i64: 9, 128>}, {transform_indices = @transform_6, window_bounds = array<i64: 1, 128>}, {transform_indices = @transform_7, window_bounds = array<i64: 1, 128>}, {pipeline_mode = #tpu.pipeline_mode<synchronous>, transform_indices = @transform_8, window_bounds = array<i64: 16, 1>}, {pipeline_mode = #tpu.pipeline_mode<synchronous>, transform_indices = @transform_9, window_bounds = array<i64: 16, 1>}, {transform_indices = @transform_10, window_bounds = array<i64: 1, 16, 128>}]} {
    %c0 = arith.constant 0 : index
    %c0_0 = arith.constant 0 : index
    %c0_1 = arith.constant 0 : index
    %0 = vector.load %arg2[%c0, %c0_0, %c0_1] : memref<1x16x128xf32, #tpu.memory_space<vmem>>, vector<1x16x128xf32>
    %1 = vector.shape_cast %0 : vector<1x16x128xf32> to vector<16x128xf32>
    %c0_2 = arith.constant 0 : index
    %c0_3 = arith.constant 0 : index
    %2 = vector.load %arg10[%c0_2, %c0_3] : memref<16x1xf32, #tpu.memory_space<vmem>>, vector<16x1xf32>
    %c0_4 = arith.constant 0 : index
    %c0_5 = arith.constant 0 : index
    %3 = vector.load %arg11[%c0_4, %c0_5] : memref<16x1xf32, #tpu.memory_space<vmem>>, vector<16x1xf32>
    %c0_6 = arith.constant 0 : index
    %c0_7 = arith.constant 0 : index
    %4 = vector.load %arg3[%c0_6, %c0_7] : memref<9x128xf32, #tpu.memory_space<vmem>>, vector<9x128xf32>
    %5 = vector.extract_strided_slice %4 {offsets = [4, 0], sizes = [1, 128], strides = [1, 1]} : vector<9x128xf32> to vector<1x128xf32>
    %6 = vector.broadcast %5 : vector<1x128xf32> to vector<16x128xf32>
    %7 = arith.mulf %1, %6 : vector<16x128xf32>
    %cst = arith.constant 0.000000e+00 : f32
    %8 = vector.broadcast %cst : f32 to vector<5x128xf32>
    %9 = vector.extract_strided_slice %1 {offsets = [0, 0], sizes = [11, 128], strides = [1, 1]} : vector<16x128xf32> to vector<11x128xf32>
    %10 = tpu.concatenate %8, %9 in 0 : vector<5x128xf32>, vector<11x128xf32> -> vector<16x128xf32>
    %11 = vector.broadcast %3 : vector<16x1xf32> to vector<16x128xf32>
    %12 = arith.mulf %10, %11 : vector<16x128xf32>
    %13 = vector.extract_strided_slice %4 {offsets = [0, 0], sizes = [1, 128], strides = [1, 1]} : vector<9x128xf32> to vector<1x128xf32>
    %14 = vector.broadcast %13 : vector<1x128xf32> to vector<16x128xf32>
    %15 = arith.mulf %12, %14 : vector<16x128xf32>
    %16 = arith.addf %7, %15 : vector<16x128xf32>
    %cst_8 = arith.constant 0.000000e+00 : f32
    %17 = vector.broadcast %cst_8 : f32 to vector<4x128xf32>
    %18 = vector.extract_strided_slice %1 {offsets = [0, 0], sizes = [12, 128], strides = [1, 1]} : vector<16x128xf32> to vector<12x128xf32>
    %19 = tpu.concatenate %17, %18 in 0 : vector<4x128xf32>, vector<12x128xf32> -> vector<16x128xf32>
    %20 = vector.extract_strided_slice %4 {offsets = [1, 0], sizes = [1, 128], strides = [1, 1]} : vector<9x128xf32> to vector<1x128xf32>
    %21 = vector.broadcast %20 : vector<1x128xf32> to vector<16x128xf32>
    %22 = arith.mulf %19, %21 : vector<16x128xf32>
    %23 = arith.addf %16, %22 : vector<16x128xf32>
    %cst_9 = arith.constant 0.000000e+00 : f32
    %24 = vector.broadcast %cst_9 : f32 to vector<3x128xf32>
    %25 = vector.extract_strided_slice %1 {offsets = [0, 0], sizes = [13, 128], strides = [1, 1]} : vector<16x128xf32> to vector<13x128xf32>
    %26 = tpu.concatenate %24, %25 in 0 : vector<3x128xf32>, vector<13x128xf32> -> vector<16x128xf32>
    %27 = vector.broadcast %2 : vector<16x1xf32> to vector<16x128xf32>
    %28 = arith.mulf %26, %27 : vector<16x128xf32>
    %29 = vector.extract_strided_slice %4 {offsets = [2, 0], sizes = [1, 128], strides = [1, 1]} : vector<9x128xf32> to vector<1x128xf32>
    %30 = vector.broadcast %29 : vector<1x128xf32> to vector<16x128xf32>
    %31 = arith.mulf %28, %30 : vector<16x128xf32>
    %32 = arith.addf %23, %31 : vector<16x128xf32>
    %cst_10 = arith.constant 0.000000e+00 : f32
    %33 = vector.broadcast %cst_10 : f32 to vector<1x128xf32>
    %34 = vector.extract_strided_slice %1 {offsets = [0, 0], sizes = [15, 128], strides = [1, 1]} : vector<16x128xf32> to vector<15x128xf32>
    %35 = tpu.concatenate %33, %34 in 0 : vector<1x128xf32>, vector<15x128xf32> -> vector<16x128xf32>
    %36 = vector.broadcast %3 : vector<16x1xf32> to vector<16x128xf32>
    %37 = arith.mulf %35, %36 : vector<16x128xf32>
    %38 = vector.extract_strided_slice %4 {offsets = [3, 0], sizes = [1, 128], strides = [1, 1]} : vector<9x128xf32> to vector<1x128xf32>
    %39 = vector.broadcast %38 : vector<1x128xf32> to vector<16x128xf32>
    %40 = arith.mulf %37, %39 : vector<16x128xf32>
    %41 = arith.addf %32, %40 : vector<16x128xf32>
    %42 = vector.extract_strided_slice %1 {offsets = [1, 0], sizes = [15, 128], strides = [1, 1]} : vector<16x128xf32> to vector<15x128xf32>
    %cst_11 = arith.constant 0.000000e+00 : f32
    %43 = vector.broadcast %cst_11 : f32 to vector<1x128xf32>
    %44 = tpu.concatenate %42, %43 in 0 : vector<15x128xf32>, vector<1x128xf32> -> vector<16x128xf32>
    %45 = vector.broadcast %2 : vector<16x1xf32> to vector<16x128xf32>
    %46 = arith.mulf %44, %45 : vector<16x128xf32>
    %47 = vector.extract_strided_slice %4 {offsets = [5, 0], sizes = [1, 128], strides = [1, 1]} : vector<9x128xf32> to vector<1x128xf32>
    %48 = vector.broadcast %47 : vector<1x128xf32> to vector<16x128xf32>
    %49 = arith.mulf %46, %48 : vector<16x128xf32>
    %50 = arith.addf %41, %49 : vector<16x128xf32>
    %51 = vector.extract_strided_slice %1 {offsets = [3, 0], sizes = [13, 128], strides = [1, 1]} : vector<16x128xf32> to vector<13x128xf32>
    %cst_12 = arith.constant 0.000000e+00 : f32
    %52 = vector.broadcast %cst_12 : f32 to vector<3x128xf32>
    %53 = tpu.concatenate %51, %52 in 0 : vector<13x128xf32>, vector<3x128xf32> -> vector<16x128xf32>
    %54 = vector.broadcast %3 : vector<16x1xf32> to vector<16x128xf32>
    %55 = arith.mulf %53, %54 : vector<16x128xf32>
    %56 = vector.extract_strided_slice %4 {offsets = [6, 0], sizes = [1, 128], strides = [1, 1]} : vector<9x128xf32> to vector<1x128xf32>
    %57 = vector.broadcast %56 : vector<1x128xf32> to vector<16x128xf32>
    %58 = arith.mulf %55, %57 : vector<16x128xf32>
    %59 = arith.addf %50, %58 : vector<16x128xf32>
    %60 = vector.extract_strided_slice %1 {offsets = [4, 0], sizes = [12, 128], strides = [1, 1]} : vector<16x128xf32> to vector<12x128xf32>
    %cst_13 = arith.constant 0.000000e+00 : f32
    %61 = vector.broadcast %cst_13 : f32 to vector<4x128xf32>
    %62 = tpu.concatenate %60, %61 in 0 : vector<12x128xf32>, vector<4x128xf32> -> vector<16x128xf32>
    %63 = vector.extract_strided_slice %4 {offsets = [7, 0], sizes = [1, 128], strides = [1, 1]} : vector<9x128xf32> to vector<1x128xf32>
    %64 = vector.broadcast %63 : vector<1x128xf32> to vector<16x128xf32>
    %65 = arith.mulf %62, %64 : vector<16x128xf32>
    %66 = arith.addf %59, %65 : vector<16x128xf32>
    %67 = vector.extract_strided_slice %1 {offsets = [5, 0], sizes = [11, 128], strides = [1, 1]} : vector<16x128xf32> to vector<11x128xf32>
    %cst_14 = arith.constant 0.000000e+00 : f32
    %68 = vector.broadcast %cst_14 : f32 to vector<5x128xf32>
    %69 = tpu.concatenate %67, %68 in 0 : vector<11x128xf32>, vector<5x128xf32> -> vector<16x128xf32>
    %70 = vector.broadcast %2 : vector<16x1xf32> to vector<16x128xf32>
    %71 = arith.mulf %69, %70 : vector<16x128xf32>
    %72 = vector.extract_strided_slice %4 {offsets = [8, 0], sizes = [1, 128], strides = [1, 1]} : vector<9x128xf32> to vector<1x128xf32>
    %73 = vector.broadcast %72 : vector<1x128xf32> to vector<16x128xf32>
    %74 = arith.mulf %71, %73 : vector<16x128xf32>
    %75 = arith.addf %66, %74 : vector<16x128xf32>
    %c0_15 = arith.constant 0 : index
    %c0_16 = arith.constant 0 : index
    %76 = vector.load %arg4[%c0_15, %c0_16] : memref<1x128xf32, #tpu.memory_space<vmem>>, vector<1x128xf32>
    %77 = vector.broadcast %76 : vector<1x128xf32> to vector<16x128xf32>
    %78 = arith.addf %75, %77 : vector<16x128xf32>
    %cst_17 = arith.constant 5.000000e-01 : f32
    %79 = vector.broadcast %cst_17 : f32 to vector<16x128xf32>
    %80 = arith.mulf %79, %78 : vector<16x128xf32>
    %cst_18 = arith.constant 4.471500e-02 : f32
    %81 = vector.broadcast %cst_18 : f32 to vector<16x128xf32>
    %82 = arith.mulf %81, %78 : vector<16x128xf32>
    %83 = arith.mulf %82, %78 : vector<16x128xf32>
    %84 = arith.mulf %83, %78 : vector<16x128xf32>
    %85 = arith.addf %78, %84 : vector<16x128xf32>
    %cst_19 = arith.constant 0.797884583 : f32
    %86 = vector.broadcast %cst_19 : f32 to vector<16x128xf32>
    %87 = arith.mulf %86, %85 : vector<16x128xf32>
    %88 = math.tanh %87 : vector<16x128xf32>
    %cst_20 = arith.constant 1.000000e+00 : f32
    %89 = vector.broadcast %cst_20 : f32 to vector<16x128xf32>
    %90 = arith.addf %89, %88 : vector<16x128xf32>
    %91 = arith.mulf %80, %90 : vector<16x128xf32>
    %c0_21 = arith.constant 0 : index
    %c0_22 = arith.constant 0 : index
    %92 = vector.load %arg5[%c0_21, %c0_22] : memref<1x128xf32, #tpu.memory_space<vmem>>, vector<1x128xf32>
    %93 = vector.broadcast %92 : vector<1x128xf32> to vector<16x128xf32>
    %94 = arith.mulf %91, %93 : vector<16x128xf32>
    %c0_23 = arith.constant 0 : index
    %c0_24 = arith.constant 0 : index
    %95 = vector.load %arg6[%c0_23, %c0_24] : memref<1x128xf32, #tpu.memory_space<vmem>>, vector<1x128xf32>
    %96 = vector.broadcast %95 : vector<1x128xf32> to vector<16x128xf32>
    %97 = arith.addf %94, %96 : vector<16x128xf32>
    %c0_25 = arith.constant 0 : index
    %c0_26 = arith.constant 0 : index
    %98 = vector.load %arg7[%c0_25, %c0_26] : memref<9x128xf32, #tpu.memory_space<vmem>>, vector<9x128xf32>
    %99 = vector.extract_strided_slice %98 {offsets = [4, 0], sizes = [1, 128], strides = [1, 1]} : vector<9x128xf32> to vector<1x128xf32>
    %100 = vector.broadcast %99 : vector<1x128xf32> to vector<16x128xf32>
    %101 = arith.mulf %97, %100 : vector<16x128xf32>
    %cst_27 = arith.constant 0.000000e+00 : f32
    %102 = vector.broadcast %cst_27 : f32 to vector<5x128xf32>
    %103 = vector.extract_strided_slice %97 {offsets = [0, 0], sizes = [11, 128], strides = [1, 1]} : vector<16x128xf32> to vector<11x128xf32>
    %104 = tpu.concatenate %102, %103 in 0 : vector<5x128xf32>, vector<11x128xf32> -> vector<16x128xf32>
    %105 = vector.broadcast %3 : vector<16x1xf32> to vector<16x128xf32>
    %106 = arith.mulf %104, %105 : vector<16x128xf32>
    %107 = vector.extract_strided_slice %98 {offsets = [0, 0], sizes = [1, 128], strides = [1, 1]} : vector<9x128xf32> to vector<1x128xf32>
    %108 = vector.broadcast %107 : vector<1x128xf32> to vector<16x128xf32>
    %109 = arith.mulf %106, %108 : vector<16x128xf32>
    %110 = arith.addf %101, %109 : vector<16x128xf32>
    %cst_28 = arith.constant 0.000000e+00 : f32
    %111 = vector.broadcast %cst_28 : f32 to vector<4x128xf32>
    %112 = vector.extract_strided_slice %97 {offsets = [0, 0], sizes = [12, 128], strides = [1, 1]} : vector<16x128xf32> to vector<12x128xf32>
    %113 = tpu.concatenate %111, %112 in 0 : vector<4x128xf32>, vector<12x128xf32> -> vector<16x128xf32>
    %114 = vector.extract_strided_slice %98 {offsets = [1, 0], sizes = [1, 128], strides = [1, 1]} : vector<9x128xf32> to vector<1x128xf32>
    %115 = vector.broadcast %114 : vector<1x128xf32> to vector<16x128xf32>
    %116 = arith.mulf %113, %115 : vector<16x128xf32>
    %117 = arith.addf %110, %116 : vector<16x128xf32>
    %cst_29 = arith.constant 0.000000e+00 : f32
    %118 = vector.broadcast %cst_29 : f32 to vector<3x128xf32>
    %119 = vector.extract_strided_slice %97 {offsets = [0, 0], sizes = [13, 128], strides = [1, 1]} : vector<16x128xf32> to vector<13x128xf32>
    %120 = tpu.concatenate %118, %119 in 0 : vector<3x128xf32>, vector<13x128xf32> -> vector<16x128xf32>
    %121 = vector.broadcast %2 : vector<16x1xf32> to vector<16x128xf32>
    %122 = arith.mulf %120, %121 : vector<16x128xf32>
    %123 = vector.extract_strided_slice %98 {offsets = [2, 0], sizes = [1, 128], strides = [1, 1]} : vector<9x128xf32> to vector<1x128xf32>
    %124 = vector.broadcast %123 : vector<1x128xf32> to vector<16x128xf32>
    %125 = arith.mulf %122, %124 : vector<16x128xf32>
    %126 = arith.addf %117, %125 : vector<16x128xf32>
    %cst_30 = arith.constant 0.000000e+00 : f32
    %127 = vector.broadcast %cst_30 : f32 to vector<1x128xf32>
    %128 = vector.extract_strided_slice %97 {offsets = [0, 0], sizes = [15, 128], strides = [1, 1]} : vector<16x128xf32> to vector<15x128xf32>
    %129 = tpu.concatenate %127, %128 in 0 : vector<1x128xf32>, vector<15x128xf32> -> vector<16x128xf32>
    %130 = vector.broadcast %3 : vector<16x1xf32> to vector<16x128xf32>
    %131 = arith.mulf %129, %130 : vector<16x128xf32>
    %132 = vector.extract_strided_slice %98 {offsets = [3, 0], sizes = [1, 128], strides = [1, 1]} : vector<9x128xf32> to vector<1x128xf32>
    %133 = vector.broadcast %132 : vector<1x128xf32> to vector<16x128xf32>
    %134 = arith.mulf %131, %133 : vector<16x128xf32>
    %135 = arith.addf %126, %134 : vector<16x128xf32>
    %136 = vector.extract_strided_slice %97 {offsets = [1, 0], sizes = [15, 128], strides = [1, 1]} : vector<16x128xf32> to vector<15x128xf32>
    %cst_31 = arith.constant 0.000000e+00 : f32
    %137 = vector.broadcast %cst_31 : f32 to vector<1x128xf32>
    %138 = tpu.concatenate %136, %137 in 0 : vector<15x128xf32>, vector<1x128xf32> -> vector<16x128xf32>
    %139 = vector.broadcast %2 : vector<16x1xf32> to vector<16x128xf32>
    %140 = arith.mulf %138, %139 : vector<16x128xf32>
    %141 = vector.extract_strided_slice %98 {offsets = [5, 0], sizes = [1, 128], strides = [1, 1]} : vector<9x128xf32> to vector<1x128xf32>
    %142 = vector.broadcast %141 : vector<1x128xf32> to vector<16x128xf32>
    %143 = arith.mulf %140, %142 : vector<16x128xf32>
    %144 = arith.addf %135, %143 : vector<16x128xf32>
    %145 = vector.extract_strided_slice %97 {offsets = [3, 0], sizes = [13, 128], strides = [1, 1]} : vector<16x128xf32> to vector<13x128xf32>
    %cst_32 = arith.constant 0.000000e+00 : f32
    %146 = vector.broadcast %cst_32 : f32 to vector<3x128xf32>
    %147 = tpu.concatenate %145, %146 in 0 : vector<13x128xf32>, vector<3x128xf32> -> vector<16x128xf32>
    %148 = vector.broadcast %3 : vector<16x1xf32> to vector<16x128xf32>
    %149 = arith.mulf %147, %148 : vector<16x128xf32>
    %150 = vector.extract_strided_slice %98 {offsets = [6, 0], sizes = [1, 128], strides = [1, 1]} : vector<9x128xf32> to vector<1x128xf32>
    %151 = vector.broadcast %150 : vector<1x128xf32> to vector<16x128xf32>
    %152 = arith.mulf %149, %151 : vector<16x128xf32>
    %153 = arith.addf %144, %152 : vector<16x128xf32>
    %154 = vector.extract_strided_slice %97 {offsets = [4, 0], sizes = [12, 128], strides = [1, 1]} : vector<16x128xf32> to vector<12x128xf32>
    %cst_33 = arith.constant 0.000000e+00 : f32
    %155 = vector.broadcast %cst_33 : f32 to vector<4x128xf32>
    %156 = tpu.concatenate %154, %155 in 0 : vector<12x128xf32>, vector<4x128xf32> -> vector<16x128xf32>
    %157 = vector.extract_strided_slice %98 {offsets = [7, 0], sizes = [1, 128], strides = [1, 1]} : vector<9x128xf32> to vector<1x128xf32>
    %158 = vector.broadcast %157 : vector<1x128xf32> to vector<16x128xf32>
    %159 = arith.mulf %156, %158 : vector<16x128xf32>
    %160 = arith.addf %153, %159 : vector<16x128xf32>
    %161 = vector.extract_strided_slice %97 {offsets = [5, 0], sizes = [11, 128], strides = [1, 1]} : vector<16x128xf32> to vector<11x128xf32>
    %cst_34 = arith.constant 0.000000e+00 : f32
    %162 = vector.broadcast %cst_34 : f32 to vector<5x128xf32>
    %163 = tpu.concatenate %161, %162 in 0 : vector<11x128xf32>, vector<5x128xf32> -> vector<16x128xf32>
    %164 = vector.broadcast %2 : vector<16x1xf32> to vector<16x128xf32>
    %165 = arith.mulf %163, %164 : vector<16x128xf32>
    %166 = vector.extract_strided_slice %98 {offsets = [8, 0], sizes = [1, 128], strides = [1, 1]} : vector<9x128xf32> to vector<1x128xf32>
    %167 = vector.broadcast %166 : vector<1x128xf32> to vector<16x128xf32>
    %168 = arith.mulf %165, %167 : vector<16x128xf32>
    %169 = arith.addf %160, %168 : vector<16x128xf32>
    %c0_35 = arith.constant 0 : index
    %c0_36 = arith.constant 0 : index
    %170 = vector.load %arg8[%c0_35, %c0_36] : memref<1x128xf32, #tpu.memory_space<vmem>>, vector<1x128xf32>
    %171 = vector.broadcast %170 : vector<1x128xf32> to vector<16x128xf32>
    %172 = arith.addf %169, %171 : vector<16x128xf32>
    %c0_37 = arith.constant 0 : index
    %c0_38 = arith.constant 0 : index
    %173 = vector.load %arg9[%c0_37, %c0_38] : memref<1x128xf32, #tpu.memory_space<vmem>>, vector<1x128xf32>
    %174 = vector.broadcast %173 : vector<1x128xf32> to vector<16x128xf32>
    %175 = arith.mulf %174, %172 : vector<16x128xf32>
    %176 = arith.addf %1, %175 : vector<16x128xf32>
    %c0_39 = arith.constant 0 : index
    %c0_40 = arith.constant 0 : index
    %c0_41 = arith.constant 0 : index
    %177 = vector.load %arg12[%c0_39, %c0_40, %c0_41] : memref<1x16x128xf32, #tpu.memory_space<vmem>>, vector<1x16x128xf32>
    %178 = vector.shape_cast %177 : vector<1x16x128xf32> to vector<16x128xf32>
    %179 = vector.shape_cast %176 : vector<16x128xf32> to vector<1x16x128xf32>
    tpu.vector_store %arg12[%c0_39, %c0_40, %c0_41], %179 {strides = array<i32>} : memref<1x16x128xf32, #tpu.memory_space<vmem>>, vector<1x16x128xf32>,
    return
  }
  func.func @transform_0(%arg0: i32, %arg1: i32) -> (i32, i32, i32) {
    %c0_i32 = arith.constant 0 : i32
    %c0_i32_0 = arith.constant 0 : i32
    return %arg0, %c0_i32, %arg1 : i32, i32, i32
  }
  func.func @transform_1(%arg0: i32, %arg1: i32) -> (i32, i32) {
    %c0_i32 = arith.constant 0 : i32
    %c0_i32_0 = arith.constant 0 : i32
    return %c0_i32, %arg1 : i32, i32
  }
  func.func @transform_2(%arg0: i32, %arg1: i32) -> (i32, i32) {
    %c0_i32 = arith.constant 0 : i32
    %c0_i32_0 = arith.constant 0 : i32
    return %c0_i32, %arg1 : i32, i32
  }
  func.func @transform_3(%arg0: i32, %arg1: i32) -> (i32, i32) {
    %c0_i32 = arith.constant 0 : i32
    %c0_i32_0 = arith.constant 0 : i32
    return %c0_i32, %arg1 : i32, i32
  }
  func.func @transform_4(%arg0: i32, %arg1: i32) -> (i32, i32) {
    %c0_i32 = arith.constant 0 : i32
    %c0_i32_0 = arith.constant 0 : i32
    return %c0_i32, %arg1 : i32, i32
  }
  func.func @transform_5(%arg0: i32, %arg1: i32) -> (i32, i32) {
    %c0_i32 = arith.constant 0 : i32
    %c0_i32_0 = arith.constant 0 : i32
    return %c0_i32, %arg1 : i32, i32
  }
  func.func @transform_6(%arg0: i32, %arg1: i32) -> (i32, i32) {
    %c0_i32 = arith.constant 0 : i32
    %c0_i32_0 = arith.constant 0 : i32
    return %c0_i32, %arg1 : i32, i32
  }
  func.func @transform_7(%arg0: i32, %arg1: i32) -> (i32, i32) {
    %c0_i32 = arith.constant 0 : i32
    %c0_i32_0 = arith.constant 0 : i32
    return %c0_i32, %arg1 : i32, i32
  }
  func.func @transform_8(%arg0: i32, %arg1: i32) -> (i32, i32) {
    %c0_i32 = arith.constant 0 : i32
    %c0_i32_0 = arith.constant 0 : i32
    %c0_i32_1 = arith.constant 0 : i32
    return %c0_i32, %c0_i32_0 : i32, i32
  }
  func.func @transform_9(%arg0: i32, %arg1: i32) -> (i32, i32) {
    %c0_i32 = arith.constant 0 : i32
    %c0_i32_0 = arith.constant 0 : i32
    %c0_i32_1 = arith.constant 0 : i32
    return %c0_i32, %c0_i32_0 : i32, i32
  }
  func.func @transform_10(%arg0: i32, %arg1: i32) -> (i32, i32, i32) {
    %c0_i32 = arith.constant 0 : i32
    %c0_i32_0 = arith.constant 0 : i32
    return %arg0, %c0_i32, %arg1 : i32, i32, i32
  }
}

module attributes {stable_mosaic.version = 11 : i64} {
  func.func @_fc2_ln_attn_residual_kernel(%arg0: i32, %arg1: i32, %arg2: memref<16x256xf32, #tpu.memory_space<vmem>>, %arg3: memref<256x64xbf16, #tpu.memory_space<vmem>>, %arg4: memref<1x64xf32, #tpu.memory_space<vmem>>, %arg5: memref<1x64xf32, #tpu.memory_space<vmem>>, %arg6: memref<1x64xf32, #tpu.memory_space<vmem>>, %arg7: memref<1x1x64xf32, #tpu.memory_space<vmem>>, %arg8: memref<16x64xf32, #tpu.memory_space<vmem>>, %arg9: memref<1x64xf32, #tpu.memory_space<vmem>>, %arg10: memref<16x64xf32, #tpu.memory_space<vmem>>) attributes {dimension_semantics = [#tpu.dimension_semantics<parallel>, #tpu.dimension_semantics<parallel>], iteration_bounds = array<i64: 2, 1>, scalar_prefetch = 0 : i64, scratch_operands = 0 : i64, tpu.core_type = #tpu.core_type<tc>, window_params = [{transform_indices = @transform_0, window_bounds = array<i64: 16, 256>}, {pipeline_mode = #tpu.pipeline_mode<synchronous>, transform_indices = @transform_1, window_bounds = array<i64: 256, 64>}, {pipeline_mode = #tpu.pipeline_mode<synchronous>, transform_indices = @transform_2, window_bounds = array<i64: 1, 64>}, {pipeline_mode = #tpu.pipeline_mode<synchronous>, transform_indices = @transform_3, window_bounds = array<i64: 1, 64>}, {pipeline_mode = #tpu.pipeline_mode<synchronous>, transform_indices = @transform_4, window_bounds = array<i64: 1, 64>}, {transform_indices = @transform_5, window_bounds = array<i64: 1, 1, 64>}, {transform_indices = @transform_6, window_bounds = array<i64: 16, 64>}, {pipeline_mode = #tpu.pipeline_mode<synchronous>, transform_indices = @transform_7, window_bounds = array<i64: 1, 64>}, {transform_indices = @transform_8, window_bounds = array<i64: 16, 64>}]} {
    %c0 = arith.constant 0 : index
    %c0_0 = arith.constant 0 : index
    %0 = vector.load %arg2[%c0, %c0_0] : memref<16x256xf32, #tpu.memory_space<vmem>>, vector<16x256xf32>
    %1 = arith.truncf %0 : vector<16x256xf32> to vector<16x256xbf16>
    %c0_1 = arith.constant 0 : index
    %c0_2 = arith.constant 0 : index
    %2 = vector.load %arg3[%c0_1, %c0_2] : memref<256x64xbf16, #tpu.memory_space<vmem>>, vector<256x64xbf16>
    %cst = arith.constant dense<0.000000e+00> : vector<16x64xf32>
    %3 = tpu.matmul %1, %2, %cst {dimension_numbers = #tpu.dot_dimension_numbers<[1], [0], [0], [1], [0, 0, 1, 1], [], []>} : vector<16x256xbf16>, vector<256x64xbf16>, vector<16x64xf32> -> vector<16x64xf32>
    %c0_3 = arith.constant 0 : index
    %c0_4 = arith.constant 0 : index
    %4 = vector.load %arg4[%c0_3, %c0_4] : memref<1x64xf32, #tpu.memory_space<vmem>>, vector<1x64xf32>
    %5 = vector.broadcast %4 : vector<1x64xf32> to vector<16x64xf32>
    %6 = arith.addf %3, %5 : vector<16x64xf32>
    %cst_5 = arith.constant dense<0.000000e+00> : vector<16xf32>
    %7 = vector.multi_reduction <add>, %6, %cst_5 [1] : vector<16x64xf32> to vector<16xf32>
    %8 = vector.shape_cast %7 : vector<16xf32> to vector<16x1xf32>
    %cst_6 = arith.constant 6.400000e+01 : f32
    %9 = vector.broadcast %cst_6 : f32 to vector<16x1xf32>
    %10 = arith.divf %8, %9 : vector<16x1xf32>
    %11 = vector.broadcast %10 : vector<16x1xf32> to vector<16x64xf32>
    %12 = arith.subf %6, %11 : vector<16x64xf32>
    %13 = arith.mulf %12, %12 : vector<16x64xf32>
    %cst_7 = arith.constant dense<0.000000e+00> : vector<16xf32>
    %14 = vector.multi_reduction <add>, %13, %cst_7 [1] : vector<16x64xf32> to vector<16xf32>
    %15 = vector.shape_cast %14 : vector<16xf32> to vector<16x1xf32>
    %cst_8 = arith.constant 6.400000e+01 : f32
    %16 = vector.broadcast %cst_8 : f32 to vector<16x1xf32>
    %17 = arith.divf %15, %16 : vector<16x1xf32>
    %18 = vector.broadcast %10 : vector<16x1xf32> to vector<16x64xf32>
    %19 = arith.subf %6, %18 : vector<16x64xf32>
    %cst_9 = arith.constant 9.99999974E-6 : f32
    %20 = vector.broadcast %cst_9 : f32 to vector<16x1xf32>
    %21 = arith.addf %17, %20 : vector<16x1xf32>
    %22 = math.rsqrt %21 : vector<16x1xf32>
    %23 = vector.broadcast %22 : vector<16x1xf32> to vector<16x64xf32>
    %24 = arith.mulf %19, %23 : vector<16x64xf32>
    %c0_10 = arith.constant 0 : index
    %c0_11 = arith.constant 0 : index
    %25 = vector.load %arg5[%c0_10, %c0_11] : memref<1x64xf32, #tpu.memory_space<vmem>>, vector<1x64xf32>
    %26 = vector.broadcast %25 : vector<1x64xf32> to vector<16x64xf32>
    %27 = arith.mulf %24, %26 : vector<16x64xf32>
    %c0_12 = arith.constant 0 : index
    %c0_13 = arith.constant 0 : index
    %28 = vector.load %arg6[%c0_12, %c0_13] : memref<1x64xf32, #tpu.memory_space<vmem>>, vector<1x64xf32>
    %29 = vector.broadcast %28 : vector<1x64xf32> to vector<16x64xf32>
    %30 = arith.addf %27, %29 : vector<16x64xf32>
    %c0_14 = arith.constant 0 : index
    %c0_15 = arith.constant 0 : index
    %c0_16 = arith.constant 0 : index
    %31 = vector.load %arg7[%c0_14, %c0_15, %c0_16] : memref<1x1x64xf32, #tpu.memory_space<vmem>>, vector<1x1x64xf32>
    %32 = vector.shape_cast %31 : vector<1x1x64xf32> to vector<1x64xf32>
    %c0_17 = arith.constant 0 : index
    %c0_18 = arith.constant 0 : index
    %33 = vector.load %arg8[%c0_17, %c0_18] : memref<16x64xf32, #tpu.memory_space<vmem>>, vector<16x64xf32>
    %c0_19 = arith.constant 0 : index
    %c0_20 = arith.constant 0 : index
    %34 = vector.load %arg9[%c0_19, %c0_20] : memref<1x64xf32, #tpu.memory_space<vmem>>, vector<1x64xf32>
    %35 = vector.broadcast %32 : vector<1x64xf32> to vector<16x64xf32>
    %36 = arith.mulf %35, %30 : vector<16x64xf32>
    %37 = vector.broadcast %34 : vector<1x64xf32> to vector<16x64xf32>
    %38 = arith.mulf %37, %36 : vector<16x64xf32>
    %39 = arith.addf %33, %38 : vector<16x64xf32>
    %c0_21 = arith.constant 0 : index
    %c0_22 = arith.constant 0 : index
    %40 = vector.load %arg10[%c0_21, %c0_22] : memref<16x64xf32, #tpu.memory_space<vmem>>, vector<16x64xf32>
    tpu.vector_store %arg10[%c0_21, %c0_22], %39 {strides = array<i32>} : memref<16x64xf32, #tpu.memory_space<vmem>>, vector<16x64xf32>,
    return
  }
  func.func @transform_0(%arg0: i32, %arg1: i32) -> (i32, i32) {
    %c1_i32 = arith.constant 1 : i32
    %0 = arith.muli %arg0, %c1_i32 : i32
    %1 = arith.addi %0, %arg1 : i32
    %c0_i32 = arith.constant 0 : i32
    %c0_i32_0 = arith.constant 0 : i32
    return %1, %c0_i32 : i32, i32
  }
  func.func @transform_1(%arg0: i32, %arg1: i32) -> (i32, i32) {
    %c0_i32 = arith.constant 0 : i32
    %c0_i32_0 = arith.constant 0 : i32
    %c0_i32_1 = arith.constant 0 : i32
    return %c0_i32, %c0_i32_0 : i32, i32
  }
  func.func @transform_2(%arg0: i32, %arg1: i32) -> (i32, i32) {
    %c0_i32 = arith.constant 0 : i32
    %c0_i32_0 = arith.constant 0 : i32
    %c0_i32_1 = arith.constant 0 : i32
    return %c0_i32, %c0_i32_0 : i32, i32
  }
  func.func @transform_3(%arg0: i32, %arg1: i32) -> (i32, i32) {
    %c0_i32 = arith.constant 0 : i32
    %c0_i32_0 = arith.constant 0 : i32
    %c0_i32_1 = arith.constant 0 : i32
    return %c0_i32, %c0_i32_0 : i32, i32
  }
  func.func @transform_4(%arg0: i32, %arg1: i32) -> (i32, i32) {
    %c0_i32 = arith.constant 0 : i32
    %c0_i32_0 = arith.constant 0 : i32
    %c0_i32_1 = arith.constant 0 : i32
    return %c0_i32, %c0_i32_0 : i32, i32
  }
  func.func @transform_5(%arg0: i32, %arg1: i32) -> (i32, i32, i32) {
    %c0_i32 = arith.constant 0 : i32
    %c0_i32_0 = arith.constant 0 : i32
    %c0_i32_1 = arith.constant 0 : i32
    return %arg0, %c0_i32, %c0_i32_0 : i32, i32, i32
  }
  func.func @transform_6(%arg0: i32, %arg1: i32) -> (i32, i32) {
    %c1_i32 = arith.constant 1 : i32
    %0 = arith.muli %arg0, %c1_i32 : i32
    %1 = arith.addi %0, %arg1 : i32
    %c0_i32 = arith.constant 0 : i32
    %c0_i32_0 = arith.constant 0 : i32
    return %1, %c0_i32 : i32, i32
  }
  func.func @transform_7(%arg0: i32, %arg1: i32) -> (i32, i32) {
    %c0_i32 = arith.constant 0 : i32
    %c0_i32_0 = arith.constant 0 : i32
    %c0_i32_1 = arith.constant 0 : i32
    return %c0_i32, %c0_i32_0 : i32, i32
  }
  func.func @transform_8(%arg0: i32, %arg1: i32) -> (i32, i32) {
    %c1_i32 = arith.constant 1 : i32
    %0 = arith.muli %arg0, %c1_i32 : i32
    %1 = arith.addi %0, %arg1 : i32
    %c0_i32 = arith.constant 0 : i32
    %c0_i32_0 = arith.constant 0 : i32
    return %1, %c0_i32 : i32, i32
  }
}

</mosaic_0001>

<llo_original>
// kernel: fan_block_forward.7
$region0: #{fan_block_forward.7}
  #allocation0 [shape = 'u32[]', space=smem, size = 0x4, offset = 0x4, fixed_abs, tag = 'smem constant byte address 0x4 - core index']
  #allocation1 [shape = 'u32[144,128]{1,0:T(1,128)}', space=vmem, size = 0x12000, scoped, tag = 'internal scratch']
  %s0 = inlined_call_operand.vmem [shape: f32[32,64], index: 0, kind: input, shape index: {}]
  %s1 = inlined_call_operand.vmem [shape: f32[1,64], index: 1, kind: input, shape index: {}]
  %s2 = inlined_call_operand.vmem [shape: f32[1,64], index: 2, kind: input, shape index: {}]
  %s3 = inlined_call_operand.hbm [shape: bf16[64,192], index: 3, kind: input, shape index: {}]
  %s4 = inlined_call_operand.vmem [shape: f32[1,192], index: 4, kind: input, shape index: {}]
  %s5 = inlined_call_operand.vmem [shape: bf16[32,64], index: 5, kind: output, shape index: {0}]
  %s6 = inlined_call_operand.vmem [shape: bf16[32,128], index: 6, kind: output, shape index: {1}]
  %7 = xla_tuple %s5, %s6
  %s8 = sld [smem:[#allocation0]]
  $region42: #{fan_block_forward.7} parent=0
    _
  %s10 = ssub.s32 1, %s8
  %s11 = scalar_select 0, %s10, %s8
  $region1: #{fan_block_forward.7} parent=0
    #allocation2 [shape = 'u8[32768]{0}', space=vmem, size = 0x8000, scoped, tag = 'input window, operand 3, single buffered']
    #allocation3 [shape = 's32[1]{0}', space=sflag, size = 0x4, scoped, tag = 'scoped memory for fan_block_forward.7']
    %12 = vsyncpa [#allocation3], 0
    // Predicated region
    $region2: #{fan_block_forward.7} parent=1 // pred_check
      _
    $region3: #{fan_block_forward.7} parent=1 // pred_check_branch
      %14 = sbr.rel (0) target = $region5
    $region4: #{fan_block_forward.7} parent=1 // pred_region
      _
    $region5: #{fan_block_forward.7} parent=1 // pred_fallthru
      _
    // Predicated region
    $region6: #{fan_block_forward.7} parent=1 // pred_check
      _
    $region7: #{fan_block_forward.7} parent=1 // pred_check_branch
      %16 = sbr.rel (0) target = $region9
    $region8: #{fan_block_forward.7} parent=1 // pred_region
      _
    $region9: #{fan_block_forward.7} parent=1 // pred_fallthru
      _
    // Predicated region
    $region10: #{fan_block_forward.7} parent=1 // pred_check
      _
    $region11: #{fan_block_forward.7} parent=1 // pred_check_branch
      %18 = sbr.rel (0) target = $region13
    $region12: #{fan_block_forward.7} parent=1 // pred_region
      _
    $region13: #{fan_block_forward.7} parent=1 // pred_fallthru
      _
    // Predicated region
    $region14: #{fan_block_forward.7} parent=1 // pred_check
      _
    $region15: #{fan_block_forward.7} parent=1 // pred_check_branch
      %20 = sbr.rel (0) target = $region17
    $region16: #{fan_block_forward.7} parent=1 // pred_region
      %s22 = ssub.s32 1024, 1024
      %23 = vsyncadd [#allocation3], %s22
      %s24 = sshll.u32 [#allocation2], 4
      %s25 = int_to_ptr.vmem [resolvable:$true] %s24
      %30 = dma.hbm_to_vmem [thread:$0]  %s3, 1024, %s25, [#allocation3], 128, 128, 8
    $region17: #{fan_block_forward.7} parent=1 // pred_fallthru
      _
    // Predicated region
    $region18: #{fan_block_forward.7} parent=1 // pred_check
      _
    $region19: #{fan_block_forward.7} parent=1 // pred_check_branch
      %32 = sbr.rel (0) target = $region21
    $region20: #{fan_block_forward.7} parent=1 // pred_region
      _
    $region21: #{fan_block_forward.7} parent=1 // pred_fallthru
      _
    // Predicated region
    $region22: #{fan_block_forward.7} parent=1 // pred_check
      _
    $region23: #{fan_block_forward.7} parent=1 // pred_check_branch
      %34 = sbr.rel (0) target = $region25
    $region24: #{fan_block_forward.7} parent=1 // pred_region
      %35 = dma.done [#allocation3], 1024
    $region25: #{fan_block_forward.7} parent=1 // pred_fallthru
      _
    %v37 = vld [vmem:[%s0] sm:$0xff]
    %v38 = vld [vmem:[%s0 + $0x8] sm:$0xff]
    %v39 = vld [vmem:[%s0 + $0x10] sm:$0xff]
    %v40 = vld [vmem:[%s0 + $0x18] sm:$0xff]
    %vm41 = vcmask 523264
    %v42 = vsel %vm41, %v37, 0.0
    %43 = vadd.xlane.f32.xlu0 %v42
    %v44 = vpop.xlane.xlu0 %43
    %v45 = vsel %vm41, %v38, 0.0
    %46 = vadd.xlane.f32.xlu0 %v45
    %v47 = vpop.xlane.xlu0 %46
    %v48 = vsel %vm41, %v39, 0.0
    %49 = vadd.xlane.f32.xlu0 %v48
    %v50 = vpop.xlane.xlu0 %49
    %v51 = vsel %vm41, %v40, 0.0
    %52 = vadd.xlane.f32.xlu0 %v51
    %v53 = vpop.xlane.xlu0 %52
    %v54 = vrcp.pop 64.0
    %v55 = vmul.f32 %v44, %v54
    %v56 = vmul.f32 %v47, %v54
    %v57 = vmul.f32 %v50, %v54
    %v58 = vmul.f32 %v53, %v54
    %v59 = vsub.f32 %v37, %v55
    %v60 = vsub.f32 %v38, %v56
    %v61 = vsub.f32 %v39, %v57
    %v62 = vsub.f32 %v40, %v58
    %v63 = vmul.f32 %v59, %v59
    %v64 = vmul.f32 %v60, %v60
    %v65 = vmul.f32 %v61, %v61
    %v66 = vmul.f32 %v62, %v62
    %v67 = vsel %vm41, %v63, 0.0
    %68 = vadd.xlane.f32.xlu0 %v67
    %v69 = vpop.xlane.xlu0 %68
    %v70 = vsel %vm41, %v64, 0.0
    %71 = vadd.xlane.f32.xlu0 %v70
    %v72 = vpop.xlane.xlu0 %71
    %v73 = vsel %vm41, %v65, 0.0
    %74 = vadd.xlane.f32.xlu0 %v73
    %v75 = vpop.xlane.xlu0 %74
    %v76 = vsel %vm41, %v66, 0.0
    %77 = vadd.xlane.f32.xlu0 %v76
    %v78 = vpop.xlane.xlu0 %77
    %v79 = vmul.f32 %v69, %v54
    %v80 = vmul.f32 %v72, %v54
    %v81 = vmul.f32 %v75, %v54
    %v82 = vmul.f32 %v78, %v54
    %v83 = vadd.f32 %v79, 1e-05
    %v84 = vadd.f32 %v80, 1e-05
    %v85 = vadd.f32 %v81, 1e-05
    %v86 = vadd.f32 %v82, 1e-05
    %v87 = vrsqrt.pop %v83
    %v88 = vrsqrt.pop %v84
    %v89 = vrsqrt.pop %v85
    %v90 = vrsqrt.pop %v86
    %v91 = vmul.f32 %v59, %v87
    %v92 = vmul.f32 %v60, %v88
    %v93 = vmul.f32 %v61, %v89
    %v94 = vmul.f32 %v62, %v90
    %v95 = vld [vmem:[%s1] sm:$0x1]
    %v97 = vlaneseq
    %v98 = vshrl.u32 %v97, 7
    %v99 = vsub.s32 0, %v98
    %v100 = vrot.slane %v95, %v99
    %v102 = vmul.f32 %v91, %v100
    %v103 = vmul.f32 %v92, %v100
    %v104 = vmul.f32 %v93, %v100
    %v105 = vmul.f32 %v94, %v100
    %v106 = vld [vmem:[%s2] sm:$0x1]
    %v108 = vlaneseq
    %v109 = vshrl.u32 %v108, 7
    %v110 = vsub.s32 0, %v109
    %v111 = vrot.slane %v106, %v110
    %v113 = vadd.f32 %v102, %v111
    %v114 = vadd.f32 %v103, %v111
    %v115 = vadd.f32 %v104, %v111
    %v116 = vadd.f32 %v105, %v111
    %v117 = vpack.c.bf16 %v114, %v113
    %v118 = vpack.c.bf16 %v116, %v115
    %v119 = vld [vmem:[#allocation2] sm:$0xff]
    %v120 = vld [vmem:[#allocation2 + $0x8] sm:$0xff]
    %v121 = vld [vmem:[#allocation2 + $0x10] sm:$0xff]
    %v122 = vld [vmem:[#allocation2 + $0x18] sm:$0xff]
    %v123 = vld [vmem:[#allocation2 + $0x20] sm:$0xff]
    %v124 = vld [vmem:[#allocation2 + $0x28] sm:$0xff]
    %v125 = vld [vmem:[#allocation2 + $0x30] sm:$0xff]
    %v126 = vld [vmem:[#allocation2 + $0x38] sm:$0xff]
    %v127 = vld [vmem:[%s4] sm:$0x3]
    %v129 = vlaneseq
    %v130 = vshrl.u32 %v129, 7
    %v131 = vsub.s32 0, %v130
    %v132 = vrot.slane %v127, %v131
    %v133 = vlaneseq
    %v134 = vshrl.u32 %v133, 7
    %v135 = vsub.s32 1, %v134
    %v136 = vrot.slane %v127, %v135
    %v147 = vunpack.c.l.b16 %v119
    %v148 = vunpack.c.h.b16 %v119
    %v149 = vunpack.c.l.b16 %v120
    %v150 = vunpack.c.h.b16 %v120
    %v151 = vunpack.c.l.b16 %v121
    %v152 = vunpack.c.h.b16 %v121
    %v153 = vunpack.c.l.b16 %v122
    %v154 = vunpack.c.h.b16 %v122
    %v155 = vunpack.c.l.b16 %v123
    %v156 = vunpack.c.h.b16 %v123
    %v157 = vunpack.c.l.b16 %v124
    %v158 = vunpack.c.h.b16 %v124
    %v159 = vunpack.c.l.b16 %v125
    %v160 = vunpack.c.h.b16 %v125
    %v161 = vunpack.c.l.b16 %v126
    %v162 = vunpack.c.h.b16 %v126
    %v163 = vpack.c.b16 %v149, %v147
    %v164 = vpack.c.b16 %v150, %v148
    %v165 = vpack.c.b16 %v153, %v151
    %v166 = vpack.c.b16 %v154, %v152
    %v167 = vpack.c.b16 %v157, %v155
    %v168 = vpack.c.b16 %v158, %v156
    %v169 = vpack.c.b16 %v161, %v159
    %v170 = vpack.c.b16 %v162, %v160
    %v180 = vsel %vm41, %v117, 0
    %v183 = vsel %vm41, %v118, 0
    %185 = vmatprep.subr.bf16.mxu0 0
    %186 = vmatpush1.bf16.msra.mxu0 0
    %187 = vmatprep.subr.bf16.mxu0 0
    %188 = vmatpush1.bf16.msra.mxu0 0
    %189 = vmatprep.subr.bf16.mxu0 0
    %190 = vmatpush1.bf16.msra.mxu0 0
    %191 = vmatprep.subr.bf16.mxu0 0
    %192 = vmatpush1.bf16.msra.mxu0 0
    %193 = vmatprep.subr.bf16.mxu0 %v170
    %194 = vmatpush1.bf16.msra.mxu0 %v169
    %195 = vmatprep.subr.bf16.mxu0 %v168
    %196 = vmatpush1.bf16.msra.mxu0 %v167
    %197 = vmatprep.subr.bf16.mxu0 %v166
    %198 = vmatpush1.bf16.msra.mxu0 %v165
    %199 = vmatprep.subr.bf16.mxu0 %v164
    %200 = vmatpush1.bf16.msra.mxu0 %v163
    %201 = vmatprep.subr.bf16.mxu0 0
    %202 = vmatpush2.bf16.msra.mxu0 0
    %203 = vmatprep.subr.bf16.mxu0 0
    %204 = vmatpush2.bf16.msra.mxu0 0
    %205 = vmatprep.subr.bf16.mxu0 0
    %206 = vmatpush2.bf16.msra.mxu0 0
    %207 = vmatprep.subr.bf16.mxu0 0
    %208 = vmatpush2.bf16.msra.mxu0 0
    %209 = vmatprep.subr.bf16.mxu0 0
    %210 = vmatpush2.bf16.msra.mxu0 0
    %211 = vmatprep.subr.bf16.mxu0 0
    %212 = vmatpush2.bf16.msra.mxu0 0
    %213 = vmatprep.subr.bf16.mxu0 0
    %214 = vmatpush2.bf16.msra.mxu0 0
    %215 = vmatprep.subr.bf16.mxu0 0
    %216 = vmatpush2.bf16.msra.mxu0 0
    %217 = vmatprep.mubr.bf16.mxu0 0
    %218 = vmatmul.mubr.bf16.gmra.mxu0 %v180
    %v219 = vpop.f32.mrf.mxu0
    %v220 = vadd.f32 %v132, %v219
    %v221 = vpop.f32.mrf.mxu0
    %v222 = vadd.f32 %v136, %v221
    %v223 = vpop.f32.mrf.mxu0
    %v224 = vadd.f32 %v132, %v223
    %v225 = vpop.f32.mrf.mxu0
    %v226 = vadd.f32 %v136, %v225
    %227 = vmatprep.mubr.bf16.mxu0 0
    %228 = vmatmul.mubr.bf16.gmra.mxu0 %v183
    %v229 = vpop.f32.mrf.mxu0
    %v230 = vadd.f32 %v132, %v229
    %v231 = vpop.f32.mrf.mxu0
    %v232 = vadd.f32 %v136, %v231
    %v233 = vpop.f32.mrf.mxu0
    %v234 = vadd.f32 %v132, %v233
    %v235 = vpop.f32.mrf.mxu0
    %v236 = vadd.f32 %v136, %v235
    %237 = vdwg.mxu0
    %v238 = vpack.c.bf16 %v224, %v220
    %v239 = vpack.c.bf16 %v234, %v230
    %v242 = vunpack.c.l.b16 %v238
    %v243 = vunpack.c.h.b16 %v238
    %v244 = vunpack.c.l.b16 %v239
    %v245 = vunpack.c.h.b16 %v239
    %v246 = vpack.c.b16 %v242, %v242
    %v247 = vpack.c.b16 %v243, %v243
    %v248 = vpack.c.b16 %v244, %v244
    %v249 = vpack.c.b16 %v245, %v245
    %vm254 = vcmask 519168
    %255 = vst.msk [vmem:[%s5] sm:$0xf] %vm254, %v246
    %256 = vst.msk [vmem:[%s5 + $0x4] sm:$0xf] %vm254, %v247
    %257 = vst.msk [vmem:[%s5 + $0x8] sm:$0xf] %vm254, %v248
    %258 = vst.msk [vmem:[%s5 + $0xc] sm:$0xf] %vm254, %v249
    %v259 = vpack.c.bf16 %v226, %v222
    %v260 = vpack.c.bf16 %v236, %v232
    %v263 = vunpack.c.l.b16 %v259
    %v264 = vunpack.c.h.b16 %v259
    %v265 = vunpack.c.l.b16 %v260
    %v266 = vunpack.c.h.b16 %v260
    %v267 = vpack.c.b16 %v263, %v242
    %v268 = vpack.c.b16 %v264, %v243
    %v269 = vpack.c.b16 %v265, %v244
    %v270 = vpack.c.b16 %v266, %v245
    %271 = vrot.lane.b32.xlu0 %v267, 64
    %v272 = vpop.permute.xlu0 %271
    %273 = vrot.lane.b32.xlu0 %v268, 64
    %v274 = vpop.permute.xlu0 %273
    %275 = vrot.lane.b32.xlu0 %v269, 64
    %v276 = vpop.permute.xlu0 %275
    %277 = vrot.lane.b32.xlu0 %v270, 64
    %v278 = vpop.permute.xlu0 %277
    %v279 = vrot.slane %v272, 4
    %v280 = vrot.slane %v274, 4
    %v281 = vrot.slane %v276, 4
    %v282 = vrot.slane %v278, 4
    %vm283 = vcmask 523264
    %v284 = vsel %vm283, %v272, %v279
    %v285 = vsel %vm283, %v274, %v280
    %v286 = vsel %vm283, %v276, %v281
    %v287 = vsel %vm283, %v278, %v282
    %292 = vst [vmem:[%s6] sm:$0xf] %v284
    %293 = vst [vmem:[%s6 + $0x4] sm:$0xf] %v285
    %294 = vst [vmem:[%s6 + $0x8] sm:$0xf] %v286
    %295 = vst [vmem:[%s6 + $0xc] sm:$0xf] %v287
    // Predicated region
    $region26: #{fan_block_forward.7} parent=1 // pred_check
      _
    $region27: #{fan_block_forward.7} parent=1 // pred_check_branch
      %297 = sbr.rel (0) target = $region29
    $region28: #{fan_block_forward.7} parent=1 // pred_region
      _
    $region29: #{fan_block_forward.7} parent=1 // pred_fallthru
      _
    // Predicated region
    $region30: #{fan_block_forward.7} parent=1 // pred_check
      _
    $region31: #{fan_block_forward.7} parent=1 // pred_check_branch
      %299 = sbr.rel (0) target = $region33
    $region32: #{fan_block_forward.7} parent=1 // pred_region
      _
    $region33: #{fan_block_forward.7} parent=1 // pred_fallthru
      _
    // Predicated region
    $region34: #{fan_block_forward.7} parent=1 // pred_check
      _
    $region35: #{fan_block_forward.7} parent=1 // pred_check_branch
      %301 = sbr.rel (0) target = $region37
    $region36: #{fan_block_forward.7} parent=1 // pred_region
      _
    $region37: #{fan_block_forward.7} parent=1 // pred_fallthru
      _
    // Predicated region
    $region38: #{fan_block_forward.7} parent=1 // pred_check
      _
    $region39: #{fan_block_forward.7} parent=1 // pred_check_branch
      %303 = sbr.rel (0) target = $region41
    $region40: #{fan_block_forward.7} parent=1 // pred_region
      _
    $region41: #{fan_block_forward.7} parent=1 // pred_fallthru
      _
    %304 = vsyncpa [#allocation3], 1

// kernel: fan_block_forward.10
$region0: #{fan_block_forward.10}
  #allocation0 [shape = 'u32[]', space=smem, size = 0x4, offset = 0x4, fixed_abs, tag = 'smem constant byte address 0x4 - core index']
  #allocation1 [shape = 'u32[144,128]{1,0:T(1,128)}', space=vmem, size = 0x12000, scoped, tag = 'internal scratch']
  %s0 = inlined_call_operand.vmem [shape: f32[32,64], index: 0, kind: input, shape index: {}]
  %s1 = inlined_call_operand.vmem [shape: f32[1,64], index: 1, kind: input, shape index: {}]
  %s2 = inlined_call_operand.vmem [shape: f32[1,64], index: 2, kind: input, shape index: {}]
  %s3 = inlined_call_operand.vmem [shape: bf16[64,320], index: 3, kind: input, shape index: {}]
  %s4 = inlined_call_operand.vmem [shape: f32[1,320], index: 4, kind: input, shape index: {}]
  %s5 = inlined_call_operand.vmem [shape: f32[32,64], index: 5, kind: output, shape index: {0}]
  %s6 = inlined_call_operand.vmem [shape: f32[32,64], index: 6, kind: output, shape index: {1}]
  %s7 = inlined_call_operand.vmem [shape: f32[32,256], index: 7, kind: output, shape index: {2}]
  %8 = xla_tuple %s5, %s6, %s7
  %s9 = sld [smem:[#allocation0]]
  $region46: #{fan_block_forward.10} parent=0
    _
  %s11 = ssub.s32 1, %s9
  %s12 = scalar_select 0, %s11, %s9
  // Predicated region
  $region2: #{fan_block_forward.10} parent=0 // pred_check
    _
  $region3: #{fan_block_forward.10} parent=0 // pred_check_branch
    %14 = sbr.rel (0) target = $region5
  $region4: #{fan_block_forward.10} parent=0 // pred_region
    _
  $region5: #{fan_block_forward.10} parent=0 // pred_fallthru
    _
  // Predicated region
  $region6: #{fan_block_forward.10} parent=0 // pred_check
    _
  $region7: #{fan_block_forward.10} parent=0 // pred_check_branch
    %16 = sbr.rel (0) target = $region9
  $region8: #{fan_block_forward.10} parent=0 // pred_region
    _
  $region9: #{fan_block_forward.10} parent=0 // pred_fallthru
    _
  // Predicated region
  $region10: #{fan_block_forward.10} parent=0 // pred_check
    _
  $region11: #{fan_block_forward.10} parent=0 // pred_check_branch
    %18 = sbr.rel (0) target = $region13
  $region12: #{fan_block_forward.10} parent=0 // pred_region
    _
  $region13: #{fan_block_forward.10} parent=0 // pred_fallthru
    _
  // Predicated region
  $region14: #{fan_block_forward.10} parent=0 // pred_check
    _
  $region15: #{fan_block_forward.10} parent=0 // pred_check_branch
    %20 = sbr.rel (0) target = $region17
  $region16: #{fan_block_forward.10} parent=0 // pred_region
    _
  $region17: #{fan_block_forward.10} parent=0 // pred_fallthru
    _
  // Predicated region
  $region18: #{fan_block_forward.10} parent=0 // pred_check
    _
  $region19: #{fan_block_forward.10} parent=0 // pred_check_branch
    %22 = sbr.rel (0) target = $region21
  $region20: #{fan_block_forward.10} parent=0 // pred_region
    _
  $region21: #{fan_block_forward.10} parent=0 // pred_fallthru
    _
  %v24 = vld [vmem:[%s0] sm:$0xff]
  %v25 = vld [vmem:[%s0 + $0x8] sm:$0xff]
  %v26 = vld [vmem:[%s0 + $0x10] sm:$0xff]
  %v27 = vld [vmem:[%s0 + $0x18] sm:$0xff]
  %vm28 = vcmask 523264
  %v29 = vsel %vm28, %v24, 0.0
  %30 = vadd.xlane.f32.xlu0 %v29
  %v31 = vpop.xlane.xlu0 %30
  %v32 = vsel %vm28, %v25, 0.0
  %33 = vadd.xlane.f32.xlu0 %v32
  %v34 = vpop.xlane.xlu0 %33
  %v35 = vsel %vm28, %v26, 0.0
  %36 = vadd.xlane.f32.xlu0 %v35
  %v37 = vpop.xlane.xlu0 %36
  %v38 = vsel %vm28, %v27, 0.0
  %39 = vadd.xlane.f32.xlu0 %v38
  %v40 = vpop.xlane.xlu0 %39
  %v41 = vrcp.pop 64.0
  %v42 = vmul.f32 %v31, %v41
  %v43 = vmul.f32 %v34, %v41
  %v44 = vmul.f32 %v37, %v41
  %v45 = vmul.f32 %v40, %v41
  %v46 = vsub.f32 %v24, %v42
  %v47 = vsub.f32 %v25, %v43
  %v48 = vsub.f32 %v26, %v44
  %v49 = vsub.f32 %v27, %v45
  %v50 = vmul.f32 %v46, %v46
  %v51 = vmul.f32 %v47, %v47
  %v52 = vmul.f32 %v48, %v48
  %v53 = vmul.f32 %v49, %v49
  %v54 = vsel %vm28, %v50, 0.0
  %55 = vadd.xlane.f32.xlu0 %v54
  %v56 = vpop.xlane.xlu0 %55
  %v57 = vsel %vm28, %v51, 0.0
  %58 = vadd.xlane.f32.xlu0 %v57
  %v59 = vpop.xlane.xlu0 %58
  %v60 = vsel %vm28, %v52, 0.0
  %61 = vadd.xlane.f32.xlu0 %v60
  %v62 = vpop.xlane.xlu0 %61
  %v63 = vsel %vm28, %v53, 0.0
  %64 = vadd.xlane.f32.xlu0 %v63
  %v65 = vpop.xlane.xlu0 %64
  %v66 = vmul.f32 %v56, %v41
  %v67 = vmul.f32 %v59, %v41
  %v68 = vmul.f32 %v62, %v41
  %v69 = vmul.f32 %v65, %v41
  %v70 = vadd.f32 %v66, 1e-05
  %v71 = vadd.f32 %v67, 1e-05
  %v72 = vadd.f32 %v68, 1e-05
  %v73 = vadd.f32 %v69, 1e-05
  %v74 = vrsqrt.pop %v70
  %v75 = vrsqrt.pop %v71
  %v76 = vrsqrt.pop %v72
  %v77 = vrsqrt.pop %v73
  %v78 = vmul.f32 %v46, %v74
  %v79 = vmul.f32 %v47, %v75
  %v80 = vmul.f32 %v48, %v76
  %v81 = vmul.f32 %v49, %v77
  %v82 = vld [vmem:[%s1] sm:$0x1]
  %v84 = vlaneseq
  %v85 = vshrl.u32 %v84, 7
  %v86 = vsub.s32 0, %v85
  %v87 = vrot.slane %v82, %v86
  %v89 = vmul.f32 %v78, %v87
  %v90 = vmul.f32 %v79, %v87
  %v91 = vmul.f32 %v80, %v87
  %v92 = vmul.f32 %v81, %v87
  %v93 = vld [vmem:[%s2] sm:$0x1]
  %v95 = vlaneseq
  %v96 = vshrl.u32 %v95, 7
  %v97 = vsub.s32 0, %v96
  %v98 = vrot.slane %v93, %v97
  %v100 = vadd.f32 %v89, %v98
  %v101 = vadd.f32 %v90, %v98
  %v102 = vadd.f32 %v91, %v98
  %v103 = vadd.f32 %v92, %v98
  %104 = vst.msk [vmem:[%s5] sm:$0xff] %vm28, %v100
  %105 = vst.msk [vmem:[%s5 + $0x8] sm:$0xff] %vm28, %v101
  %106 = vst.msk [vmem:[%s5 + $0x10] sm:$0xff] %vm28, %v102
  %107 = vst.msk [vmem:[%s5 + $0x18] sm:$0xff] %vm28, %v103
  %v108 = vpack.c.bf16 %v101, %v100
  %v109 = vpack.c.bf16 %v103, %v102
  %v110 = vld [vmem:[%s3] sm:$0xff]
  %v111 = vld [vmem:[%s3 + $0x8] sm:$0xf]
  %v112 = vld [vmem:[%s3 + $0xc] sm:$0xff]
  %v113 = vld [vmem:[%s3 + $0x14] sm:$0xf]
  %v114 = vld [vmem:[%s3 + $0x18] sm:$0xff]
  %v115 = vld [vmem:[%s3 + $0x20] sm:$0xf]
  %v116 = vld [vmem:[%s3 + $0x24] sm:$0xff]
  %v117 = vld [vmem:[%s3 + $0x2c] sm:$0xf]
  %v118 = vld [vmem:[%s3 + $0x30] sm:$0xff]
  %v119 = vld [vmem:[%s3 + $0x38] sm:$0xf]
  %v120 = vld [vmem:[%s3 + $0x3c] sm:$0xff]
  %v121 = vld [vmem:[%s3 + $0x44] sm:$0xf]
  %v122 = vld [vmem:[%s3 + $0x48] sm:$0xff]
  %v123 = vld [vmem:[%s3 + $0x50] sm:$0xf]
  %v124 = vld [vmem:[%s3 + $0x54] sm:$0xff]
  %v125 = vld [vmem:[%s3 + $0x5c] sm:$0xf]
  %v126 = vld [vmem:[%s4] sm:$0x7]
  %v128 = vlaneseq
  %v129 = vshrl.u32 %v128, 7
  %v130 = vsub.s32 0, %v129
  %v131 = vrot.slane %v126, %v130
  %v132 = vlaneseq
  %v133 = vshrl.u32 %v132, 7
  %v134 = vsub.s32 1, %v133
  %v135 = vrot.slane %v126, %v134
  %v136 = vlaneseq
  %v137 = vshrl.u32 %v136, 7
  %v138 = vsub.s32 2, %v137
  %v139 = vrot.slane %v126, %v138
  %v159 = vunpack.c.l.b16 %v110
  %v160 = vunpack.c.h.b16 %v110
  %v161 = vunpack.c.l.b16 %v111
  %v162 = vunpack.c.l.b16 %v112
  %v163 = vunpack.c.h.b16 %v112
  %v164 = vunpack.c.l.b16 %v113
  %v165 = vunpack.c.l.b16 %v114
  %v166 = vunpack.c.h.b16 %v114
  %v167 = vunpack.c.l.b16 %v115
  %v168 = vunpack.c.l.b16 %v116
  %v169 = vunpack.c.h.b16 %v116
  %v170 = vunpack.c.l.b16 %v117
  %v171 = vunpack.c.l.b16 %v118
  %v172 = vunpack.c.h.b16 %v118
  %v173 = vunpack.c.l.b16 %v119
  %v174 = vunpack.c.l.b16 %v120
  %v175 = vunpack.c.h.b16 %v120
  %v176 = vunpack.c.l.b16 %v121
  %v177 = vunpack.c.l.b16 %v122
  %v178 = vunpack.c.h.b16 %v122
  %v179 = vunpack.c.l.b16 %v123
  %v180 = vunpack.c.l.b16 %v124
  %v181 = vunpack.c.h.b16 %v124
  %v182 = vunpack.c.l.b16 %v125
  %v183 = vpack.c.b16 %v162, %v159
  %v184 = vpack.c.b16 %v163, %v160
  %v185 = vpack.c.b16 %v164, %v161
  %v186 = vpack.c.b16 %v168, %v165
  %v187 = vpack.c.b16 %v169, %v166
  %v188 = vpack.c.b16 %v170, %v167
  %v189 = vpack.c.b16 %v174, %v171
  %v190 = vpack.c.b16 %v175, %v172
  %v191 = vpack.c.b16 %v176, %v173
  %v192 = vpack.c.b16 %v180, %v177
  %v193 = vpack.c.b16 %v181, %v178
  %v194 = vpack.c.b16 %v182, %v179
  %v208 = vsel %vm28, %v108, 0
  %v211 = vsel %vm28, %v109, 0
  %213 = vmatprep.subr.bf16.mxu0 0
  %214 = vmatpush1.bf16.msra.mxu0 0
  %215 = vmatprep.subr.bf16.mxu0 0
  %216 = vmatpush1.bf16.msra.mxu0 0
  %217 = vmatprep.subr.bf16.mxu0 0
  %218 = vmatpush1.bf16.msra.mxu0 0
  %219 = vmatprep.subr.bf16.mxu0 0
  %220 = vmatpush1.bf16.msra.mxu0 0
  %221 = vmatprep.subr.bf16.mxu0 %v193
  %222 = vmatpush1.bf16.msra.mxu0 %v192
  %223 = vmatprep.subr.bf16.mxu0 %v190
  %224 = vmatpush1.bf16.msra.mxu0 %v189
  %225 = vmatprep.subr.bf16.mxu0 %v187
  %226 = vmatpush1.bf16.msra.mxu0 %v186
  %227 = vmatprep.subr.bf16.mxu0 %v184
  %228 = vmatpush1.bf16.msra.mxu0 %v183
  %229 = vmatprep.subr.bf16.mxu0 0
  %230 = vmatpush2.bf16.msra.mxu0 0
  %231 = vmatprep.subr.bf16.mxu0 0
  %232 = vmatpush2.bf16.msra.mxu0 0
  %233 = vmatprep.subr.bf16.mxu0 0
  %234 = vmatpush2.bf16.msra.mxu0 0
  %235 = vmatprep.subr.bf16.mxu0 0
  %236 = vmatpush2.bf16.msra.mxu0 0
  %237 = vmatprep.subr.bf16.mxu0 0
  %238 = vmatpush2.bf16.msra.mxu0 0
  %239 = vmatprep.subr.bf16.mxu0 0
  %240 = vmatpush2.bf16.msra.mxu0 0
  %241 = vmatprep.subr.bf16.mxu0 0
  %242 = vmatpush2.bf16.msra.mxu0 0
  %243 = vmatprep.subr.bf16.mxu0 0
  %244 = vmatpush2.bf16.msra.mxu0 0
  %245 = vmatprep.mubr.bf16.mxu0 0
  %246 = vmatmul.mubr.bf16.gmra.mxu0 %v208
  %v247 = vpop.f32.mrf.mxu0
  %v248 = vadd.f32 %v131, %v247
  %v249 = vpop.f32.mrf.mxu0
  %v250 = vadd.f32 %v135, %v249
  %v251 = vpop.f32.mrf.mxu0
  %v252 = vadd.f32 %v131, %v251
  %v253 = vpop.f32.mrf.mxu0
  %v254 = vadd.f32 %v135, %v253
  %255 = vmatprep.mubr.bf16.mxu0 0
  %256 = vmatmul.mubr.bf16.gmra.mxu0 %v211
  %v257 = vpop.f32.mrf.mxu0
  %v258 = vadd.f32 %v131, %v257
  %v259 = vpop.f32.mrf.mxu0
  %v260 = vadd.f32 %v135, %v259
  %v261 = vpop.f32.mrf.mxu0
  %v262 = vadd.f32 %v131, %v261
  %v263 = vpop.f32.mrf.mxu0
  %v264 = vadd.f32 %v135, %v263
  %265 = vdwg.mxu0
  %266 = vmatprep.subr.bf16.mxu0 0
  %267 = vmatpush1.bf16.msra.mxu0 0
  %268 = vmatprep.subr.bf16.mxu0 0
  %269 = vmatpush1.bf16.msra.mxu0 0
  %270 = vmatprep.subr.bf16.mxu0 0
  %271 = vmatpush1.bf16.msra.mxu0 0
  %272 = vmatprep.subr.bf16.mxu0 0
  %273 = vmatpush1.bf16.msra.mxu0 0
  %274 = vmatprep.subr.bf16.mxu0 0
  %275 = vmatpush1.bf16.msra.mxu0 %v194
  %276 = vmatprep.subr.bf16.mxu0 0
  %277 = vmatpush1.bf16.msra.mxu0 %v191
  %278 = vmatprep.subr.bf16.mxu0 0
  %279 = vmatpush1.bf16.msra.mxu0 %v188
  %280 = vmatprep.subr.bf16.mxu0 0
  %281 = vmatpush1.bf16.msra.mxu0 %v185
  %282 = vmatprep.subr.bf16.mxu0 0
  %283 = vmatpush2.bf16.msra.mxu0 0
  %284 = vmatprep.subr.bf16.mxu0 0
  %285 = vmatpush2.bf16.msra.mxu0 0
  %286 = vmatprep.subr.bf16.mxu0 0
  %287 = vmatpush2.bf16.msra.mxu0 0
  %288 = vmatprep.subr.bf16.mxu0 0
  %289 = vmatpush2.bf16.msra.mxu0 0
  %290 = vmatprep.subr.bf16.mxu0 0
  %291 = vmatpush2.bf16.msra.mxu0 0
  %292 = vmatprep.subr.bf16.mxu0 0
  %293 = vmatpush2.bf16.msra.mxu0 0
  %294 = vmatprep.subr.bf16.mxu0 0
  %295 = vmatpush2.bf16.msra.mxu0 0
  %296 = vmatprep.subr.bf16.mxu0 0
  %297 = vmatpush2.bf16.msra.mxu0 0
  %298 = vmatprep.mubr.bf16.mxu0 0
  %299 = vmatmul.mubr.bf16.gmra.mxu0 %v208
  %v300 = vpop.f32.mrf.mxu0
  %v301 = vadd.f32 %v139, %v300
  %v302 = vpop.f32.mrf.mxu0
  %v303 = vpop.f32.mrf.mxu0
  %v304 = vadd.f32 %v139, %v303
  %v305 = vpop.f32.mrf.mxu0
  %306 = vmatprep.mubr.bf16.mxu0 0
  %307 = vmatmul.mubr.bf16.gmra.mxu0 %v211
  %v308 = vpop.f32.mrf.mxu0
  %v309 = vadd.f32 %v139, %v308
  %v310 = vpop.f32.mrf.mxu0
  %v311 = vpop.f32.mrf.mxu0
  %v312 = vadd.f32 %v139, %v311
  %v313 = vpop.f32.mrf.mxu0
  %314 = vdwg.mxu0
  %315 = vst.msk [vmem:[%s6] sm:$0xff] %vm28, %v248
  %316 = vst.msk [vmem:[%s6 + $0x8] sm:$0xff] %vm28, %v252
  %317 = vst.msk [vmem:[%s6 + $0x10] sm:$0xff] %vm28, %v258
  %318 = vst.msk [vmem:[%s6 + $0x18] sm:$0xff] %vm28, %v262
  %331 = vrot.lane.b32.xlu0 %v248, 64
  %v332 = vpop.permute.xlu0 %331
  %333 = vrot.lane.b32.xlu0 %v250, 64
  %v334 = vpop.permute.xlu0 %333
  %335 = vrot.lane.b32.xlu0 %v301, 64
  %v336 = vpop.permute.xlu0 %335
  %337 = vrot.lane.b32.xlu0 %v252, 64
  %v338 = vpop.permute.xlu0 %337
  %339 = vrot.lane.b32.xlu0 %v254, 64
  %v340 = vpop.permute.xlu0 %339
  %341 = vrot.lane.b32.xlu0 %v304, 64
  %v342 = vpop.permute.xlu0 %341
  %343 = vrot.lane.b32.xlu0 %v258, 64
  %v344 = vpop.permute.xlu0 %343
  %345 = vrot.lane.b32.xlu0 %v260, 64
  %v346 = vpop.permute.xlu0 %345
  %347 = vrot.lane.b32.xlu0 %v309, 64
  %v348 = vpop.permute.xlu0 %347
  %349 = vrot.lane.b32.xlu0 %v262, 64
  %v350 = vpop.permute.xlu0 %349
  %351 = vrot.lane.b32.xlu0 %v264, 64
  %v352 = vpop.permute.xlu0 %351
  %353 = vrot.lane.b32.xlu0 %v312, 64
  %v354 = vpop.permute.xlu0 %353
  %v355 = vsel %vm28, %v332, %v334
  %v356 = vsel %vm28, %v334, %v336
  %v357 = vsel %vm28, %v338, %v340
  %v358 = vsel %vm28, %v340, %v342
  %v359 = vsel %vm28, %v344, %v346
  %v360 = vsel %vm28, %v346, %v348
  %v361 = vsel %vm28, %v350, %v352
  %v362 = vsel %vm28, %v352, %v354
  %371 = vst [vmem:[%s7] sm:$0xff] %v355
  %372 = vst [vmem:[%s7 + $0x8] sm:$0xff] %v356
  %373 = vst [vmem:[%s7 + $0x10] sm:$0xff] %v357
  %374 = vst [vmem:[%s7 + $0x18] sm:$0xff] %v358
  %375 = vst [vmem:[%s7 + $0x20] sm:$0xff] %v359
  %376 = vst [vmem:[%s7 + $0x28] sm:$0xff] %v360
  %377 = vst [vmem:[%s7 + $0x30] sm:$0xff] %v361
  %378 = vst [vmem:[%s7 + $0x38] sm:$0xff] %v362
  // Predicated region
  $region22: #{fan_block_forward.10} parent=0 // pred_check
    _
  $region23: #{fan_block_forward.10} parent=0 // pred_check_branch
    %380 = sbr.rel (0) target = $region25
  $region24: #{fan_block_forward.10} parent=0 // pred_region
    _
  $region25: #{fan_block_forward.10} parent=0 // pred_fallthru
    _
  // Predicated region
  $region26: #{fan_block_forward.10} parent=0 // pred_check
    _
  $region27: #{fan_block_forward.10} parent=0 // pred_check_branch
    %382 = sbr.rel (0) target = $region29
  $region28: #{fan_block_forward.10} parent=0 // pred_region
    _
  $region29: #{fan_block_forward.10} parent=0 // pred_fallthru
    _
  // Predicated region
  $region30: #{fan_block_forward.10} parent=0 // pred_check
    _
  $region31: #{fan_block_forward.10} parent=0 // pred_check_branch
    %384 = sbr.rel (0) target = $region33
  $region32: #{fan_block_forward.10} parent=0 // pred_region
    _
  $region33: #{fan_block_forward.10} parent=0 // pred_fallthru
    _
  // Predicated region
  $region34: #{fan_block_forward.10} parent=0 // pred_check
    _
  $region35: #{fan_block_forward.10} parent=0 // pred_check_branch
    %386 = sbr.rel (0) target = $region37
  $region36: #{fan_block_forward.10} parent=0 // pred_region
    _
  $region37: #{fan_block_forward.10} parent=0 // pred_fallthru
    _
  // Predicated region
  $region38: #{fan_block_forward.10} parent=0 // pred_check
    _
  $region39: #{fan_block_forward.10} parent=0 // pred_check_branch
    %388 = sbr.rel (0) target = $region41
  $region40: #{fan_block_forward.10} parent=0 // pred_region
    _
  $region41: #{fan_block_forward.10} parent=0 // pred_fallthru
    _
  // Predicated region
  $region42: #{fan_block_forward.10} parent=0 // pred_check
    _
  $region43: #{fan_block_forward.10} parent=0 // pred_check_branch
    %390 = sbr.rel (0) target = $region45
  $region44: #{fan_block_forward.10} parent=0 // pred_region
    _
  $region45: #{fan_block_forward.10} parent=0 // pred_fallthru
    _

// kernel: fan_block_forward.9
$region0: #{fan_block_forward.9}
  #allocation0 [shape = 'u32[]', space=smem, size = 0x4, offset = 0x4, fixed_abs, tag = 'smem constant byte address 0x4 - core index']
  #allocation1 [shape = 'u32[144,128]{1,0:T(1,128)}', space=vmem, size = 0x12000, scoped, tag = 'internal scratch']
  %s0 = inlined_call_operand.vmem [shape: bf16[32,64], index: 0, kind: input, shape index: {}]
  %s1 = inlined_call_operand.vmem [shape: bf16[64,64], index: 1, kind: input, shape index: {}]
  %s2 = inlined_call_operand.vmem [shape: f32[1,64], index: 2, kind: input, shape index: {}]
  %s3 = inlined_call_operand.vmem [shape: f32[32,64], index: 3, kind: input, shape index: {}]
  %s4 = inlined_call_operand.vmem [shape: f32[1,64], index: 4, kind: input, shape index: {}]
  %s5 = inlined_call_operand.vmem [shape: f32[32,64], index: 5, kind: output, shape index: {}]
  %s6 = sld [smem:[#allocation0]]
  $region30: #{fan_block_forward.9} parent=0
    _
  %s8 = ssub.s32 1, %s6
  %s9 = scalar_select 0, %s8, %s6
  // Predicated region
  $region2: #{fan_block_forward.9} parent=0 // pred_check
    _
  $region3: #{fan_block_forward.9} parent=0 // pred_check_branch
    %11 = sbr.rel (0) target = $region5
  $region4: #{fan_block_forward.9} parent=0 // pred_region
    _
  $region5: #{fan_block_forward.9} parent=0 // pred_fallthru
    _
  // Predicated region
  $region6: #{fan_block_forward.9} parent=0 // pred_check
    _
  $region7: #{fan_block_forward.9} parent=0 // pred_check_branch
    %13 = sbr.rel (0) target = $region9
  $region8: #{fan_block_forward.9} parent=0 // pred_region
    _
  $region9: #{fan_block_forward.9} parent=0 // pred_fallthru
    _
  // Predicated region
  $region10: #{fan_block_forward.9} parent=0 // pred_check
    _
  $region11: #{fan_block_forward.9} parent=0 // pred_check_branch
    %15 = sbr.rel (0) target = $region13
  $region12: #{fan_block_forward.9} parent=0 // pred_region
    _
  $region13: #{fan_block_forward.9} parent=0 // pred_fallthru
    _
  // Predicated region
  $region14: #{fan_block_forward.9} parent=0 // pred_check
    _
  $region15: #{fan_block_forward.9} parent=0 // pred_check_branch
    %17 = sbr.rel (0) target = $region17
  $region16: #{fan_block_forward.9} parent=0 // pred_region
    _
  $region17: #{fan_block_forward.9} parent=0 // pred_fallthru
    _
  // Predicated region
  $region18: #{fan_block_forward.9} parent=0 // pred_check
    _
  $region19: #{fan_block_forward.9} parent=0 // pred_check_branch
    %19 = sbr.rel (0) target = $region21
  $region20: #{fan_block_forward.9} parent=0 // pred_region
    _
  $region21: #{fan_block_forward.9} parent=0 // pred_fallthru
    _
  %v21 = vld [vmem:[%s0] sm:$0xf]
  %v22 = vld [vmem:[%s0 + $0x4] sm:$0xf]
  %v23 = vld [vmem:[%s0 + $0x8] sm:$0xf]
  %v24 = vld [vmem:[%s0 + $0xc] sm:$0xf]
  %v25 = vld [vmem:[%s1] sm:$0xf]
  %v26 = vld [vmem:[%s1 + $0x4] sm:$0xf]
  %v27 = vld [vmem:[%s1 + $0x8] sm:$0xf]
  %v28 = vld [vmem:[%s1 + $0xc] sm:$0xf]
  %v29 = vld [vmem:[%s1 + $0x10] sm:$0xf]
  %v30 = vld [vmem:[%s1 + $0x14] sm:$0xf]
  %v31 = vld [vmem:[%s1 + $0x18] sm:$0xf]
  %v32 = vld [vmem:[%s1 + $0x1c] sm:$0xf]
  %v33 = vld [vmem:[%s2] sm:$0x1]
  %v35 = vlaneseq
  %v36 = vshrl.u32 %v35, 7
  %v37 = vsub.s32 0, %v36
  %v38 = vrot.slane %v33, %v37
  %v44 = vunpack.c.l.b16 %v21
  %v45 = vunpack.c.l.b16 %v22
  %v46 = vunpack.c.l.b16 %v23
  %v47 = vunpack.c.l.b16 %v24
  %v48 = vpack.c.b16 %v45, %v44
  %v49 = vpack.c.b16 %v47, %v46
  %v58 = vunpack.c.l.b16 %v25
  %v59 = vunpack.c.l.b16 %v26
  %v60 = vunpack.c.l.b16 %v27
  %v61 = vunpack.c.l.b16 %v28
  %v62 = vunpack.c.l.b16 %v29
  %v63 = vunpack.c.l.b16 %v30
  %v64 = vunpack.c.l.b16 %v31
  %v65 = vunpack.c.l.b16 %v32
  %v66 = vpack.c.b16 %v59, %v58
  %v67 = vpack.c.b16 %v61, %v60
  %v68 = vpack.c.b16 %v63, %v62
  %v69 = vpack.c.b16 %v65, %v64
  %vm74 = vcmask 523264
  %v76 = vsel %vm74, %v48, 0
  %v79 = vsel %vm74, %v49, 0
  %81 = vmatprep.subr.bf16.mxu0 0
  %82 = vmatpush1.bf16.msra.mxu0 0
  %83 = vmatprep.subr.bf16.mxu0 0
  %84 = vmatpush1.bf16.msra.mxu0 0
  %85 = vmatprep.subr.bf16.mxu0 0
  %86 = vmatpush1.bf16.msra.mxu0 0
  %87 = vmatprep.subr.bf16.mxu0 0
  %88 = vmatpush1.bf16.msra.mxu0 0
  %89 = vmatprep.subr.bf16.mxu0 0
  %90 = vmatpush1.bf16.msra.mxu0 %v69
  %91 = vmatprep.subr.bf16.mxu0 0
  %92 = vmatpush1.bf16.msra.mxu0 %v68
  %93 = vmatprep.subr.bf16.mxu0 0
  %94 = vmatpush1.bf16.msra.mxu0 %v67
  %95 = vmatprep.subr.bf16.mxu0 0
  %96 = vmatpush1.bf16.msra.mxu0 %v66
  %97 = vmatprep.subr.bf16.mxu0 0
  %98 = vmatpush2.bf16.msra.mxu0 0
  %99 = vmatprep.subr.bf16.mxu0 0
  %100 = vmatpush2.bf16.msra.mxu0 0
  %101 = vmatprep.subr.bf16.mxu0 0
  %102 = vmatpush2.bf16.msra.mxu0 0
  %103 = vmatprep.subr.bf16.mxu0 0
  %104 = vmatpush2.bf16.msra.mxu0 0
  %105 = vmatprep.subr.bf16.mxu0 0
  %106 = vmatpush2.bf16.msra.mxu0 0
  %107 = vmatprep.subr.bf16.mxu0 0
  %108 = vmatpush2.bf16.msra.mxu0 0
  %109 = vmatprep.subr.bf16.mxu0 0
  %110 = vmatpush2.bf16.msra.mxu0 0
  %111 = vmatprep.subr.bf16.mxu0 0
  %112 = vmatpush2.bf16.msra.mxu0 0
  %113 = vmatprep.mubr.bf16.mxu0 0
  %114 = vmatmul.mubr.bf16.gmra.mxu0 %v76
  %v115 = vpop.f32.mrf.mxu0
  %v116 = vadd.f32 %v38, %v115
  %v117 = vpop.f32.mrf.mxu0
  %v118 = vpop.f32.mrf.mxu0
  %v119 = vadd.f32 %v38, %v118
  %v120 = vpop.f32.mrf.mxu0
  %121 = vmatprep.mubr.bf16.mxu0 0
  %122 = vmatmul.mubr.bf16.gmra.mxu0 %v79
  %v123 = vpop.f32.mrf.mxu0
  %v124 = vadd.f32 %v38, %v123
  %v125 = vpop.f32.mrf.mxu0
  %v126 = vpop.f32.mrf.mxu0
  %v127 = vadd.f32 %v38, %v126
  %v128 = vpop.f32.mrf.mxu0
  %129 = vdwg.mxu0
  %v130 = vld [vmem:[%s3] sm:$0xff]
  %v131 = vld [vmem:[%s3 + $0x8] sm:$0xff]
  %v132 = vld [vmem:[%s3 + $0x10] sm:$0xff]
  %v133 = vld [vmem:[%s3 + $0x18] sm:$0xff]
  %v134 = vld [vmem:[%s4] sm:$0x1]
  %v136 = vlaneseq
  %v137 = vshrl.u32 %v136, 7
  %v138 = vsub.s32 0, %v137
  %v139 = vrot.slane %v134, %v138
  %v141 = vmul.f32 %v139, %v116
  %v142 = vmul.f32 %v139, %v119
  %v143 = vmul.f32 %v139, %v124
  %v144 = vmul.f32 %v139, %v127
  %v145 = vadd.f32 %v130, %v141
  %v146 = vadd.f32 %v131, %v142
  %v147 = vadd.f32 %v132, %v143
  %v148 = vadd.f32 %v133, %v144
  %149 = vst.msk [vmem:[%s5] sm:$0xff] %vm74, %v145
  %150 = vst.msk [vmem:[%s5 + $0x8] sm:$0xff] %vm74, %v146
  %151 = vst.msk [vmem:[%s5 + $0x10] sm:$0xff] %vm74, %v147
  %152 = vst.msk [vmem:[%s5 + $0x18] sm:$0xff] %vm74, %v148
  // Predicated region
  $region22: #{fan_block_forward.9} parent=0 // pred_check
    _
  $region23: #{fan_block_forward.9} parent=0 // pred_check_branch
    %154 = sbr.rel (0) target = $region25
  $region24: #{fan_block_forward.9} parent=0 // pred_region
    _
  $region25: #{fan_block_forward.9} parent=0 // pred_fallthru
    _
  // Predicated region
  $region26: #{fan_block_forward.9} parent=0 // pred_check
    _
  $region27: #{fan_block_forward.9} parent=0 // pred_check_branch
    %156 = sbr.rel (0) target = $region29
  $region28: #{fan_block_forward.9} parent=0 // pred_region
    _
  $region29: #{fan_block_forward.9} parent=0 // pred_fallthru
    _

// kernel: fan_block_forward.8
$region0: #{fan_block_forward.8}
  #allocation0 [shape = 'u32[]', space=smem, size = 0x4, offset = 0x4, fixed_abs, tag = 'smem constant byte address 0x4 - core index']
  #allocation1 [shape = 'u32[144,128]{1,0:T(1,128)}', space=vmem, size = 0x12000, scoped, tag = 'internal scratch']
  #allocation2 [shape = 'f32[16,4]{1,0:T(8,128)}', space=vmem, size = 0x2000, scoped, tag = 'scratch operand']
  #allocation3 [shape = 'f32[16,4]{1,0:T(8,128)}', space=vmem, size = 0x2000, scoped, tag = 'scratch operand']
  #allocation4 [shape = 'f32[16,64]{1,0:T(8,128)}', space=vmem, size = 0x2000, scoped, tag = 'scratch operand']
  %s0 = inlined_call_operand.vmem [shape: bf16[2,16,64], index: 0, kind: input, shape index: {}]
  %s1 = inlined_call_operand.vmem [shape: bf16[2,16,128], index: 1, kind: input, shape index: {}]
  %s2 = inlined_call_operand.vmem [shape: bf16[2,16,64], index: 2, kind: output, shape index: {}]
  %s3 = sld [smem:[#allocation0]]
  $region49: #{fan_block_forward.8} parent=0
    _
  %s5 = ssub.s32 1, %s3
  %s6 = scalar_select 0, %s5, %s3
  loop: start=0, step=1, limit=4
  $region2: #{fan_block_forward.8} parent=0 // loop_pre_header
    _
  $region3: #{fan_block_forward.8} parent=0 // loop_header
    %s8 = sphi 0, %s12
    %p9 = scmp.ge.s32.totalorder %s8, 4
    %s15 = sphi 0, %s34
    %s16 = sphi 0, %s30
    %s17 = sphi 0, %s26
    %s18 = sphi 0, %s15
    %s19 = sphi 0, %s16
    %s20 = sphi 0, %s17
    %s21 = sphi 0, %s18
    %s22 = sphi 0, %s19
    %s23 = sphi 0, %s20
    %s39 = sphi 0, %s41
    %s42 = sphi 0, %s39
    %s43 = sphi 0, %s42
    %s59 = sphi 0, %s43
    %s67 = sphi 0, %s69
    %s70 = sphi 0, %s67
    %s71 = sphi 0, %s70
    %s87 = sphi 0, %s71
    %s95 = sphi 0, %s97
    %s98 = sphi 0, %s95
    %s99 = sphi 0, %s98
    %s115 = sphi 0, %s99
  $region4: #{fan_block_forward.8} parent=0 // loop_header_branch
    %11 = sbr.rel (%p9) target = $region8
  $region5: #{fan_block_forward.8} parent=0 // loop_body
    %s13 = ssub.s32 %s8, 1
    %s14 = ssub.s32 %s8, 2
    %s24 = sadd.s32 1, %s17
    %p25 = scmp.ge.s32.totalorder %s24, 1
    %s26 = scalar_select %p25, 0, %s24
    %s27 = sadd.s32 1, %s16
    %s28 = scalar_select %p25, %s27, %s16
    %p29 = scmp.ge.s32.totalorder %s28, 1
    %s30 = scalar_select %p29, 0, %s28
    %s31 = sadd.s32 1, %s15
    %s32 = scalar_select %p29, %s31, %s15
    %p33 = scmp.ge.s32.totalorder %s32, 2
    %s34 = scalar_select %p33, 0, %s32
    %s35 = ssub.s32 %s15, %s34
    %s36 = ssub.s32 %s16, %s30
    %s37 = sor.u32 %s35, %s36
    %p38 = scmp.eq.s32.totalorder %s37, 0
    %s40 = sadd.s32 %s39, 1
    %s41 = scalar_select %p38, %s39, %s40
    %p44 = pneg %p38
    %p45 = scmp.eq.s32.totalorder %s8, 1
    %p46 = por %p44, %p45
    %p47 = scmp.ne.s32.totalorder %s39, %s42
    %p48 = scmp.eq.s32.totalorder %s8, 0
    %p49 = por %p47, %p48
    %p50 = scmp.ne.s32.totalorder %s39, %s42
    %p51 = scmp.eq.s32.totalorder %s13, 1
    %p52 = por %p50, %p51
    %p53 = scmp.ne.s32.totalorder %s42, %s43
    %p54 = scmp.eq.s32.totalorder %s13, 0
    %p55 = por %p53, %p54
    %p56 = scmp.ne.s32.totalorder %s42, %s43
    %p57 = scmp.eq.s32.totalorder %s14, 1
    %p58 = por %p56, %p57
    %p60 = scmp.ne.s32.totalorder %s43, %s59
    %p61 = scmp.eq.s32.totalorder %s14, 0
    %p62 = por %p60, %p61
    %s63 = ssub.s32 %s15, %s34
    %s64 = ssub.s32 %s17, %s26
    %s65 = sor.u32 %s63, %s64
    %p66 = scmp.eq.s32.totalorder %s65, 0
    %s68 = sadd.s32 %s67, 1
    %s69 = scalar_select %p66, %s67, %s68
    %p72 = pneg %p66
    %p73 = scmp.eq.s32.totalorder %s8, 1
    %p74 = por %p72, %p73
    %p75 = scmp.ne.s32.totalorder %s67, %s70
    %p76 = scmp.eq.s32.totalorder %s8, 0
    %p77 = por %p75, %p76
    %p78 = scmp.ne.s32.totalorder %s67, %s70
    %p79 = scmp.eq.s32.totalorder %s13, 1
    %p80 = por %p78, %p79
    %p81 = scmp.ne.s32.totalorder %s70, %s71
    %p82 = scmp.eq.s32.totalorder %s13, 0
    %p83 = por %p81, %p82
    %p84 = scmp.ne.s32.totalorder %s70, %s71
    %p85 = scmp.eq.s32.totalorder %s14, 1
    %p86 = por %p84, %p85
    %p88 = scmp.ne.s32.totalorder %s71, %s87
    %p89 = scmp.eq.s32.totalorder %s14, 0
    %p90 = por %p88, %p89
    %s91 = ssub.s32 %s15, %s34
    %s92 = ssub.s32 %s16, %s30
    %s93 = sor.u32 %s91, %s92
    %p94 = scmp.eq.s32.totalorder %s93, 0
    %s96 = sadd.s32 %s95, 1
    %s97 = scalar_select %p94, %s95, %s96
    %p100 = pneg %p94
    %p101 = scmp.eq.s32.totalorder %s8, 1
    %p102 = por %p100, %p101
    %p103 = scmp.ne.s32.totalorder %s95, %s98
    %p104 = scmp.eq.s32.totalorder %s8, 0
    %p105 = por %p103, %p104
    %p106 = scmp.ne.s32.totalorder %s95, %s98
    %p107 = scmp.eq.s32.totalorder %s13, 1
    %p108 = por %p106, %p107
    %p109 = scmp.ne.s32.totalorder %s98, %s99
    %p110 = scmp.eq.s32.totalorder %s13, 0
    %p111 = por %p109, %p110
    %p112 = scmp.ne.s32.totalorder %s98, %s99
    %p113 = scmp.eq.s32.totalorder %s14, 1
    %p114 = por %p112, %p113
    %p116 = scmp.ne.s32.totalorder %s99, %s115
    %p117 = scmp.eq.s32.totalorder %s14, 0
    %p118 = por %p116, %p117
    %p119 = scmp.le.s32.totalorder 1, %s8
    %p120 = scmp.lt.s32.totalorder %s8, 3
    %p121 = pnand %p119, %p120
    %p122 = pneg %p121
    // Predicated region
    $region9: #{fan_block_forward.8} parent=5 // pred_check
      _
    $region10: #{fan_block_forward.8} parent=5 // pred_check_branch
      %124 = sbr.rel (%p121) target = $region12
    $region11: #{fan_block_forward.8} parent=5 // pred_region
      %s125 = ssub.s32 %s8, 1
    $region12: #{fan_block_forward.8} parent=5 // pred_fallthru
      _
    %p126 = scmp.lt.s32.totalorder %s8, 2
    // Predicated region
    $region13: #{fan_block_forward.8} parent=5 // pred_check
      %p127 = pneg %p126
    $region14: #{fan_block_forward.8} parent=5 // pred_check_branch
      %129 = sbr.rel (%p127) target = $region16
    $region15: #{fan_block_forward.8} parent=5 // pred_region
      // Predicated region
      $region17: #{fan_block_forward.8} parent=15 // pred_check
        %p130 = pneg %p49
      $region18: #{fan_block_forward.8} parent=15 // pred_check_branch
        %132 = sbr.rel (%p130) target = $region20
      $region19: #{fan_block_forward.8} parent=15 // pred_region
        %s133 = smul.u32 2, %s16
        %p134 = scmp.lt.s32.totalorder %s15, 1
        %s135 = scalar_select %p134, %s15, 1
        %p136 = scmp.lt.s32.totalorder %s133, 1
        %s137 = scalar_select %p136, %s133, 1
        %s138 = smul.addr %s135, 2
        %s139 = sadd.s32 %s137, %s138
        %s140 = smul.addr %s139, 4
        %s141 = scalar_lea.vmem %s0, %s140
        %s142 = smul.u32 2, %s16
      $region20: #{fan_block_forward.8} parent=15 // pred_fallthru
        _
      // Predicated region
      $region21: #{fan_block_forward.8} parent=15 // pred_check
        %p143 = pneg %p77
      $region22: #{fan_block_forward.8} parent=15 // pred_check_branch
        %145 = sbr.rel (%p143) target = $region24
      $region23: #{fan_block_forward.8} parent=15 // pred_region
        %s146 = smul.u32 2, %s17
        %p147 = scmp.lt.s32.totalorder %s15, 1
        %s148 = scalar_select %p147, %s15, 1
        %p149 = scmp.lt.s32.totalorder %s146, 1
        %s150 = scalar_select %p149, %s146, 1
        %s151 = smul.addr %s148, 2
        %s152 = sadd.s32 %s150, %s151
        %s153 = smul.addr %s152, 4
        %s154 = scalar_lea.vmem %s1, %s153
        %s155 = smul.u32 2, %s17
      $region24: #{fan_block_forward.8} parent=15 // pred_fallthru
        _
    $region16: #{fan_block_forward.8} parent=5 // pred_fallthru
      _
    %p156 = scmp.le.s32.totalorder 1, %s8
    %p157 = scmp.lt.s32.totalorder %s8, 3
    %p158 = pnand %p156, %p157
    %p159 = pneg %p158
    // Predicated region
    $region25: #{fan_block_forward.8} parent=5 // pred_check
      _
    $region26: #{fan_block_forward.8} parent=5 // pred_check_branch
      %161 = sbr.rel (%p158) target = $region28
    $region27: #{fan_block_forward.8} parent=5 // pred_region
      %s162 = ssub.s32 %s8, 1
      %s163 = smul.u32 2, %s19
      %p164 = scmp.lt.s32.totalorder %s18, 1
      %s165 = scalar_select %p164, %s18, 1
      %p166 = scmp.lt.s32.totalorder %s163, 1
      %s167 = scalar_select %p166, %s163, 1
      %s168 = smul.addr %s165, 2
      %s169 = sadd.s32 %s167, %s168
      %s170 = smul.addr %s169, 4
      %s171 = scalar_lea.vmem %s0, %s170
      %p172 = pneg %p55
      %p173 = pneg %p52
      %s174 = smul.u32 2, %s20
      %p175 = scmp.lt.s32.totalorder %s18, 1
      %s176 = scalar_select %p175, %s18, 1
      %p177 = scmp.lt.s32.totalorder %s174, 1
      %s178 = scalar_select %p177, %s174, 1
      %s179 = smul.addr %s176, 2
      %s180 = sadd.s32 %s178, %s179
      %s181 = smul.addr %s180, 4
      %s182 = scalar_lea.vmem %s1, %s181
      %p183 = pneg %p83
      %p184 = pneg %p80
      %p185 = pneg %p111
      %p186 = pneg %p108
      %s187 = smul.u32 2, %s19
      %p188 = scmp.lt.s32.totalorder %s18, 1
      %s189 = scalar_select %p188, %s18, 1
      %p190 = scmp.lt.s32.totalorder %s187, 1
      %s191 = scalar_select %p190, %s187, 1
      %s192 = smul.addr %s189, 2
      %s193 = sadd.s32 %s191, %s192
      %s194 = smul.addr %s193, 4
      %s195 = scalar_lea.vmem %s2, %s194
      %s196 = smul.u32 2, %s19
      %p197 = scmp.lt.s32.totalorder %s18, 1
      %s198 = scalar_select %p197, %s18, 1
      %p199 = scmp.lt.s32.totalorder %s196, 1
      %s200 = scalar_select %p199, %s196, 1
      %s201 = smul.addr %s198, 2
      %s202 = sadd.s32 %s200, %s201
      %s203 = smul.addr %s202, 4
      %s204 = scalar_lea.vmem %s0, %s203
      %s205 = smul.u32 2, %s19
      %s206 = smul.u32 2, %s20
      %p207 = scmp.lt.s32.totalorder %s18, 1
      %s208 = scalar_select %p207, %s18, 1
      %p209 = scmp.lt.s32.totalorder %s206, 1
      %s210 = scalar_select %p209, %s206, 1
      %s211 = smul.addr %s208, 2
      %s212 = sadd.s32 %s210, %s211
      %s213 = smul.addr %s212, 4
      %s214 = scalar_lea.vmem %s1, %s213
      %s215 = smul.u32 2, %s20
      %s216 = smul.u32 2, %s19
      %p217 = scmp.lt.s32.totalorder %s18, 1
      %s218 = scalar_select %p217, %s18, 1
      %p219 = scmp.lt.s32.totalorder %s216, 1
      %s220 = scalar_select %p219, %s216, 1
      %s221 = smul.addr %s218, 2
      %s222 = sadd.s32 %s220, %s221
      %s223 = smul.addr %s222, 4
      %s224 = scalar_lea.vmem %s2, %s223
      %s225 = smul.u32 2, %s19
      %p227 = scmp.eq.s32.totalorder %s20, 0
      // Predicated region
      $region29: #{fan_block_forward.8} parent=27 // pred_check
        %p228 = pneg %p227
      $region30: #{fan_block_forward.8} parent=27 // pred_check_branch
        %230 = sbr.rel (%p228) target = $region32
      $region31: #{fan_block_forward.8} parent=27 // pred_region
        %vm231 = vcmask 31744
        %232 = vst.msk [vmem:[#allocation2] sm:$0xff] %vm231, -1e+30
        %233 = vst.msk [vmem:[#allocation2 + $0x8] sm:$0xff] %vm231, -1e+30
        %234 = vst.msk [vmem:[#allocation3] sm:$0xff] %vm231, 0.0
        %235 = vst.msk [vmem:[#allocation3 + $0x8] sm:$0xff] %vm231, 0.0
        %vm236 = vcmask 523264
        %237 = vst.msk [vmem:[#allocation4] sm:$0xff] %vm236, 0.0
        %238 = vst.msk [vmem:[#allocation4 + $0x8] sm:$0xff] %vm236, 0.0
      $region32: #{fan_block_forward.8} parent=27 // pred_fallthru
        _
      %v239 = vld [vmem:[%s204] sm:$0xf]
      %v240 = vld [vmem:[%s204 + $0x4] sm:$0xf]
      %v241 = vld [vmem:[%s214] sm:$0xf]
      %v242 = vld [vmem:[%s214 + $0x4] sm:$0xf]
      %v243 = vld [vmem:[#allocation2] sm:$0xff]
      %v244 = vld [vmem:[#allocation2 + $0x8] sm:$0xff]
      %v245 = vld [vmem:[#allocation3] sm:$0xff]
      %v246 = vld [vmem:[#allocation3 + $0x8] sm:$0xff]
      %v249 = vunpack.c.l.b16 %v239
      %v250 = vunpack.c.l.b16 %v240
      %v251 = vpack.c.b16 %v250, %v249
      %v254 = vunpack.c.l.b16 %v241
      %v255 = vunpack.c.l.b16 %v242
      %v256 = vpack.c.b16 %v255, %v254
      %vm257 = vcmask 130048
      %v259 = vsel %vm257, %v251, 0
      %v262 = vsel %vm257, %v256, 0
      %264 = vmatprep.subr.bf16.mxu0 0
      %265 = vmatpush1.bf16.xpose.msra.mxu0 0
      %266 = vmatprep.subr.bf16.mxu0 0
      %267 = vmatpush1.bf16.xpose.msra.mxu0 0
      %268 = vmatprep.subr.bf16.mxu0 0
      %269 = vmatpush1.bf16.xpose.msra.mxu0 0
      %270 = vmatprep.subr.bf16.mxu0 0
      %271 = vmatpush1.bf16.xpose.msra.mxu0 0
      %272 = vmatprep.subr.bf16.mxu0 0
      %273 = vmatpush1.bf16.xpose.msra.mxu0 0
      %274 = vmatprep.subr.bf16.mxu0 0
      %275 = vmatpush1.bf16.xpose.msra.mxu0 0
      %276 = vmatprep.subr.bf16.mxu0 0
      %277 = vmatpush1.bf16.xpose.msra.mxu0 0
      %278 = vmatprep.subr.bf16.mxu0 0
      %279 = vmatpush1.bf16.xpose.msra.mxu0 %v262
      %280 = vmatprep.subr.bf16.mxu0 0
      %281 = vmatpush2.bf16.xpose.msra.mxu0 0
      %282 = vmatprep.subr.bf16.mxu0 0
      %283 = vmatpush2.bf16.xpose.msra.mxu0 0
      %284 = vmatprep.subr.bf16.mxu0 0
      %285 = vmatpush2.bf16.xpose.msra.mxu0 0
      %286 = vmatprep.subr.bf16.mxu0 0
      %287 = vmatpush2.bf16.xpose.msra.mxu0 0
      %288 = vmatprep.subr.bf16.mxu0 0
      %289 = vmatpush2.bf16.xpose.msra.mxu0 0
      %290 = vmatprep.subr.bf16.mxu0 0
      %291 = vmatpush2.bf16.xpose.msra.mxu0 0
      %292 = vmatprep.subr.bf16.mxu0 0
      %293 = vmatpush2.bf16.xpose.msra.mxu0 0
      %294 = vmatprep.subr.bf16.mxu0 0
      %295 = vmatpush2.bf16.xpose.msra.mxu0 0
      %296 = vmatprep.mubr.bf16.mxu0 0
      %297 = vmatmul.mubr.bf16.gmra.mxu0 %v259
      %v298 = vpop.f32.mrf.mxu0
      %v299 = vadd.f32 0.0, %v298
      %v300 = vpop.f32.mrf.mxu0
      %v301 = vpop.f32.mrf.mxu0
      %v302 = vadd.f32 0.0, %v301
      %v303 = vpop.f32.mrf.mxu0
      %304 = vdwg.mxu0
      %v305 = vmul.f32 %v299, 0.25
      %v306 = vmul.f32 %v302, 0.25
      %v307 = vsel %vm257, %v305, -inf
      %308 = vmax.xlane.f32.xlu0 %v307
      %v309 = vpop.xlane.xlu0 %308
      %v310 = vsel %vm257, %v306, -inf
      %311 = vmax.xlane.f32.xlu0 %v310
      %v312 = vpop.xlane.xlu0 %311
      %v313 = vmax.f32 %v243, %v309
      %v314 = vmax.f32 %v244, %v312
      %v315 = vsub.f32 %v243, %v313
      %v316 = vsub.f32 %v244, %v314
      %v317 = vmul.f32 %v315, 1.442695
      %v318 = vpow.pop %v317
      %v319 = vmul.f32 %v316, 1.442695
      %v320 = vpow.pop %v319
      %322 = vset.pattern.permute.xlu0 0
      %323 = vperm.xlu0 %322, %v313
      %v324 = vpop.permute.xlu0 %323
      %327 = vset.pattern.permute.xlu0 0
      %328 = vperm.xlu0 %327, %v314
      %v329 = vpop.permute.xlu0 %328
      %v331 = vsub.f32 %v305, %v324
      %v332 = vsub.f32 %v306, %v329
      %v333 = vmul.f32 %v331, 1.442695
      %v334 = vpow.pop %v333
      %v335 = vmul.f32 %v332, 1.442695
      %v336 = vpow.pop %v335
      %v337 = vmul.f32 %v318, %v245
      %v338 = vmul.f32 %v320, %v246
      %v339 = vsel %vm257, %v334, 0.0
      %340 = vadd.xlane.f32.xlu0 %v339
      %v341 = vpop.xlane.xlu0 %340
      %v342 = vsel %vm257, %v336, 0.0
      %343 = vadd.xlane.f32.xlu0 %v342
      %v344 = vpop.xlane.xlu0 %343
      %v345 = vadd.f32 %v337, %v341
      %v346 = vadd.f32 %v338, %v344
      %348 = vset.pattern.permute.xlu0 0
      %349 = vperm.xlu0 %348, %v318
      %v350 = vpop.permute.xlu0 %349
      %353 = vset.pattern.permute.xlu0 0
      %354 = vperm.xlu0 %353, %v320
      %v355 = vpop.permute.xlu0 %354
      %v357 = vpack.c.bf16 %v336, %v334
      %358 = vrot.lane.b32.xlu0 %v256, 64
      %v359 = vpop.permute.xlu0 %358
      %v362 = vsel %vm257, %v357, 0
      %364 = vmatprep.subr.bf16.mxu0 0
      %365 = vmatpush1.bf16.msra.mxu0 0
      %366 = vmatprep.subr.bf16.mxu0 0
      %367 = vmatpush1.bf16.msra.mxu0 0
      %368 = vmatprep.subr.bf16.mxu0 0
      %369 = vmatpush1.bf16.msra.mxu0 0
      %370 = vmatprep.subr.bf16.mxu0 0
      %371 = vmatpush1.bf16.msra.mxu0 0
      %372 = vmatprep.subr.bf16.mxu0 0
      %373 = vmatpush1.bf16.msra.mxu0 0
      %374 = vmatprep.subr.bf16.mxu0 0
      %375 = vmatpush1.bf16.msra.mxu0 0
      %376 = vmatprep.subr.bf16.mxu0 0
      %377 = vmatpush1.bf16.msra.mxu0 0
      %378 = vmatprep.subr.bf16.mxu0 0
      %379 = vmatpush1.bf16.msra.mxu0 %v359
      %380 = vmatprep.subr.bf16.mxu0 0
      %381 = vmatpush2.bf16.msra.mxu0 0
      %382 = vmatprep.subr.bf16.mxu0 0
      %383 = vmatpush2.bf16.msra.mxu0 0
      %384 = vmatprep.subr.bf16.mxu0 0
      %385 = vmatpush2.bf16.msra.mxu0 0
      %386 = vmatprep.subr.bf16.mxu0 0
      %387 = vmatpush2.bf16.msra.mxu0 0
      %388 = vmatprep.subr.bf16.mxu0 0
      %389 = vmatpush2.bf16.msra.mxu0 0
      %390 = vmatprep.subr.bf16.mxu0 0
      %391 = vmatpush2.bf16.msra.mxu0 0
      %392 = vmatprep.subr.bf16.mxu0 0
      %393 = vmatpush2.bf16.msra.mxu0 0
      %394 = vmatprep.subr.bf16.mxu0 0
      %395 = vmatpush2.bf16.msra.mxu0 0
      %396 = vmatprep.mubr.bf16.mxu0 0
      %397 = vmatmul.mubr.bf16.gmra.mxu0 %v362
      %v398 = vpop.f32.mrf.mxu0
      %v399 = vadd.f32 0.0, %v398
      %v400 = vpop.f32.mrf.mxu0
      %v401 = vpop.f32.mrf.mxu0
      %v402 = vadd.f32 0.0, %v401
      %v403 = vpop.f32.mrf.mxu0
      %404 = vdwg.mxu0
      %405 = vrot.lane.b32.xlu0 %v251, 112
      %v406 = vpop.permute.xlu0 %405
      %407 = vrot.lane.b32.xlu0 %v256, 112
      %v408 = vpop.permute.xlu0 %407
      %v410 = vsel %vm257, %v406, 0
      %v413 = vsel %vm257, %v408, 0
      %415 = vmatprep.subr.bf16.mxu0 0
      %416 = vmatpush1.bf16.xpose.msra.mxu0 0
      %417 = vmatprep.subr.bf16.mxu0 0
      %418 = vmatpush1.bf16.xpose.msra.mxu0 0
      %419 = vmatprep.subr.bf16.mxu0 0
      %420 = vmatpush1.bf16.xpose.msra.mxu0 0
      %421 = vmatprep.subr.bf16.mxu0 0
      %422 = vmatpush1.bf16.xpose.msra.mxu0 0
      %423 = vmatprep.subr.bf16.mxu0 0
      %424 = vmatpush1.bf16.xpose.msra.mxu0 0
      %425 = vmatprep.subr.bf16.mxu0 0
      %426 = vmatpush1.bf16.xpose.msra.mxu0 0
      %427 = vmatprep.subr.bf16.mxu0 0
      %428 = vmatpush1.bf16.xpose.msra.mxu0 0
      %429 = vmatprep.subr.bf16.mxu0 0
      %430 = vmatpush1.bf16.xpose.msra.mxu0 %v413
      %431 = vmatprep.subr.bf16.mxu0 0
      %432 = vmatpush2.bf16.xpose.msra.mxu0 0
      %433 = vmatprep.subr.bf16.mxu0 0
      %434 = vmatpush2.bf16.xpose.msra.mxu0 0
      %435 = vmatprep.subr.bf16.mxu0 0
      %436 = vmatpush2.bf16.xpose.msra.mxu0 0
      %437 = vmatprep.subr.bf16.mxu0 0
      %438 = vmatpush2.bf16.xpose.msra.mxu0 0
      %439 = vmatprep.subr.bf16.mxu0 0
      %440 = vmatpush2.bf16.xpose.msra.mxu0 0
      %441 = vmatprep.subr.bf16.mxu0 0
      %442 = vmatpush2.bf16.xpose.msra.mxu0 0
      %443 = vmatprep.subr.bf16.mxu0 0
      %444 = vmatpush2.bf16.xpose.msra.mxu0 0
      %445 = vmatprep.subr.bf16.mxu0 0
      %446 = vmatpush2.bf16.xpose.msra.mxu0 0
      %447 = vmatprep.mubr.bf16.mxu0 0
      %448 = vmatmul.mubr.bf16.gmra.mxu0 %v410
      %v449 = vpop.f32.mrf.mxu0
      %v450 = vadd.f32 0.0, %v449
      %v451 = vpop.f32.mrf.mxu0
      %v452 = vpop.f32.mrf.mxu0
      %v453 = vadd.f32 0.0, %v452
      %v454 = vpop.f32.mrf.mxu0
      %455 = vdwg.mxu0
      %v456 = vmul.f32 %v450, 0.25
      %v457 = vmul.f32 %v453, 0.25
      %v458 = vsel %vm257, %v456, -inf
      %459 = vmax.xlane.f32.xlu0 %v458
      %v460 = vpop.xlane.xlu0 %459
      %v461 = vsel %vm257, %v457, -inf
      %462 = vmax.xlane.f32.xlu0 %v461
      %v463 = vpop.xlane.xlu0 %462
      %v464 = vmax.f32 %v243, %v460
      %v465 = vmax.f32 %v244, %v463
      %v466 = vsub.f32 %v243, %v464
      %v467 = vsub.f32 %v244, %v465
      %v468 = vmul.f32 %v466, 1.442695
      %v469 = vpow.pop %v468
      %v470 = vmul.f32 %v467, 1.442695
      %v471 = vpow.pop %v470
      %473 = vset.pattern.permute.xlu0 1
      %474 = vperm.xlu0 %473, %v464
      %v475 = vpop.permute.xlu0 %474
      %478 = vset.pattern.permute.xlu0 1
      %479 = vperm.xlu0 %478, %v465
      %v480 = vpop.permute.xlu0 %479
      %v482 = vsub.f32 %v456, %v475
      %v483 = vsub.f32 %v457, %v480
      %v484 = vmul.f32 %v482, 1.442695
      %v485 = vpow.pop %v484
      %v486 = vmul.f32 %v483, 1.442695
      %v487 = vpow.pop %v486
      %v488 = vmul.f32 %v469, %v245
      %v489 = vmul.f32 %v471, %v246
      %v490 = vsel %vm257, %v485, 0.0
      %491 = vadd.xlane.f32.xlu0 %v490
      %v492 = vpop.xlane.xlu0 %491
      %v493 = vsel %vm257, %v487, 0.0
      %494 = vadd.xlane.f32.xlu0 %v493
      %v495 = vpop.xlane.xlu0 %494
      %v496 = vadd.f32 %v488, %v492
      %v497 = vadd.f32 %v489, %v495
      %499 = vset.pattern.permute.xlu0 1
      %500 = vperm.xlu0 %499, %v469
      %v501 = vpop.permute.xlu0 %500
      %504 = vset.pattern.permute.xlu0 1
      %505 = vperm.xlu0 %504, %v471
      %v506 = vpop.permute.xlu0 %505
      %v508 = vpack.c.bf16 %v487, %v485
      %509 = vrot.lane.b32.xlu0 %v256, 48
      %v510 = vpop.permute.xlu0 %509
      %v513 = vsel %vm257, %v508, 0
      %515 = vmatprep.subr.bf16.mxu0 0
      %516 = vmatpush1.bf16.msra.mxu0 0
      %517 = vmatprep.subr.bf16.mxu0 0
      %518 = vmatpush1.bf16.msra.mxu0 0
      %519 = vmatprep.subr.bf16.mxu0 0
      %520 = vmatpush1.bf16.msra.mxu0 0
      %521 = vmatprep.subr.bf16.mxu0 0
      %522 = vmatpush1.bf16.msra.mxu0 0
      %523 = vmatprep.subr.bf16.mxu0 0
      %524 = vmatpush1.bf16.msra.mxu0 0
      %525 = vmatprep.subr.bf16.mxu0 0
      %526 = vmatpush1.bf16.msra.mxu0 0
      %527 = vmatprep.subr.bf16.mxu0 0
      %528 = vmatpush1.bf16.msra.mxu0 0
      %529 = vmatprep.subr.bf16.mxu0 0
      %530 = vmatpush1.bf16.msra.mxu0 %v510
      %531 = vmatprep.subr.bf16.mxu0 0
      %532 = vmatpush2.bf16.msra.mxu0 0
      %533 = vmatprep.subr.bf16.mxu0 0
      %534 = vmatpush2.bf16.msra.mxu0 0
      %535 = vmatprep.subr.bf16.mxu0 0
      %536 = vmatpush2.bf16.msra.mxu0 0
      %537 = vmatprep.subr.bf16.mxu0 0
      %538 = vmatpush2.bf16.msra.mxu0 0
      %539 = vmatprep.subr.bf16.mxu0 0
      %540 = vmatpush2.bf16.msra.mxu0 0
      %541 = vmatprep.subr.bf16.mxu0 0
      %542 = vmatpush2.bf16.msra.mxu0 0
      %543 = vmatprep.subr.bf16.mxu0 0
      %544 = vmatpush2.bf16.msra.mxu0 0
      %545 = vmatprep.subr.bf16.mxu0 0
      %546 = vmatpush2.bf16.msra.mxu0 0
      %547 = vmatprep.mubr.bf16.mxu0 0
      %548 = vmatmul.mubr.bf16.gmra.mxu0 %v513
      %v549 = vpop.f32.mrf.mxu0
      %v550 = vadd.f32 0.0, %v549
      %v551 = vpop.f32.mrf.mxu0
      %v552 = vpop.f32.mrf.mxu0
      %v553 = vadd.f32 0.0, %v552
      %v554 = vpop.f32.mrf.mxu0
      %555 = vdwg.mxu0
      %556 = vrot.lane.b32.xlu0 %v251, 96
      %v557 = vpop.permute.xlu0 %556
      %558 = vrot.lane.b32.xlu0 %v256, 96
      %v559 = vpop.permute.xlu0 %558
      %v561 = vsel %vm257, %v557, 0
      %v564 = vsel %vm257, %v559, 0
      %566 = vmatprep.subr.bf16.mxu0 0
      %567 = vmatpush1.bf16.xpose.msra.mxu0 0
      %568 = vmatprep.subr.bf16.mxu0 0
      %569 = vmatpush1.bf16.xpose.msra.mxu0 0
      %570 = vmatprep.subr.bf16.mxu0 0
      %571 = vmatpush1.bf16.xpose.msra.mxu0 0
      %572 = vmatprep.subr.bf16.mxu0 0
      %573 = vmatpush1.bf16.xpose.msra.mxu0 0
      %574 = vmatprep.subr.bf16.mxu0 0
      %575 = vmatpush1.bf16.xpose.msra.mxu0 0
      %576 = vmatprep.subr.bf16.mxu0 0
      %577 = vmatpush1.bf16.xpose.msra.mxu0 0
      %578 = vmatprep.subr.bf16.mxu0 0
      %579 = vmatpush1.bf16.xpose.msra.mxu0 0
      %580 = vmatprep.subr.bf16.mxu0 0
      %581 = vmatpush1.bf16.xpose.msra.mxu0 %v564
      %582 = vmatprep.subr.bf16.mxu0 0
      %583 = vmatpush2.bf16.xpose.msra.mxu0 0
      %584 = vmatprep.subr.bf16.mxu0 0
      %585 = vmatpush2.bf16.xpose.msra.mxu0 0
      %586 = vmatprep.subr.bf16.mxu0 0
      %587 = vmatpush2.bf16.xpose.msra.mxu0 0
      %588 = vmatprep.subr.bf16.mxu0 0
      %589 = vmatpush2.bf16.xpose.msra.mxu0 0
      %590 = vmatprep.subr.bf16.mxu0 0
      %591 = vmatpush2.bf16.xpose.msra.mxu0 0
      %592 = vmatprep.subr.bf16.mxu0 0
      %593 = vmatpush2.bf16.xpose.msra.mxu0 0
      %594 = vmatprep.subr.bf16.mxu0 0
      %595 = vmatpush2.bf16.xpose.msra.mxu0 0
      %596 = vmatprep.subr.bf16.mxu0 0
      %597 = vmatpush2.bf16.xpose.msra.mxu0 0
      %598 = vmatprep.mubr.bf16.mxu0 0
      %599 = vmatmul.mubr.bf16.gmra.mxu0 %v561
      %v600 = vpop.f32.mrf.mxu0
      %v601 = vadd.f32 0.0, %v600
      %v602 = vpop.f32.mrf.mxu0
      %v603 = vpop.f32.mrf.mxu0
      %v604 = vadd.f32 0.0, %v603
      %v605 = vpop.f32.mrf.mxu0
      %606 = vdwg.mxu0
      %v607 = vmul.f32 %v601, 0.25
      %v608 = vmul.f32 %v604, 0.25
      %v609 = vsel %vm257, %v607, -inf
      %610 = vmax.xlane.f32.xlu0 %v609
      %v611 = vpop.xlane.xlu0 %610
      %v612 = vsel %vm257, %v608, -inf
      %613 = vmax.xlane.f32.xlu0 %v612
      %v614 = vpop.xlane.xlu0 %613
      %v615 = vmax.f32 %v243, %v611
      %v616 = vmax.f32 %v244, %v614
      %v617 = vsub.f32 %v243, %v615
      %v618 = vsub.f32 %v244, %v616
      %v619 = vmul.f32 %v617, 1.442695
      %v620 = vpow.pop %v619
      %v621 = vmul.f32 %v618, 1.442695
      %v622 = vpow.pop %v621
      %624 = vset.pattern.permute.xlu0 2
      %625 = vperm.xlu0 %624, %v615
      %v626 = vpop.permute.xlu0 %625
      %629 = vset.pattern.permute.xlu0 2
      %630 = vperm.xlu0 %629, %v616
      %v631 = vpop.permute.xlu0 %630
      %v633 = vsub.f32 %v607, %v626
      %v634 = vsub.f32 %v608, %v631
      %v635 = vmul.f32 %v633, 1.442695
      %v636 = vpow.pop %v635
      %v637 = vmul.f32 %v634, 1.442695
      %v638 = vpow.pop %v637
      %v639 = vmul.f32 %v620, %v245
      %v640 = vmul.f32 %v622, %v246
      %v641 = vsel %vm257, %v636, 0.0
      %642 = vadd.xlane.f32.xlu0 %v641
      %v643 = vpop.xlane.xlu0 %642
      %v644 = vsel %vm257, %v638, 0.0
      %645 = vadd.xlane.f32.xlu0 %v644
      %v646 = vpop.xlane.xlu0 %645
      %v647 = vadd.f32 %v639, %v643
      %v648 = vadd.f32 %v640, %v646
      %650 = vset.pattern.permute.xlu0 2
      %651 = vperm.xlu0 %650, %v620
      %v652 = vpop.permute.xlu0 %651
      %655 = vset.pattern.permute.xlu0 2
      %656 = vperm.xlu0 %655, %v622
      %v657 = vpop.permute.xlu0 %656
      %v659 = vpack.c.bf16 %v638, %v636
      %660 = vrot.lane.b32.xlu0 %v256, 32
      %v661 = vpop.permute.xlu0 %660
      %v664 = vsel %vm257, %v659, 0
      %666 = vmatprep.subr.bf16.mxu0 0
      %667 = vmatpush1.bf16.msra.mxu0 0
      %668 = vmatprep.subr.bf16.mxu0 0
      %669 = vmatpush1.bf16.msra.mxu0 0
      %670 = vmatprep.subr.bf16.mxu0 0
      %671 = vmatpush1.bf16.msra.mxu0 0
      %672 = vmatprep.subr.bf16.mxu0 0
      %673 = vmatpush1.bf16.msra.mxu0 0
      %674 = vmatprep.subr.bf16.mxu0 0
      %675 = vmatpush1.bf16.msra.mxu0 0
      %676 = vmatprep.subr.bf16.mxu0 0
      %677 = vmatpush1.bf16.msra.mxu0 0
      %678 = vmatprep.subr.bf16.mxu0 0
      %679 = vmatpush1.bf16.msra.mxu0 0
      %680 = vmatprep.subr.bf16.mxu0 0
      %681 = vmatpush1.bf16.msra.mxu0 %v661
      %682 = vmatprep.subr.bf16.mxu0 0
      %683 = vmatpush2.bf16.msra.mxu0 0
      %684 = vmatprep.subr.bf16.mxu0 0
      %685 = vmatpush2.bf16.msra.mxu0 0
      %686 = vmatprep.subr.bf16.mxu0 0
      %687 = vmatpush2.bf16.msra.mxu0 0
      %688 = vmatprep.subr.bf16.mxu0 0
      %689 = vmatpush2.bf16.msra.mxu0 0
      %690 = vmatprep.subr.bf16.mxu0 0
      %691 = vmatpush2.bf16.msra.mxu0 0
      %692 = vmatprep.subr.bf16.mxu0 0
      %693 = vmatpush2.bf16.msra.mxu0 0
      %694 = vmatprep.subr.bf16.mxu0 0
      %695 = vmatpush2.bf16.msra.mxu0 0
      %696 = vmatprep.subr.bf16.mxu0 0
      %697 = vmatpush2.bf16.msra.mxu0 0
      %698 = vmatprep.mubr.bf16.mxu0 0
      %699 = vmatmul.mubr.bf16.gmra.mxu0 %v664
      %v700 = vpop.f32.mrf.mxu0
      %v701 = vadd.f32 0.0, %v700
      %v702 = vpop.f32.mrf.mxu0
      %v703 = vpop.f32.mrf.mxu0
      %v704 = vadd.f32 0.0, %v703
      %v705 = vpop.f32.mrf.mxu0
      %706 = vdwg.mxu0
      %707 = vrot.lane.b32.xlu0 %v251, 80
      %v708 = vpop.permute.xlu0 %707
      %709 = vrot.lane.b32.xlu0 %v256, 80
      %v710 = vpop.permute.xlu0 %709
      %v712 = vsel %vm257, %v708, 0
      %v715 = vsel %vm257, %v710, 0
      %717 = vmatprep.subr.bf16.mxu0 0
      %718 = vmatpush1.bf16.xpose.msra.mxu0 0
      %719 = vmatprep.subr.bf16.mxu0 0
      %720 = vmatpush1.bf16.xpose.msra.mxu0 0
      %721 = vmatprep.subr.bf16.mxu0 0
      %722 = vmatpush1.bf16.xpose.msra.mxu0 0
      %723 = vmatprep.subr.bf16.mxu0 0
      %724 = vmatpush1.bf16.xpose.msra.mxu0 0
      %725 = vmatprep.subr.bf16.mxu0 0
      %726 = vmatpush1.bf16.xpose.msra.mxu0 0
      %727 = vmatprep.subr.bf16.mxu0 0
      %728 = vmatpush1.bf16.xpose.msra.mxu0 0
      %729 = vmatprep.subr.bf16.mxu0 0
      %730 = vmatpush1.bf16.xpose.msra.mxu0 0
      %731 = vmatprep.subr.bf16.mxu0 0
      %732 = vmatpush1.bf16.xpose.msra.mxu0 %v715
      %733 = vmatprep.subr.bf16.mxu0 0
      %734 = vmatpush2.bf16.xpose.msra.mxu0 0
      %735 = vmatprep.subr.bf16.mxu0 0
      %736 = vmatpush2.bf16.xpose.msra.mxu0 0
      %737 = vmatprep.subr.bf16.mxu0 0
      %738 = vmatpush2.bf16.xpose.msra.mxu0 0
      %739 = vmatprep.subr.bf16.mxu0 0
      %740 = vmatpush2.bf16.xpose.msra.mxu0 0
      %741 = vmatprep.subr.bf16.mxu0 0
      %742 = vmatpush2.bf16.xpose.msra.mxu0 0
      %743 = vmatprep.subr.bf16.mxu0 0
      %744 = vmatpush2.bf16.xpose.msra.mxu0 0
      %745 = vmatprep.subr.bf16.mxu0 0
      %746 = vmatpush2.bf16.xpose.msra.mxu0 0
      %747 = vmatprep.subr.bf16.mxu0 0
      %748 = vmatpush2.bf16.xpose.msra.mxu0 0
      %749 = vmatprep.mubr.bf16.mxu0 0
      %750 = vmatmul.mubr.bf16.gmra.mxu0 %v712
      %v751 = vpop.f32.mrf.mxu0
      %v752 = vadd.f32 0.0, %v751
      %v753 = vpop.f32.mrf.mxu0
      %v754 = vpop.f32.mrf.mxu0
      %v755 = vadd.f32 0.0, %v754
      %v756 = vpop.f32.mrf.mxu0
      %757 = vdwg.mxu0
      %v758 = vmul.f32 %v752, 0.25
      %v759 = vmul.f32 %v755, 0.25
      %v760 = vsel %vm257, %v758, -inf
      %761 = vmax.xlane.f32.xlu0 %v760
      %v762 = vpop.xlane.xlu0 %761
      %v763 = vsel %vm257, %v759, -inf
      %764 = vmax.xlane.f32.xlu0 %v763
      %v765 = vpop.xlane.xlu0 %764
      %v766 = vmax.f32 %v243, %v762
      %v767 = vmax.f32 %v244, %v765
      %v768 = vsub.f32 %v243, %v766
      %v769 = vsub.f32 %v244, %v767
      %v770 = vmul.f32 %v768, 1.442695
      %v771 = vpow.pop %v770
      %v772 = vmul.f32 %v769, 1.442695
      %v773 = vpow.pop %v772
      %775 = vset.pattern.permute.xlu0 3
      %776 = vperm.xlu0 %775, %v766
      %v777 = vpop.permute.xlu0 %776
      %780 = vset.pattern.permute.xlu0 3
      %781 = vperm.xlu0 %780, %v767
      %v782 = vpop.permute.xlu0 %781
      %v784 = vsub.f32 %v758, %v777
      %v785 = vsub.f32 %v759, %v782
      %v786 = vmul.f32 %v784, 1.442695
      %v787 = vpow.pop %v786
      %v788 = vmul.f32 %v785, 1.442695
      %v789 = vpow.pop %v788
      %v790 = vmul.f32 %v771, %v245
      %v791 = vmul.f32 %v773, %v246
      %v792 = vsel %vm257, %v787, 0.0
      %793 = vadd.xlane.f32.xlu0 %v792
      %v794 = vpop.xlane.xlu0 %793
      %v795 = vsel %vm257, %v789, 0.0
      %796 = vadd.xlane.f32.xlu0 %v795
      %v797 = vpop.xlane.xlu0 %796
      %v798 = vadd.f32 %v790, %v794
      %v799 = vadd.f32 %v791, %v797
      %801 = vset.pattern.permute.xlu0 3
      %802 = vperm.xlu0 %801, %v771
      %v803 = vpop.permute.xlu0 %802
      %806 = vset.pattern.permute.xlu0 3
      %807 = vperm.xlu0 %806, %v773
      %v808 = vpop.permute.xlu0 %807
      %v810 = vpack.c.bf16 %v789, %v787
      %811 = vrot.lane.b32.xlu0 %v256, 16
      %v812 = vpop.permute.xlu0 %811
      %v815 = vsel %vm257, %v810, 0
      %817 = vmatprep.subr.bf16.mxu0 0
      %818 = vmatpush1.bf16.msra.mxu0 0
      %819 = vmatprep.subr.bf16.mxu0 0
      %820 = vmatpush1.bf16.msra.mxu0 0
      %821 = vmatprep.subr.bf16.mxu0 0
      %822 = vmatpush1.bf16.msra.mxu0 0
      %823 = vmatprep.subr.bf16.mxu0 0
      %824 = vmatpush1.bf16.msra.mxu0 0
      %825 = vmatprep.subr.bf16.mxu0 0
      %826 = vmatpush1.bf16.msra.mxu0 0
      %827 = vmatprep.subr.bf16.mxu0 0
      %828 = vmatpush1.bf16.msra.mxu0 0
      %829 = vmatprep.subr.bf16.mxu0 0
      %830 = vmatpush1.bf16.msra.mxu0 0
      %831 = vmatprep.subr.bf16.mxu0 0
      %832 = vmatpush1.bf16.msra.mxu0 %v812
      %833 = vmatprep.subr.bf16.mxu0 0
      %834 = vmatpush2.bf16.msra.mxu0 0
      %835 = vmatprep.subr.bf16.mxu0 0
      %836 = vmatpush2.bf16.msra.mxu0 0
      %837 = vmatprep.subr.bf16.mxu0 0
      %838 = vmatpush2.bf16.msra.mxu0 0
      %839 = vmatprep.subr.bf16.mxu0 0
      %840 = vmatpush2.bf16.msra.mxu0 0
      %841 = vmatprep.subr.bf16.mxu0 0
      %842 = vmatpush2.bf16.msra.mxu0 0
      %843 = vmatprep.subr.bf16.mxu0 0
      %844 = vmatpush2.bf16.msra.mxu0 0
      %845 = vmatprep.subr.bf16.mxu0 0
      %846 = vmatpush2.bf16.msra.mxu0 0
      %847 = vmatprep.subr.bf16.mxu0 0
      %848 = vmatpush2.bf16.msra.mxu0 0
      %849 = vmatprep.mubr.bf16.mxu0 0
      %850 = vmatmul.mubr.bf16.gmra.mxu0 %v815
      %v851 = vpop.f32.mrf.mxu0
      %v852 = vadd.f32 0.0, %v851
      %v853 = vpop.f32.mrf.mxu0
      %v854 = vpop.f32.mrf.mxu0
      %v855 = vadd.f32 0.0, %v854
      %v856 = vpop.f32.mrf.mxu0
      %857 = vdwg.mxu0
      %vm858 = vcmask 7168
      %v859 = vsel %vm858, %v313, %v464
      %v860 = vsel %vm858, %v314, %v465
      %vm861 = vcmask 15360
      %v862 = vsel %vm861, %v859, %v615
      %v863 = vsel %vm861, %v860, %v616
      %vm864 = vcmask 23552
      %v865 = vsel %vm864, %v862, %v766
      %v866 = vsel %vm864, %v863, %v767
      %vm867 = vcmask 31744
      %868 = vst.msk [vmem:[#allocation2] sm:$0xff] %vm867, %v865
      %869 = vst.msk [vmem:[#allocation2 + $0x8] sm:$0xff] %vm867, %v866
      %v870 = vsel %vm858, %v345, %v496
      %v871 = vsel %vm858, %v346, %v497
      %v872 = vsel %vm861, %v870, %v647
      %v873 = vsel %vm861, %v871, %v648
      %v874 = vsel %vm864, %v872, %v798
      %v875 = vsel %vm864, %v873, %v799
      %876 = vst.msk [vmem:[#allocation3] sm:$0xff] %vm867, %v874
      %877 = vst.msk [vmem:[#allocation3 + $0x8] sm:$0xff] %vm867, %v875
      %v878 = vsel %vm257, %v350, %v501
      %v879 = vsel %vm257, %v355, %v506
      %vm880 = vcmask 261120
      %v881 = vsel %vm880, %v878, %v652
      %v882 = vsel %vm880, %v879, %v657
      %vm883 = vcmask 392192
      %v884 = vsel %vm883, %v881, %v803
      %v885 = vsel %vm883, %v882, %v808
      %v886 = vld [vmem:[#allocation4] sm:$0xff]
      %v887 = vld [vmem:[#allocation4 + $0x8] sm:$0xff]
      %v888 = vmul.f32 %v884, %v886
      %v889 = vmul.f32 %v885, %v887
      %892 = vrot.lane.b32.xlu0 %v550, 16
      %v893 = vpop.permute.xlu0 %892
      %894 = vrot.lane.b32.xlu0 %v553, 16
      %v895 = vpop.permute.xlu0 %894
      %900 = vrot.lane.b32.xlu0 %v701, 32
      %v901 = vpop.permute.xlu0 %900
      %902 = vrot.lane.b32.xlu0 %v704, 32
      %v903 = vpop.permute.xlu0 %902
      %908 = vrot.lane.b32.xlu0 %v852, 48
      %v909 = vpop.permute.xlu0 %908
      %910 = vrot.lane.b32.xlu0 %v855, 48
      %v911 = vpop.permute.xlu0 %910
      %v914 = vsel %vm257, %v399, %v893
      %v915 = vsel %vm257, %v402, %v895
      %v916 = vsel %vm880, %v914, %v901
      %v917 = vsel %vm880, %v915, %v903
      %v918 = vsel %vm883, %v916, %v909
      %v919 = vsel %vm883, %v917, %v911
      %v920 = vadd.f32 %v888, %v918
      %v921 = vadd.f32 %v889, %v919
      %vm922 = vcmask 523264
      %923 = vst.msk [vmem:[#allocation4] sm:$0xff] %vm922, %v920
      %924 = vst.msk [vmem:[#allocation4 + $0x8] sm:$0xff] %vm922, %v921
      // Predicated region
      $region33: #{fan_block_forward.8} parent=27 // pred_check
        %p925 = pneg %p227
      $region34: #{fan_block_forward.8} parent=27 // pred_check_branch
        %927 = sbr.rel (%p925) target = $region36
      $region35: #{fan_block_forward.8} parent=27 // pred_region
        %v928 = vld [vmem:[#allocation3] sm:$0xff]
        %v929 = vld [vmem:[#allocation3 + $0x8] sm:$0xff]
        %v930 = vrcp.pop %v928
        %v931 = vrcp.pop %v929
        %933 = vset.pattern.permute.xlu0 0
        %934 = vperm.xlu0 %933, %v930
        %v935 = vpop.permute.xlu0 %934
        %938 = vset.pattern.permute.xlu0 0
        %939 = vperm.xlu0 %938, %v931
        %v940 = vpop.permute.xlu0 %939
        %942 = vset.pattern.permute.xlu0 1
        %943 = vperm.xlu0 %942, %v930
        %v944 = vpop.permute.xlu0 %943
        %946 = vset.pattern.permute.xlu0 1
        %947 = vperm.xlu0 %946, %v931
        %v948 = vpop.permute.xlu0 %947
        %950 = vset.pattern.permute.xlu0 2
        %951 = vperm.xlu0 %950, %v930
        %v952 = vpop.permute.xlu0 %951
        %954 = vset.pattern.permute.xlu0 2
        %955 = vperm.xlu0 %954, %v931
        %v956 = vpop.permute.xlu0 %955
        %958 = vset.pattern.permute.xlu0 3
        %959 = vperm.xlu0 %958, %v930
        %v960 = vpop.permute.xlu0 %959
        %962 = vset.pattern.permute.xlu0 3
        %963 = vperm.xlu0 %962, %v931
        %v964 = vpop.permute.xlu0 %963
        %v966 = vsel %vm257, %v935, %v944
        %v967 = vsel %vm257, %v940, %v948
        %v968 = vsel %vm880, %v966, %v952
        %v969 = vsel %vm880, %v967, %v956
        %v970 = vsel %vm883, %v968, %v960
        %v971 = vsel %vm883, %v969, %v964
        %v972 = vld [vmem:[#allocation4] sm:$0xff]
        %v973 = vld [vmem:[#allocation4 + $0x8] sm:$0xff]
        %v974 = vmul.f32 %v972, %v970
        %v975 = vmul.f32 %v973, %v971
        %v976 = vpack.c.bf16 %v975, %v974
        %v978 = vunpack.c.l.b16 %v976
        %v979 = vunpack.c.h.b16 %v976
        %v980 = vpack.c.b16 %v978, %v978
        %v981 = vpack.c.b16 %v979, %v979
        %vm984 = vcmask 519168
        %985 = vst.msk [vmem:[%s224] sm:$0xf] %vm984, %v980
        %986 = vst.msk [vmem:[%s224 + $0x4] sm:$0xf] %vm984, %v981
      $region36: #{fan_block_forward.8} parent=27 // pred_fallthru
        _
      %s987 = smul.u32 2, %s19
      %p988 = scmp.lt.s32.totalorder %s18, 1
      %s989 = scalar_select %p988, %s18, 1
      %p990 = scmp.lt.s32.totalorder %s987, 1
      %s991 = scalar_select %p990, %s987, 1
      %s992 = smul.addr %s989, 2
      %s993 = sadd.s32 %s991, %s992
      %s994 = smul.addr %s993, 4
      %s995 = scalar_lea.vmem %s2, %s994
      // Predicated region
      $region37: #{fan_block_forward.8} parent=27 // pred_check
        %p996 = pneg %p108
      $region38: #{fan_block_forward.8} parent=27 // pred_check_branch
        %998 = sbr.rel (%p996) target = $region40
      $region39: #{fan_block_forward.8} parent=27 // pred_region
        %s999 = smul.u32 2, %s19
      $region40: #{fan_block_forward.8} parent=27 // pred_fallthru
        _
    $region28: #{fan_block_forward.8} parent=5 // pred_fallthru
      _
    %p1000 = scmp.le.s32.totalorder 2, %s8
    // Predicated region
    $region41: #{fan_block_forward.8} parent=5 // pred_check
      %p1001 = pneg %p1000
    $region42: #{fan_block_forward.8} parent=5 // pred_check_branch
      %1003 = sbr.rel (%p1001) target = $region44
    $region43: #{fan_block_forward.8} parent=5 // pred_region
      %s1004 = ssub.s32 %s8, 2
      // Predicated region
      $region45: #{fan_block_forward.8} parent=43 // pred_check
        %p1005 = pneg %p114
      $region46: #{fan_block_forward.8} parent=43 // pred_check_branch
        %1007 = sbr.rel (%p1005) target = $region48
      $region47: #{fan_block_forward.8} parent=43 // pred_region
        %s1008 = smul.u32 2, %s22
        %p1009 = scmp.lt.s32.totalorder %s21, 1
        %s1010 = scalar_select %p1009, %s21, 1
        %p1011 = scmp.lt.s32.totalorder %s1008, 1
        %s1012 = scalar_select %p1011, %s1008, 1
        %s1013 = smul.addr %s1010, 2
        %s1014 = sadd.s32 %s1012, %s1013
        %s1015 = smul.addr %s1014, 4
        %s1016 = scalar_lea.vmem %s2, %s1015
      $region48: #{fan_block_forward.8} parent=43 // pred_fallthru
        _
    $region44: #{fan_block_forward.8} parent=5 // pred_fallthru
      _
  $region6: #{fan_block_forward.8} parent=0 // loop_footer
    %s12 = sadd.s32 1, %s8
  $region7: #{fan_block_forward.8} parent=0 // loop_footer_branch
    %7 = sbr.rel target = $region3
  $region8: #{fan_block_forward.8} parent=0 // loop_exit
    _

// kernel: fan_block_forward.11
$region0: #{fan_block_forward.11}
  #allocation0 [shape = 'u32[]', space=smem, size = 0x4, offset = 0x4, fixed_abs, tag = 'smem constant byte address 0x4 - core index']
  #allocation1 [shape = 'u32[144,128]{1,0:T(1,128)}', space=vmem, size = 0x12000, scoped, tag = 'internal scratch']
  %s0 = inlined_call_operand.vmem [shape: f32[2,16,64], index: 0, kind: input, shape index: {}]
  %s1 = inlined_call_operand.vmem [shape: f32[2,16,64], index: 1, kind: input, shape index: {}]
  %s2 = inlined_call_operand.vmem [shape: f32[1,1,64], index: 2, kind: input, shape index: {}]
  %s3 = inlined_call_operand.vmem [shape: f32[2,1,64], index: 3, kind: output, shape index: {}]
  %s4 = sld [smem:[#allocation0]]
  $region45: #{fan_block_forward.11} parent=0
    _
  %s6 = ssub.s32 1, %s4
  %s7 = scalar_select 0, %s6, %s4
  loop: start=0, step=1, limit=4
  $region2: #{fan_block_forward.11} parent=0 // loop_pre_header
    _
  $region3: #{fan_block_forward.11} parent=0 // loop_header
    %s9 = sphi 0, %s13
    %p10 = scmp.ge.s32.totalorder %s9, 4
    %s19 = sphi 0, %s21
    %s22 = sphi 0, %s19
    %s23 = sphi 0, %s22
    %s39 = sphi 0, %s23
    %s45 = sphi 0, %s47
    %s48 = sphi 0, %s45
    %s49 = sphi 0, %s48
    %s65 = sphi 0, %s49
    %s69 = sphi 0, %s69
    %s71 = sphi 0, %s69
    %s72 = sphi 0, %s71
    %s86 = sphi 0, %s72
    %s92 = sphi 0, %s94
    %s95 = sphi 0, %s92
    %s96 = sphi 0, %s95
    %s112 = sphi 0, %s96
  $region4: #{fan_block_forward.11} parent=0 // loop_header_branch
    %12 = sbr.rel (%p10) target = $region8
  $region5: #{fan_block_forward.11} parent=0 // loop_body
    %s14 = ssub.s32 %s9, 1
    %s15 = ssub.s32 %s9, 2
    %s16 = sadd.s32 %s9, 1
    %s17 = ssub.s32 %s9, %s16
    %p18 = scmp.eq.s32.totalorder %s17, 0
    %s20 = sadd.s32 %s19, 1
    %s21 = scalar_select %p18, %s19, %s20
    %p24 = pneg %p18
    %p25 = scmp.eq.s32.totalorder %s9, 1
    %p26 = por %p24, %p25
    %p27 = scmp.ne.s32.totalorder %s19, %s22
    %p28 = scmp.eq.s32.totalorder %s9, 0
    %p29 = por %p27, %p28
    %p30 = scmp.ne.s32.totalorder %s19, %s22
    %p31 = scmp.eq.s32.totalorder %s14, 1
    %p32 = por %p30, %p31
    %p33 = scmp.ne.s32.totalorder %s22, %s23
    %p34 = scmp.eq.s32.totalorder %s14, 0
    %p35 = por %p33, %p34
    %p36 = scmp.ne.s32.totalorder %s22, %s23
    %p37 = scmp.eq.s32.totalorder %s15, 1
    %p38 = por %p36, %p37
    %p40 = scmp.ne.s32.totalorder %s23, %s39
    %p41 = scmp.eq.s32.totalorder %s15, 0
    %p42 = por %p40, %p41
    %s43 = ssub.s32 %s9, %s16
    %p44 = scmp.eq.s32.totalorder %s43, 0
    %s46 = sadd.s32 %s45, 1
    %s47 = scalar_select %p44, %s45, %s46
    %p50 = pneg %p44
    %p51 = scmp.eq.s32.totalorder %s9, 1
    %p52 = por %p50, %p51
    %p53 = scmp.ne.s32.totalorder %s45, %s48
    %p54 = scmp.eq.s32.totalorder %s9, 0
    %p55 = por %p53, %p54
    %p56 = scmp.ne.s32.totalorder %s45, %s48
    %p57 = scmp.eq.s32.totalorder %s14, 1
    %p58 = por %p56, %p57
    %p59 = scmp.ne.s32.totalorder %s48, %s49
    %p60 = scmp.eq.s32.totalorder %s14, 0
    %p61 = por %p59, %p60
    %p62 = scmp.ne.s32.totalorder %s48, %s49
    %p63 = scmp.eq.s32.totalorder %s15, 1
    %p64 = por %p62, %p63
    %p66 = scmp.ne.s32.totalorder %s49, %s65
    %p67 = scmp.eq.s32.totalorder %s15, 0
    %p68 = por %p66, %p67
    %s70 = sadd.s32 %s69, 1
    %p73 = scmp.eq.s32.totalorder %s9, 1
    %p74 = scmp.ne.s32.totalorder %s69, %s71
    %p75 = scmp.eq.s32.totalorder %s9, 0
    %p76 = por %p74, %p75
    %p77 = scmp.ne.s32.totalorder %s69, %s71
    %p78 = scmp.eq.s32.totalorder %s14, 1
    %p79 = por %p77, %p78
    %p80 = scmp.ne.s32.totalorder %s71, %s72
    %p81 = scmp.eq.s32.totalorder %s14, 0
    %p82 = por %p80, %p81
    %p83 = scmp.ne.s32.totalorder %s71, %s72
    %p84 = scmp.eq.s32.totalorder %s15, 1
    %p85 = por %p83, %p84
    %p87 = scmp.ne.s32.totalorder %s72, %s86
    %p88 = scmp.eq.s32.totalorder %s15, 0
    %p89 = por %p87, %p88
    %s90 = ssub.s32 %s9, %s16
    %p91 = scmp.eq.s32.totalorder %s90, 0
    %s93 = sadd.s32 %s92, 1
    %s94 = scalar_select %p91, %s92, %s93
    %p97 = pneg %p91
    %p98 = scmp.eq.s32.totalorder %s9, 1
    %p99 = por %p97, %p98
    %p100 = scmp.ne.s32.totalorder %s92, %s95
    %p101 = scmp.eq.s32.totalorder %s9, 0
    %p102 = por %p100, %p101
    %p103 = scmp.ne.s32.totalorder %s92, %s95
    %p104 = scmp.eq.s32.totalorder %s14, 1
    %p105 = por %p103, %p104
    %p106 = scmp.ne.s32.totalorder %s95, %s96
    %p107 = scmp.eq.s32.totalorder %s14, 0
    %p108 = por %p106, %p107
    %p109 = scmp.ne.s32.totalorder %s95, %s96
    %p110 = scmp.eq.s32.totalorder %s15, 1
    %p111 = por %p109, %p110
    %p113 = scmp.ne.s32.totalorder %s96, %s112
    %p114 = scmp.eq.s32.totalorder %s15, 0
    %p115 = por %p113, %p114
    %p116 = scmp.le.s32.totalorder 1, %s9
    %p117 = scmp.lt.s32.totalorder %s9, 3
    %p118 = pnand %p116, %p117
    %p119 = pneg %p118
    // Predicated region
    $region9: #{fan_block_forward.11} parent=5 // pred_check
      _
    $region10: #{fan_block_forward.11} parent=5 // pred_check_branch
      %121 = sbr.rel (%p118) target = $region12
    $region11: #{fan_block_forward.11} parent=5 // pred_region
      %s122 = ssub.s32 %s9, 1
      // Predicated region
      $region13: #{fan_block_forward.11} parent=11 // pred_check
        %p123 = pneg %p82
      $region14: #{fan_block_forward.11} parent=11 // pred_check_branch
        %125 = sbr.rel (%p123) target = $region16
      $region15: #{fan_block_forward.11} parent=11 // pred_region
        _
      $region16: #{fan_block_forward.11} parent=11 // pred_fallthru
        _
    $region12: #{fan_block_forward.11} parent=5 // pred_fallthru
      _
    %p126 = scmp.lt.s32.totalorder %s9, 2
    // Predicated region
    $region17: #{fan_block_forward.11} parent=5 // pred_check
      %p127 = pneg %p126
    $region18: #{fan_block_forward.11} parent=5 // pred_check_branch
      %129 = sbr.rel (%p127) target = $region20
    $region19: #{fan_block_forward.11} parent=5 // pred_region
      // Predicated region
      $region21: #{fan_block_forward.11} parent=19 // pred_check
        %p130 = pneg %p29
      $region22: #{fan_block_forward.11} parent=19 // pred_check_branch
        %132 = sbr.rel (%p130) target = $region24
      $region23: #{fan_block_forward.11} parent=19 // pred_region
        %p133 = scmp.lt.s32.totalorder %s9, 1
        %s134 = scalar_select %p133, %s9, 1
        %s135 = smul.addr %s134, 2
        %s136 = smul.addr %s135, 8
        %s137 = scalar_lea.vmem %s0, %s136
      $region24: #{fan_block_forward.11} parent=19 // pred_fallthru
        _
      // Predicated region
      $region25: #{fan_block_forward.11} parent=19 // pred_check
        %p138 = pneg %p55
      $region26: #{fan_block_forward.11} parent=19 // pred_check_branch
        %140 = sbr.rel (%p138) target = $region28
      $region27: #{fan_block_forward.11} parent=19 // pred_region
        %p141 = scmp.lt.s32.totalorder %s9, 1
        %s142 = scalar_select %p141, %s9, 1
        %s143 = smul.addr %s142, 2
        %s144 = smul.addr %s143, 8
        %s145 = scalar_lea.vmem %s1, %s144
      $region28: #{fan_block_forward.11} parent=19 // pred_fallthru
        _
    $region20: #{fan_block_forward.11} parent=5 // pred_fallthru
      _
    %p146 = scmp.le.s32.totalorder 1, %s9
    %p147 = scmp.lt.s32.totalorder %s9, 3
    %p148 = pnand %p146, %p147
    %p149 = pneg %p148
    // Predicated region
    $region29: #{fan_block_forward.11} parent=5 // pred_check
      _
    $region30: #{fan_block_forward.11} parent=5 // pred_check_branch
      %151 = sbr.rel (%p148) target = $region32
    $region31: #{fan_block_forward.11} parent=5 // pred_region
      %s152 = ssub.s32 %s9, 1
      %p153 = scmp.lt.s32.totalorder %s14, 1
      %s154 = scalar_select %p153, %s14, 1
      %s155 = smul.addr %s154, 2
      %s156 = smul.addr %s155, 8
      %s157 = scalar_lea.vmem %s0, %s156
      %p158 = pneg %p35
      %p159 = pneg %p32
      %p160 = scmp.lt.s32.totalorder %s14, 1
      %s161 = scalar_select %p160, %s14, 1
      %s162 = smul.addr %s161, 2
      %s163 = smul.addr %s162, 8
      %s164 = scalar_lea.vmem %s1, %s163
      %p165 = pneg %p61
      %p166 = pneg %p58
      %p167 = pneg %p82
      %p168 = pneg %p79
      %p169 = pneg %p108
      %p170 = pneg %p105
      %p171 = scmp.lt.s32.totalorder %s14, 1
      %s172 = scalar_select %p171, %s14, 1
      %s173 = scalar_lea.vmem %s3, %s172
      %p174 = scmp.lt.s32.totalorder %s14, 1
      %s175 = scalar_select %p174, %s14, 1
      %s176 = smul.addr %s175, 2
      %s177 = smul.addr %s176, 8
      %s178 = scalar_lea.vmem %s0, %s177
      %p179 = scmp.lt.s32.totalorder %s14, 1
      %s180 = scalar_select %p179, %s14, 1
      %s181 = smul.addr %s180, 2
      %s182 = smul.addr %s181, 8
      %s183 = scalar_lea.vmem %s1, %s182
      %p184 = scmp.lt.s32.totalorder %s14, 1
      %s185 = scalar_select %p184, %s14, 1
      %s186 = scalar_lea.vmem %s3, %s185
      %v187 = vld [vmem:[%s178] sm:$0xff]
      %v188 = vld [vmem:[%s178 + $0x8] sm:$0xff]
      %v189 = vld [vmem:[%s183] sm:$0xff]
      %v190 = vld [vmem:[%s183 + $0x8] sm:$0xff]
      %vm191 = vcmask 523264
      %v192 = vsel %vm191, %v187, -inf
      %v193 = vsel %vm191, %v188, -inf
      %v194 = vmax.f32 %v192, %v193
      %v195 = vrot.slane %v194, 4
      %v196 = vmax.f32 %v194, %v195
      %v197 = vrot.slane %v196, 2
      %v198 = vmax.f32 %v196, %v197
      %v199 = vrot.slane %v198, 1
      %v200 = vmax.f32 %v198, %v199
      %v201 = vsub.f32 %v187, %v200
      %v202 = vsub.f32 %v188, %v200
      %v203 = vmul.f32 %v201, 1.442695
      %v204 = vpow.pop %v203
      %v205 = vmul.f32 %v202, 1.442695
      %v206 = vpow.pop %v205
      %v207 = vsel %vm191, %v204, 0.0
      %v208 = vsel %vm191, %v206, 0.0
      %v209 = vadd.f32 %v207, %v208
      %v210 = vrot.slane %v209, 4
      %v211 = vadd.f32 %v209, %v210
      %v212 = vrot.slane %v211, 2
      %v213 = vadd.f32 %v211, %v212
      %v214 = vrot.slane %v213, 1
      %v215 = vadd.f32 %v213, %v214
      %v216 = vrcp.pop %v215
      %v217 = vmul.f32 %v204, %v216
      %v218 = vmul.f32 %v206, %v216
      %v219 = vsel %vm191, %v189, -inf
      %v220 = vsel %vm191, %v190, -inf
      %v221 = vmax.f32 %v219, %v220
      %v222 = vrot.slane %v221, 4
      %v223 = vmax.f32 %v221, %v222
      %v224 = vrot.slane %v223, 2
      %v225 = vmax.f32 %v223, %v224
      %v226 = vrot.slane %v225, 1
      %v227 = vmax.f32 %v225, %v226
      %v228 = vsub.f32 %v189, %v227
      %v229 = vsub.f32 %v190, %v227
      %v230 = vmul.f32 %v228, 1.442695
      %v231 = vpow.pop %v230
      %v232 = vmul.f32 %v229, 1.442695
      %v233 = vpow.pop %v232
      %v234 = vsel %vm191, %v231, 0.0
      %v235 = vsel %vm191, %v233, 0.0
      %v236 = vadd.f32 %v234, %v235
      %v237 = vrot.slane %v236, 4
      %v238 = vadd.f32 %v236, %v237
      %v239 = vrot.slane %v238, 2
      %v240 = vadd.f32 %v238, %v239
      %v241 = vrot.slane %v240, 1
      %v242 = vadd.f32 %v240, %v241
      %v243 = vrcp.pop %v242
      %v244 = vmul.f32 %v231, %v243
      %v245 = vmul.f32 %v233, %v243
      %vm246 = vcmask 130048
      %v247 = vsel %vm246, %v244, 0.0
      %248 = vadd.xlane.f32.xlu0 %v247
      %v249 = vpop.xlane.xlu0 %248
      %v250 = vsel %vm246, %v245, 0.0
      %251 = vadd.xlane.f32.xlu0 %v250
      %v252 = vpop.xlane.xlu0 %251
      %v253 = vrcp.pop 16.0
      %v254 = vmul.f32 %v249, %v253
      %v255 = vmul.f32 %v252, %v253
      %v256 = vmul.f32 %v217, %v254
      %v257 = vmul.f32 %v218, %v255
      %v258 = vsel %vm246, %v256, 0.0
      %v259 = vsel %vm246, %v257, 0.0
      %v260 = vadd.f32 %v258, %v259
      %v261 = vrot.slane %v260, 4
      %v262 = vadd.f32 %v260, %v261
      %v263 = vrot.slane %v262, 2
      %v264 = vadd.f32 %v262, %v263
      %v265 = vrot.slane %v264, 1
      %v266 = vadd.f32 %v264, %v265
      %269 = vrot.lane.b32.xlu0 %v244, 112
      %v270 = vpop.permute.xlu0 %269
      %271 = vrot.lane.b32.xlu0 %v245, 112
      %v272 = vpop.permute.xlu0 %271
      %v275 = vsel %vm246, %v270, 0.0
      %276 = vadd.xlane.f32.xlu0 %v275
      %v277 = vpop.xlane.xlu0 %276
      %v278 = vsel %vm246, %v272, 0.0
      %279 = vadd.xlane.f32.xlu0 %v278
      %v280 = vpop.xlane.xlu0 %279
      %v281 = vmul.f32 %v277, %v253
      %v282 = vmul.f32 %v280, %v253
      %v283 = vmul.f32 %v217, %v281
      %v284 = vmul.f32 %v218, %v282
      %vm285 = vcmask 261248
      %v286 = vsel %vm285, %v283, 0.0
      %v287 = vsel %vm285, %v284, 0.0
      %v288 = vadd.f32 %v286, %v287
      %v289 = vrot.slane %v288, 4
      %v290 = vadd.f32 %v288, %v289
      %v291 = vrot.slane %v290, 2
      %v292 = vadd.f32 %v290, %v291
      %v293 = vrot.slane %v292, 1
      %v294 = vadd.f32 %v292, %v293
      %295 = vrot.lane.b32.xlu0 %v244, 96
      %v296 = vpop.permute.xlu0 %295
      %297 = vrot.lane.b32.xlu0 %v245, 96
      %v298 = vpop.permute.xlu0 %297
      %v301 = vsel %vm246, %v296, 0.0
      %302 = vadd.xlane.f32.xlu0 %v301
      %v303 = vpop.xlane.xlu0 %302
      %v304 = vsel %vm246, %v298, 0.0
      %305 = vadd.xlane.f32.xlu0 %v304
      %v306 = vpop.xlane.xlu0 %305
      %v307 = vmul.f32 %v303, %v253
      %v308 = vmul.f32 %v306, %v253
      %v309 = vmul.f32 %v217, %v307
      %v310 = vmul.f32 %v218, %v308
      %vm311 = vcmask 392448
      %v312 = vsel %vm311, %v309, 0.0
      %v313 = vsel %vm311, %v310, 0.0
      %v314 = vadd.f32 %v312, %v313
      %v315 = vrot.slane %v314, 4
      %v316 = vadd.f32 %v314, %v315
      %v317 = vrot.slane %v316, 2
      %v318 = vadd.f32 %v316, %v317
      %v319 = vrot.slane %v318, 1
      %v320 = vadd.f32 %v318, %v319
      %321 = vrot.lane.b32.xlu0 %v244, 80
      %v322 = vpop.permute.xlu0 %321
      %323 = vrot.lane.b32.xlu0 %v245, 80
      %v324 = vpop.permute.xlu0 %323
      %v327 = vsel %vm246, %v322, 0.0
      %328 = vadd.xlane.f32.xlu0 %v327
      %v329 = vpop.xlane.xlu0 %328
      %v330 = vsel %vm246, %v324, 0.0
      %331 = vadd.xlane.f32.xlu0 %v330
      %v332 = vpop.xlane.xlu0 %331
      %v333 = vmul.f32 %v329, %v253
      %v334 = vmul.f32 %v332, %v253
      %v335 = vmul.f32 %v217, %v333
      %v336 = vmul.f32 %v218, %v334
      %vm337 = vcmask 523648
      %v338 = vsel %vm337, %v335, 0.0
      %v339 = vsel %vm337, %v336, 0.0
      %v340 = vadd.f32 %v338, %v339
      %v341 = vrot.slane %v340, 4
      %v342 = vadd.f32 %v340, %v341
      %v343 = vrot.slane %v342, 2
      %v344 = vadd.f32 %v342, %v343
      %v345 = vrot.slane %v344, 1
      %v346 = vadd.f32 %v344, %v345
      %v347 = vsel %vm246, %v266, %v294
      %vm348 = vcmask 261120
      %v349 = vsel %vm348, %v347, %v320
      %vm350 = vcmask 392192
      %v351 = vsel %vm350, %v349, %v346
      %v352 = vxor.u32 %v351, 2147483648
      %v353 = vmul.f32 %v352, 1.442695
      %v354 = vpow.pop %v353
      %v355 = vadd.f32 %v354, 1.0
      %v356 = vrcp.pop %v355
      %v357 = vmul.f32 1.0, %v356
      %v358 = vld [vmem:[%s2] sm:$0x1]
      %v359 = vmul.f32 %v357, %v358
      %vm360 = vcmask 516096
      %361 = vst.msk [vmem:[%s186] sm:$0x1] %vm360, %v359
      %p362 = scmp.lt.s32.totalorder %s14, 1
      %s363 = scalar_select %p362, %s14, 1
      %s364 = scalar_lea.vmem %s3, %s363
      // Predicated region
      $region33: #{fan_block_forward.11} parent=31 // pred_check
        %p365 = pneg %p105
      $region34: #{fan_block_forward.11} parent=31 // pred_check_branch
        %367 = sbr.rel (%p365) target = $region36
      $region35: #{fan_block_forward.11} parent=31 // pred_region
        _
      $region36: #{fan_block_forward.11} parent=31 // pred_fallthru
        _
    $region32: #{fan_block_forward.11} parent=5 // pred_fallthru
      _
    %p368 = scmp.le.s32.totalorder 2, %s9
    // Predicated region
    $region37: #{fan_block_forward.11} parent=5 // pred_check
      %p369 = pneg %p368
    $region38: #{fan_block_forward.11} parent=5 // pred_check_branch
      %371 = sbr.rel (%p369) target = $region40
    $region39: #{fan_block_forward.11} parent=5 // pred_region
      %s372 = ssub.s32 %s9, 2
      // Predicated region
      $region41: #{fan_block_forward.11} parent=39 // pred_check
        %p373 = pneg %p111
      $region42: #{fan_block_forward.11} parent=39 // pred_check_branch
        %375 = sbr.rel (%p373) target = $region44
      $region43: #{fan_block_forward.11} parent=39 // pred_region
        %p376 = scmp.lt.s32.totalorder %s15, 1
        %s377 = scalar_select %p376, %s15, 1
        %s378 = scalar_lea.vmem %s3, %s377
      $region44: #{fan_block_forward.11} parent=39 // pred_fallthru
        _
    $region40: #{fan_block_forward.11} parent=5 // pred_fallthru
      _
  $region6: #{fan_block_forward.11} parent=0 // loop_footer
    %s13 = sadd.s32 1, %s9
  $region7: #{fan_block_forward.11} parent=0 // loop_footer_branch
    %8 = sbr.rel target = $region3
  $region8: #{fan_block_forward.11} parent=0 // loop_exit
    _

// kernel: fan_block_forward.13
$region0: #{fan_block_forward.13}
  #allocation0 [shape = 'u32[]', space=smem, size = 0x4, offset = 0x4, fixed_abs, tag = 'smem constant byte address 0x4 - core index']
  #allocation1 [shape = 'u32[144,128]{1,0:T(1,128)}', space=vmem, size = 0x12000, scoped, tag = 'internal scratch']
  %s0 = inlined_call_operand.vmem [shape: f32[32,256], index: 0, kind: input, shape index: {}]
  %s1 = inlined_call_operand.vmem [shape: bf16[256,64], index: 1, kind: input, shape index: {}]
  %s2 = inlined_call_operand.vmem [shape: f32[1,64], index: 2, kind: input, shape index: {}]
  %s3 = inlined_call_operand.vmem [shape: f32[1,64], index: 3, kind: input, shape index: {}]
  %s4 = inlined_call_operand.vmem [shape: f32[1,64], index: 4, kind: input, shape index: {}]
  %s5 = inlined_call_operand.vmem [shape: f32[2,1,64], index: 5, kind: input, shape index: {}]
  %s6 = inlined_call_operand.vmem [shape: f32[32,64], index: 6, kind: input, shape index: {}]
  %s7 = inlined_call_operand.vmem [shape: f32[1,64], index: 7, kind: input, shape index: {}]
  %s8 = inlined_call_operand.hbm [shape: f32[32,64], index: 8, kind: output, shape index: {}]
  %s9 = sld [smem:[#allocation0]]
  $region65: #{fan_block_forward.13} parent=0
    _
  %s11 = ssub.s32 1, %s9
  %s12 = scalar_select 0, %s11, %s9
  $region1: #{fan_block_forward.13} parent=0
    #allocation2 [shape = 'u8[16384]{0}', space=vmem, size = 0x4000, scoped, tag = 'output window, operand 0']
    #allocation3 [shape = 's32[2]{0}', space=sflag, size = 0x8, scoped, tag = 'scoped memory for fan_block_forward.13']
    %13 = vsyncpa [#allocation3], 0
    %s14 = scalar_lea.sflag [#allocation3], 1
    %15 = vsyncpa %s14, 0
    loop: start=0, step=1, limit=4
    $region2: #{fan_block_forward.13} parent=1 // loop_pre_header
      _
    $region3: #{fan_block_forward.13} parent=1 // loop_header
      %s17 = sphi 0, %s21
      %p18 = scmp.ge.s32.totalorder %s17, 4
      %s24 = sphi 0, %s36
      %s25 = sphi 0, %s32
      %s26 = sphi 0, %s24
      %s27 = sphi 0, %s25
      %s28 = sphi 0, %s26
      %s29 = sphi 0, %s27
      %s41 = sphi 0, %s43
      %s44 = sphi 0, %s41
      %s45 = sphi 0, %s44
      %s61 = sphi 0, %s45
      %s65 = sphi 0, %s65
      %s67 = sphi 0, %s65
      %s68 = sphi 0, %s67
      %s82 = sphi 0, %s68
      %s86 = sphi 0, %s86
      %s88 = sphi 0, %s86
      %s89 = sphi 0, %s88
      %s103 = sphi 0, %s89
      %s107 = sphi 0, %s107
      %s109 = sphi 0, %s107
      %s110 = sphi 0, %s109
      %s124 = sphi 0, %s110
      %s128 = sphi 0, %s128
      %s130 = sphi 0, %s128
      %s131 = sphi 0, %s130
      %s145 = sphi 0, %s131
      %s151 = sphi 0, %s153
      %s154 = sphi 0, %s151
      %s155 = sphi 0, %s154
      %s171 = sphi 0, %s155
      %s179 = sphi 0, %s181
      %s182 = sphi 0, %s179
      %s183 = sphi 0, %s182
      %s199 = sphi 0, %s183
      %s203 = sphi 0, %s203
      %s205 = sphi 0, %s203
      %s206 = sphi 0, %s205
      %s220 = sphi 0, %s206
      %s228 = sphi 0, %s230
      %s231 = sphi 0, %s228
      %s232 = sphi 0, %s231
      %s248 = sphi 0, %s232
    $region4: #{fan_block_forward.13} parent=1 // loop_header_branch
      %20 = sbr.rel (%p18) target = $region8
    $region5: #{fan_block_forward.13} parent=1 // loop_body
      %s22 = ssub.s32 %s17, 1
      %s23 = ssub.s32 %s17, 2
      %s30 = sadd.s32 1, %s25
      %p31 = scmp.ge.s32.totalorder %s30, 1
      %s32 = scalar_select %p31, 0, %s30
      %s33 = sadd.s32 1, %s24
      %s34 = scalar_select %p31, %s33, %s24
      %p35 = scmp.ge.s32.totalorder %s34, 2
      %s36 = scalar_select %p35, 0, %s34
      %s37 = sadd.s32 %s24, %s25
      %s38 = sadd.s32 %s36, %s32
      %s39 = ssub.s32 %s37, %s38
      %p40 = scmp.eq.s32.totalorder %s39, 0
      %s42 = sadd.s32 %s41, 1
      %s43 = scalar_select %p40, %s41, %s42
      %p46 = pneg %p40
      %p47 = scmp.eq.s32.totalorder %s17, 1
      %p48 = por %p46, %p47
      %p49 = scmp.ne.s32.totalorder %s41, %s44
      %p50 = scmp.eq.s32.totalorder %s17, 0
      %p51 = por %p49, %p50
      %p52 = scmp.ne.s32.totalorder %s41, %s44
      %p53 = scmp.eq.s32.totalorder %s22, 1
      %p54 = por %p52, %p53
      %p55 = scmp.ne.s32.totalorder %s44, %s45
      %p56 = scmp.eq.s32.totalorder %s22, 0
      %p57 = por %p55, %p56
      %p58 = scmp.ne.s32.totalorder %s44, %s45
      %p59 = scmp.eq.s32.totalorder %s23, 1
      %p60 = por %p58, %p59
      %p62 = scmp.ne.s32.totalorder %s45, %s61
      %p63 = scmp.eq.s32.totalorder %s23, 0
      %p64 = por %p62, %p63
      %s66 = sadd.s32 %s65, 1
      %p69 = scmp.eq.s32.totalorder %s17, 1
      %p70 = scmp.ne.s32.totalorder %s65, %s67
      %p71 = scmp.eq.s32.totalorder %s17, 0
      %p72 = por %p70, %p71
      %p73 = scmp.ne.s32.totalorder %s65, %s67
      %p74 = scmp.eq.s32.totalorder %s22, 1
      %p75 = por %p73, %p74
      %p76 = scmp.ne.s32.totalorder %s67, %s68
      %p77 = scmp.eq.s32.totalorder %s22, 0
      %p78 = por %p76, %p77
      %p79 = scmp.ne.s32.totalorder %s67, %s68
      %p80 = scmp.eq.s32.totalorder %s23, 1
      %p81 = por %p79, %p80
      %p83 = scmp.ne.s32.totalorder %s68, %s82
      %p84 = scmp.eq.s32.totalorder %s23, 0
      %p85 = por %p83, %p84
      %s87 = sadd.s32 %s86, 1
      %p90 = scmp.eq.s32.totalorder %s17, 1
      %p91 = scmp.ne.s32.totalorder %s86, %s88
      %p92 = scmp.eq.s32.totalorder %s17, 0
      %p93 = por %p91, %p92
      %p94 = scmp.ne.s32.totalorder %s86, %s88
      %p95 = scmp.eq.s32.totalorder %s22, 1
      %p96 = por %p94, %p95
      %p97 = scmp.ne.s32.totalorder %s88, %s89
      %p98 = scmp.eq.s32.totalorder %s22, 0
      %p99 = por %p97, %p98
      %p100 = scmp.ne.s32.totalorder %s88, %s89
      %p101 = scmp.eq.s32.totalorder %s23, 1
      %p102 = por %p100, %p101
      %p104 = scmp.ne.s32.totalorder %s89, %s103
      %p105 = scmp.eq.s32.totalorder %s23, 0
      %p106 = por %p104, %p105
      %s108 = sadd.s32 %s107, 1
      %p111 = scmp.eq.s32.totalorder %s17, 1
      %p112 = scmp.ne.s32.totalorder %s107, %s109
      %p113 = scmp.eq.s32.totalorder %s17, 0
      %p114 = por %p112, %p113
      %p115 = scmp.ne.s32.totalorder %s107, %s109
      %p116 = scmp.eq.s32.totalorder %s22, 1
      %p117 = por %p115, %p116
      %p118 = scmp.ne.s32.totalorder %s109, %s110
      %p119 = scmp.eq.s32.totalorder %s22, 0
      %p120 = por %p118, %p119
      %p121 = scmp.ne.s32.totalorder %s109, %s110
      %p122 = scmp.eq.s32.totalorder %s23, 1
      %p123 = por %p121, %p122
      %p125 = scmp.ne.s32.totalorder %s110, %s124
      %p126 = scmp.eq.s32.totalorder %s23, 0
      %p127 = por %p125, %p126
      %s129 = sadd.s32 %s128, 1
      %p132 = scmp.eq.s32.totalorder %s17, 1
      %p133 = scmp.ne.s32.totalorder %s128, %s130
      %p134 = scmp.eq.s32.totalorder %s17, 0
      %p135 = por %p133, %p134
      %p136 = scmp.ne.s32.totalorder %s128, %s130
      %p137 = scmp.eq.s32.totalorder %s22, 1
      %p138 = por %p136, %p137
      %p139 = scmp.ne.s32.totalorder %s130, %s131
      %p140 = scmp.eq.s32.totalorder %s22, 0
      %p141 = por %p139, %p140
      %p142 = scmp.ne.s32.totalorder %s130, %s131
      %p143 = scmp.eq.s32.totalorder %s23, 1
      %p144 = por %p142, %p143
      %p146 = scmp.ne.s32.totalorder %s131, %s145
      %p147 = scmp.eq.s32.totalorder %s23, 0
      %p148 = por %p146, %p147
      %s149 = ssub.s32 %s24, %s36
      %p150 = scmp.eq.s32.totalorder %s149, 0
      %s152 = sadd.s32 %s151, 1
      %s153 = scalar_select %p150, %s151, %s152
      %p156 = pneg %p150
      %p157 = scmp.eq.s32.totalorder %s17, 1
      %p158 = por %p156, %p157
      %p159 = scmp.ne.s32.totalorder %s151, %s154
      %p160 = scmp.eq.s32.totalorder %s17, 0
      %p161 = por %p159, %p160
      %p162 = scmp.ne.s32.totalorder %s151, %s154
      %p163 = scmp.eq.s32.totalorder %s22, 1
      %p164 = por %p162, %p163
      %p165 = scmp.ne.s32.totalorder %s154, %s155
      %p166 = scmp.eq.s32.totalorder %s22, 0
      %p167 = por %p165, %p166
      %p168 = scmp.ne.s32.totalorder %s154, %s155
      %p169 = scmp.eq.s32.totalorder %s23, 1
      %p170 = por %p168, %p169
      %p172 = scmp.ne.s32.totalorder %s155, %s171
      %p173 = scmp.eq.s32.totalorder %s23, 0
      %p174 = por %p172, %p173
      %s175 = sadd.s32 %s24, %s25
      %s176 = sadd.s32 %s36, %s32
      %s177 = ssub.s32 %s175, %s176
      %p178 = scmp.eq.s32.totalorder %s177, 0
      %s180 = sadd.s32 %s179, 1
      %s181 = scalar_select %p178, %s179, %s180
      %p184 = pneg %p178
      %p185 = scmp.eq.s32.totalorder %s17, 1
      %p186 = por %p184, %p185
      %p187 = scmp.ne.s32.totalorder %s179, %s182
      %p188 = scmp.eq.s32.totalorder %s17, 0
      %p189 = por %p187, %p188
      %p190 = scmp.ne.s32.totalorder %s179, %s182
      %p191 = scmp.eq.s32.totalorder %s22, 1
      %p192 = por %p190, %p191
      %p193 = scmp.ne.s32.totalorder %s182, %s183
      %p194 = scmp.eq.s32.totalorder %s22, 0
      %p195 = por %p193, %p194
      %p196 = scmp.ne.s32.totalorder %s182, %s183
      %p197 = scmp.eq.s32.totalorder %s23, 1
      %p198 = por %p196, %p197
      %p200 = scmp.ne.s32.totalorder %s183, %s199
      %p201 = scmp.eq.s32.totalorder %s23, 0
      %p202 = por %p200, %p201
      %s204 = sadd.s32 %s203, 1
      %p207 = scmp.eq.s32.totalorder %s17, 1
      %p208 = scmp.ne.s32.totalorder %s203, %s205
      %p209 = scmp.eq.s32.totalorder %s17, 0
      %p210 = por %p208, %p209
      %p211 = scmp.ne.s32.totalorder %s203, %s205
      %p212 = scmp.eq.s32.totalorder %s22, 1
      %p213 = por %p211, %p212
      %p214 = scmp.ne.s32.totalorder %s205, %s206
      %p215 = scmp.eq.s32.totalorder %s22, 0
      %p216 = por %p214, %p215
      %p217 = scmp.ne.s32.totalorder %s205, %s206
      %p218 = scmp.eq.s32.totalorder %s23, 1
      %p219 = por %p217, %p218
      %p221 = scmp.ne.s32.totalorder %s206, %s220
      %p222 = scmp.eq.s32.totalorder %s23, 0
      %p223 = por %p221, %p222
      %s224 = sadd.s32 %s24, %s25
      %s225 = sadd.s32 %s36, %s32
      %s226 = ssub.s32 %s224, %s225
      %p227 = scmp.eq.s32.totalorder %s226, 0
      %s229 = sadd.s32 %s228, 1
      %s230 = scalar_select %p227, %s228, %s229
      %p233 = pneg %p227
      %p234 = scmp.eq.s32.totalorder %s17, 1
      %p235 = por %p233, %p234
      %p236 = scmp.ne.s32.totalorder %s228, %s231
      %p237 = scmp.eq.s32.totalorder %s17, 0
      %p238 = por %p236, %p237
      %p239 = scmp.ne.s32.totalorder %s228, %s231
      %p240 = scmp.eq.s32.totalorder %s22, 1
      %p241 = por %p239, %p240
      %p242 = scmp.ne.s32.totalorder %s231, %s232
      %p243 = scmp.eq.s32.totalorder %s22, 0
      %p244 = por %p242, %p243
      %p245 = scmp.ne.s32.totalorder %s231, %s232
      %p246 = scmp.eq.s32.totalorder %s23, 1
      %p247 = por %p245, %p246
      %p249 = scmp.ne.s32.totalorder %s232, %s248
      %p250 = scmp.eq.s32.totalorder %s23, 0
      %p251 = por %p249, %p250
      %p252 = scmp.le.s32.totalorder 1, %s17
      %p253 = scmp.lt.s32.totalorder %s17, 3
      %p254 = pnand %p252, %p253
      %p255 = pneg %p254
      // Predicated region
      $region9: #{fan_block_forward.13} parent=5 // pred_check
        _
      $region10: #{fan_block_forward.13} parent=5 // pred_check_branch
        %257 = sbr.rel (%p254) target = $region12
      $region11: #{fan_block_forward.13} parent=5 // pred_region
        %s258 = ssub.s32 %s17, 1
        // Predicated region
        $region13: #{fan_block_forward.13} parent=11 // pred_check
          %p259 = pneg %p78
        $region14: #{fan_block_forward.13} parent=11 // pred_check_branch
          %261 = sbr.rel (%p259) target = $region16
        $region15: #{fan_block_forward.13} parent=11 // pred_region
          _
        $region16: #{fan_block_forward.13} parent=11 // pred_fallthru
          _
        // Predicated region
        $region17: #{fan_block_forward.13} parent=11 // pred_check
          %p262 = pneg %p99
        $region18: #{fan_block_forward.13} parent=11 // pred_check_branch
          %264 = sbr.rel (%p262) target = $region20
        $region19: #{fan_block_forward.13} parent=11 // pred_region
          _
        $region20: #{fan_block_forward.13} parent=11 // pred_fallthru
          _
        // Predicated region
        $region21: #{fan_block_forward.13} parent=11 // pred_check
          %p265 = pneg %p120
        $region22: #{fan_block_forward.13} parent=11 // pred_check_branch
          %267 = sbr.rel (%p265) target = $region24
        $region23: #{fan_block_forward.13} parent=11 // pred_region
          _
        $region24: #{fan_block_forward.13} parent=11 // pred_fallthru
          _
        // Predicated region
        $region25: #{fan_block_forward.13} parent=11 // pred_check
          %p268 = pneg %p141
        $region26: #{fan_block_forward.13} parent=11 // pred_check_branch
          %270 = sbr.rel (%p268) target = $region28
        $region27: #{fan_block_forward.13} parent=11 // pred_region
          _
        $region28: #{fan_block_forward.13} parent=11 // pred_fallthru
          _
        // Predicated region
        $region29: #{fan_block_forward.13} parent=11 // pred_check
          %p271 = pneg %p216
        $region30: #{fan_block_forward.13} parent=11 // pred_check_branch
          %273 = sbr.rel (%p271) target = $region32
        $region31: #{fan_block_forward.13} parent=11 // pred_region
          _
        $region32: #{fan_block_forward.13} parent=11 // pred_fallthru
          _
      $region12: #{fan_block_forward.13} parent=5 // pred_fallthru
        _
      %p274 = scmp.lt.s32.totalorder %s17, 2
      // Predicated region
      $region33: #{fan_block_forward.13} parent=5 // pred_check
        %p275 = pneg %p274
      $region34: #{fan_block_forward.13} parent=5 // pred_check_branch
        %277 = sbr.rel (%p275) target = $region36
      $region35: #{fan_block_forward.13} parent=5 // pred_region
        // Predicated region
        $region37: #{fan_block_forward.13} parent=35 // pred_check
          %p278 = pneg %p51
        $region38: #{fan_block_forward.13} parent=35 // pred_check_branch
          %280 = sbr.rel (%p278) target = $region40
        $region39: #{fan_block_forward.13} parent=35 // pred_region
          %s281 = sadd.s32 %s24, %s25
          %s282 = smul.u32 2, %s281
          %p283 = scmp.lt.s32.totalorder %s282, 3
          %s284 = scalar_select %p283, %s282, 3
          %s285 = smul.addr %s284, 2
          %s286 = smul.addr %s285, 8
          %s287 = scalar_lea.vmem %s0, %s286
          %s288 = sadd.s32 %s24, %s25
          %s289 = smul.u32 2, %s288
        $region40: #{fan_block_forward.13} parent=35 // pred_fallthru
          _
        // Predicated region
        $region41: #{fan_block_forward.13} parent=35 // pred_check
          %p290 = pneg %p161
        $region42: #{fan_block_forward.13} parent=35 // pred_check_branch
          %292 = sbr.rel (%p290) target = $region44
        $region43: #{fan_block_forward.13} parent=35 // pred_region
          %p293 = scmp.lt.s32.totalorder %s24, 1
          %s294 = scalar_select %p293, %s24, 1
          %s295 = scalar_lea.vmem %s5, %s294
        $region44: #{fan_block_forward.13} parent=35 // pred_fallthru
          _
        // Predicated region
        $region45: #{fan_block_forward.13} parent=35 // pred_check
          %p296 = pneg %p189
        $region46: #{fan_block_forward.13} parent=35 // pred_check_branch
          %298 = sbr.rel (%p296) target = $region48
        $region47: #{fan_block_forward.13} parent=35 // pred_region
          %s299 = sadd.s32 %s24, %s25
          %s300 = smul.u32 2, %s299
          %p301 = scmp.lt.s32.totalorder %s300, 3
          %s302 = scalar_select %p301, %s300, 3
          %s303 = smul.addr %s302, 8
          %s304 = scalar_lea.vmem %s6, %s303
          %s305 = sadd.s32 %s24, %s25
          %s306 = smul.u32 2, %s305
        $region48: #{fan_block_forward.13} parent=35 // pred_fallthru
          _
      $region36: #{fan_block_forward.13} parent=5 // pred_fallthru
        _
      %p307 = scmp.le.s32.totalorder 1, %s17
      %p308 = scmp.lt.s32.totalorder %s17, 3
      %p309 = pnand %p307, %p308
      %p310 = pneg %p309
      // Predicated region
      $region49: #{fan_block_forward.13} parent=5 // pred_check
        _
      $region50: #{fan_block_forward.13} parent=5 // pred_check_branch
        %312 = sbr.rel (%p309) target = $region52
      $region51: #{fan_block_forward.13} parent=5 // pred_region
        %s313 = ssub.s32 %s17, 1
        %s314 = sadd.s32 %s26, %s27
        %s315 = smul.u32 2, %s314
        %p316 = scmp.lt.s32.totalorder %s315, 3
        %s317 = scalar_select %p316, %s315, 3
        %s318 = smul.addr %s317, 2
        %s319 = smul.addr %s318, 8
        %s320 = scalar_lea.vmem %s0, %s319
        %p321 = pneg %p57
        %p322 = pneg %p54
        %p323 = pneg %p78
        %p324 = pneg %p75
        %p325 = pneg %p99
        %p326 = pneg %p96
        %p327 = pneg %p120
        %p328 = pneg %p117
        %p329 = pneg %p141
        %p330 = pneg %p138
        %p331 = scmp.lt.s32.totalorder %s26, 1
        %s332 = scalar_select %p331, %s26, 1
        %s333 = scalar_lea.vmem %s5, %s332
        %p334 = pneg %p167
        %p335 = pneg %p164
        %s336 = sadd.s32 %s26, %s27
        %s337 = smul.u32 2, %s336
        %p338 = scmp.lt.s32.totalorder %s337, 3
        %s339 = scalar_select %p338, %s337, 3
        %s340 = smul.addr %s339, 8
        %s341 = scalar_lea.vmem %s6, %s340
        %p342 = pneg %p195
        %p343 = pneg %p192
        %p344 = pneg %p216
        %p345 = pneg %p213
        %p346 = pneg %p244
        %p347 = pneg %p241
        %s348 = sand.u32 %s231, 1
        %s349 = scalar_lea.sflag [#allocation3], %s348
        %s350 = sand.u32 %s231, 1
        %s351 = smul.addr %s350, 16
        %s352 = scalar_lea.vmem [#allocation2], %s351
        %s353 = sadd.s32 %s26, %s27
        %s354 = smul.u32 2, %s353
        %p355 = scmp.lt.s32.totalorder %s354, 3
        %s356 = scalar_select %p355, %s354, 3
        %s357 = smul.addr %s356, 2
        %s358 = smul.addr %s357, 8
        %s359 = scalar_lea.vmem %s0, %s358
        %s360 = sadd.s32 %s26, %s27
        %s361 = smul.u32 2, %s360
        %p362 = scmp.lt.s32.totalorder %s26, 1
        %s363 = scalar_select %p362, %s26, 1
        %s364 = scalar_lea.vmem %s5, %s363
        %s365 = sadd.s32 %s26, %s27
        %s366 = smul.u32 2, %s365
        %p367 = scmp.lt.s32.totalorder %s366, 3
        %s368 = scalar_select %p367, %s366, 3
        %s369 = smul.addr %s368, 8
        %s370 = scalar_lea.vmem %s6, %s369
        %s371 = sadd.s32 %s26, %s27
        %s372 = smul.u32 2, %s371
        %s373 = sadd.s32 %s26, %s27
        %s374 = smul.u32 2, %s373
        %v376 = vld [vmem:[%s359] sm:$0xff]
        %v377 = vld [vmem:[%s359 + $0x8] sm:$0xff]
        %v378 = vld [vmem:[%s359 + $0x10] sm:$0xff]
        %v379 = vld [vmem:[%s359 + $0x18] sm:$0xff]
        %v380 = vpack.c.bf16 %v378, %v376
        %v381 = vpack.c.bf16 %v379, %v377
        %v382 = vld [vmem:[%s1] sm:$0xf]
        %v383 = vld [vmem:[%s1 + $0x4] sm:$0xf]
        %v384 = vld [vmem:[%s1 + $0x8] sm:$0xf]
        %v385 = vld [vmem:[%s1 + $0xc] sm:$0xf]
        %v386 = vld [vmem:[%s1 + $0x10] sm:$0xf]
        %v387 = vld [vmem:[%s1 + $0x14] sm:$0xf]
        %v388 = vld [vmem:[%s1 + $0x18] sm:$0xf]
        %v389 = vld [vmem:[%s1 + $0x1c] sm:$0xf]
        %v390 = vld [vmem:[%s1 + $0x20] sm:$0xf]
        %v391 = vld [vmem:[%s1 + $0x24] sm:$0xf]
        %v392 = vld [vmem:[%s1 + $0x28] sm:$0xf]
        %v393 = vld [vmem:[%s1 + $0x2c] sm:$0xf]
        %v394 = vld [vmem:[%s1 + $0x30] sm:$0xf]
        %v395 = vld [vmem:[%s1 + $0x34] sm:$0xf]
        %v396 = vld [vmem:[%s1 + $0x38] sm:$0xf]
        %v397 = vld [vmem:[%s1 + $0x3c] sm:$0xf]
        %v398 = vld [vmem:[%s1 + $0x40] sm:$0xf]
        %v399 = vld [vmem:[%s1 + $0x44] sm:$0xf]
        %v400 = vld [vmem:[%s1 + $0x48] sm:$0xf]
        %v401 = vld [vmem:[%s1 + $0x4c] sm:$0xf]
        %v402 = vld [vmem:[%s1 + $0x50] sm:$0xf]
        %v403 = vld [vmem:[%s1 + $0x54] sm:$0xf]
        %v404 = vld [vmem:[%s1 + $0x58] sm:$0xf]
        %v405 = vld [vmem:[%s1 + $0x5c] sm:$0xf]
        %v406 = vld [vmem:[%s1 + $0x60] sm:$0xf]
        %v407 = vld [vmem:[%s1 + $0x64] sm:$0xf]
        %v408 = vld [vmem:[%s1 + $0x68] sm:$0xf]
        %v409 = vld [vmem:[%s1 + $0x6c] sm:$0xf]
        %v410 = vld [vmem:[%s1 + $0x70] sm:$0xf]
        %v411 = vld [vmem:[%s1 + $0x74] sm:$0xf]
        %v412 = vld [vmem:[%s1 + $0x78] sm:$0xf]
        %v413 = vld [vmem:[%s1 + $0x7c] sm:$0xf]
        %v414 = vld [vmem:[%s2] sm:$0x1]
        %v416 = vlaneseq
        %v417 = vshrl.u32 %v416, 7
        %v418 = vsub.s32 0, %v417
        %v419 = vrot.slane %v414, %v418
        %v453 = vunpack.c.l.b16 %v382
        %v454 = vunpack.c.l.b16 %v383
        %v455 = vunpack.c.l.b16 %v384
        %v456 = vunpack.c.l.b16 %v385
        %v457 = vunpack.c.l.b16 %v386
        %v458 = vunpack.c.l.b16 %v387
        %v459 = vunpack.c.l.b16 %v388
        %v460 = vunpack.c.l.b16 %v389
        %v461 = vunpack.c.l.b16 %v390
        %v462 = vunpack.c.l.b16 %v391
        %v463 = vunpack.c.l.b16 %v392
        %v464 = vunpack.c.l.b16 %v393
        %v465 = vunpack.c.l.b16 %v394
        %v466 = vunpack.c.l.b16 %v395
        %v467 = vunpack.c.l.b16 %v396
        %v468 = vunpack.c.l.b16 %v397
        %v469 = vunpack.c.l.b16 %v398
        %v470 = vunpack.c.l.b16 %v399
        %v471 = vunpack.c.l.b16 %v400
        %v472 = vunpack.c.l.b16 %v401
        %v473 = vunpack.c.l.b16 %v402
        %v474 = vunpack.c.l.b16 %v403
        %v475 = vunpack.c.l.b16 %v404
        %v476 = vunpack.c.l.b16 %v405
        %v477 = vunpack.c.l.b16 %v406
        %v478 = vunpack.c.l.b16 %v407
        %v479 = vunpack.c.l.b16 %v408
        %v480 = vunpack.c.l.b16 %v409
        %v481 = vunpack.c.l.b16 %v410
        %v482 = vunpack.c.l.b16 %v411
        %v483 = vunpack.c.l.b16 %v412
        %v484 = vunpack.c.l.b16 %v413
        %v485 = vpack.c.b16 %v454, %v453
        %v486 = vpack.c.b16 %v456, %v455
        %v487 = vpack.c.b16 %v458, %v457
        %v488 = vpack.c.b16 %v460, %v459
        %v489 = vpack.c.b16 %v462, %v461
        %v490 = vpack.c.b16 %v464, %v463
        %v491 = vpack.c.b16 %v466, %v465
        %v492 = vpack.c.b16 %v468, %v467
        %v493 = vpack.c.b16 %v470, %v469
        %v494 = vpack.c.b16 %v472, %v471
        %v495 = vpack.c.b16 %v474, %v473
        %v496 = vpack.c.b16 %v476, %v475
        %v497 = vpack.c.b16 %v478, %v477
        %v498 = vpack.c.b16 %v480, %v479
        %v499 = vpack.c.b16 %v482, %v481
        %v500 = vpack.c.b16 %v484, %v483
        %517 = vmatprep.subr.bf16.mxu0 0
        %518 = vmatpush1.bf16.msra.mxu0 %v492
        %519 = vmatprep.subr.bf16.mxu0 0
        %520 = vmatpush1.bf16.msra.mxu0 %v491
        %521 = vmatprep.subr.bf16.mxu0 0
        %522 = vmatpush1.bf16.msra.mxu0 %v490
        %523 = vmatprep.subr.bf16.mxu0 0
        %524 = vmatpush1.bf16.msra.mxu0 %v489
        %525 = vmatprep.subr.bf16.mxu0 0
        %526 = vmatpush1.bf16.msra.mxu0 %v488
        %527 = vmatprep.subr.bf16.mxu0 0
        %528 = vmatpush1.bf16.msra.mxu0 %v487
        %529 = vmatprep.subr.bf16.mxu0 0
        %530 = vmatpush1.bf16.msra.mxu0 %v486
        %531 = vmatprep.subr.bf16.mxu0 0
        %532 = vmatpush1.bf16.msra.mxu0 %v485
        %533 = vmatprep.subr.bf16.mxu0 0
        %534 = vmatpush2.bf16.msra.mxu0 %v500
        %535 = vmatprep.subr.bf16.mxu0 0
        %536 = vmatpush2.bf16.msra.mxu0 %v499
        %537 = vmatprep.subr.bf16.mxu0 0
        %538 = vmatpush2.bf16.msra.mxu0 %v498
        %539 = vmatprep.subr.bf16.mxu0 0
        %540 = vmatpush2.bf16.msra.mxu0 %v497
        %541 = vmatprep.subr.bf16.mxu0 0
        %542 = vmatpush2.bf16.msra.mxu0 %v496
        %543 = vmatprep.subr.bf16.mxu0 0
        %544 = vmatpush2.bf16.msra.mxu0 %v495
        %545 = vmatprep.subr.bf16.mxu0 0
        %546 = vmatpush2.bf16.msra.mxu0 %v494
        %547 = vmatprep.subr.bf16.mxu0 0
        %548 = vmatpush2.bf16.msra.mxu0 %v493
        %549 = vmatprep.mubr.bf16.mxu0 %v381
        %550 = vmatmul.mubr.bf16.gmra.mxu0 %v380
        %v551 = vpop.f32.mrf.mxu0
        %v552 = vadd.f32 %v419, %v551
        %v553 = vpop.f32.mrf.mxu0
        %v554 = vpop.f32.mrf.mxu0
        %v555 = vadd.f32 %v419, %v554
        %v556 = vpop.f32.mrf.mxu0
        %557 = vdwg.mxu0
        %vm558 = vcmask 523264
        %v559 = vsel %vm558, %v552, 0.0
        %560 = vadd.xlane.f32.xlu0 %v559
        %v561 = vpop.xlane.xlu0 %560
        %v562 = vsel %vm558, %v555, 0.0
        %563 = vadd.xlane.f32.xlu0 %v562
        %v564 = vpop.xlane.xlu0 %563
        %v565 = vrcp.pop 64.0
        %v566 = vmul.f32 %v561, %v565
        %v567 = vmul.f32 %v564, %v565
        %v568 = vsub.f32 %v552, %v566
        %v569 = vsub.f32 %v555, %v567
        %v570 = vmul.f32 %v568, %v568
        %v571 = vmul.f32 %v569, %v569
        %v572 = vsel %vm558, %v570, 0.0
        %573 = vadd.xlane.f32.xlu0 %v572
        %v574 = vpop.xlane.xlu0 %573
        %v575 = vsel %vm558, %v571, 0.0
        %576 = vadd.xlane.f32.xlu0 %v575
        %v577 = vpop.xlane.xlu0 %576
        %v578 = vmul.f32 %v574, %v565
        %v579 = vmul.f32 %v577, %v565
        %v580 = vadd.f32 %v578, 1e-05
        %v581 = vadd.f32 %v579, 1e-05
        %v582 = vrsqrt.pop %v580
        %v583 = vrsqrt.pop %v581
        %v584 = vmul.f32 %v568, %v582
        %v585 = vmul.f32 %v569, %v583
        %v586 = vld [vmem:[%s3] sm:$0x1]
        %v588 = vlaneseq
        %v589 = vshrl.u32 %v588, 7
        %v590 = vsub.s32 0, %v589
        %v591 = vrot.slane %v586, %v590
        %v593 = vmul.f32 %v584, %v591
        %v594 = vmul.f32 %v585, %v591
        %v595 = vld [vmem:[%s4] sm:$0x1]
        %v597 = vlaneseq
        %v598 = vshrl.u32 %v597, 7
        %v599 = vsub.s32 0, %v598
        %v600 = vrot.slane %v595, %v599
        %v602 = vadd.f32 %v593, %v600
        %v603 = vadd.f32 %v594, %v600
        %v604 = vld [vmem:[%s364] sm:$0x1]
        %v605 = vld [vmem:[%s370] sm:$0xff]
        %v606 = vld [vmem:[%s370 + $0x8] sm:$0xff]
        %v607 = vld [vmem:[%s7] sm:$0x1]
        %v609 = vlaneseq
        %v610 = vshrl.u32 %v609, 7
        %v611 = vsub.s32 0, %v610
        %v612 = vrot.slane %v604, %v611
        %v614 = vmul.f32 %v612, %v602
        %v615 = vmul.f32 %v612, %v603
        %v617 = vlaneseq
        %v618 = vshrl.u32 %v617, 7
        %v619 = vsub.s32 0, %v618
        %v620 = vrot.slane %v607, %v619
        %v622 = vmul.f32 %v620, %v614
        %v623 = vmul.f32 %v620, %v615
        %v624 = vadd.f32 %v605, %v622
        %v625 = vadd.f32 %v606, %v623
        %626 = vst.msk [vmem:[%s352] sm:$0xff] %vm558, %v624
        %627 = vst.msk [vmem:[%s352 + $0x8] sm:$0xff] %vm558, %v625
        %s628 = sand.u32 %s231, 1
        %s629 = scalar_lea.sflag [#allocation3], %s628
        %s630 = sand.u32 %s231, 1
        %s631 = smul.addr %s630, 16
        %s632 = scalar_lea.vmem [#allocation2], %s631
        // Predicated region
        $region53: #{fan_block_forward.13} parent=51 // pred_check
          %p633 = pneg %p241
        $region54: #{fan_block_forward.13} parent=51 // pred_check_branch
          %635 = sbr.rel (%p633) target = $region56
        $region55: #{fan_block_forward.13} parent=51 // pred_region
          %s636 = sadd.s32 %s26, %s27
          %s637 = smul.u32 2, %s636
          %s639 = ssub.s32 256, 256
          %640 = vsyncadd %s629, %s639
          %s641 = smul.addr %s637, 128
          %s642 = scalar_lea.hbm %s8, %s641
          %s643 = sshll.u32 %s632, 4
          %s644 = int_to_ptr.vmem [resolvable:$true] %s643
          %649 = dma.vmem_to_hbm [thread:$0]  %s644, 256, %s642, %s629, 128, 128, 8
        $region56: #{fan_block_forward.13} parent=51 // pred_fallthru
          _
      $region52: #{fan_block_forward.13} parent=5 // pred_fallthru
        _
      %p650 = scmp.le.s32.totalorder 2, %s17
      // Predicated region
      $region57: #{fan_block_forward.13} parent=5 // pred_check
        %p651 = pneg %p650
      $region58: #{fan_block_forward.13} parent=5 // pred_check_branch
        %653 = sbr.rel (%p651) target = $region60
      $region59: #{fan_block_forward.13} parent=5 // pred_region
        %s654 = ssub.s32 %s17, 2
        // Predicated region
        $region61: #{fan_block_forward.13} parent=59 // pred_check
          %p655 = pneg %p247
        $region62: #{fan_block_forward.13} parent=59 // pred_check_branch
          %657 = sbr.rel (%p655) target = $region64
        $region63: #{fan_block_forward.13} parent=59 // pred_region
          %s658 = sand.u32 %s232, 1
          %s659 = scalar_lea.sflag [#allocation3], %s658
          %s660 = sand.u32 %s232, 1
          %s661 = smul.addr %s660, 16
          %s662 = scalar_lea.vmem [#allocation2], %s661
          %663 = dma.done %s659, 256
        $region64: #{fan_block_forward.13} parent=59 // pred_fallthru
          _
      $region60: #{fan_block_forward.13} parent=5 // pred_fallthru
        _
    $region6: #{fan_block_forward.13} parent=1 // loop_footer
      %s21 = sadd.s32 1, %s17
    $region7: #{fan_block_forward.13} parent=1 // loop_footer_branch
      %16 = sbr.rel target = $region3
    $region8: #{fan_block_forward.13} parent=1 // loop_exit
      _
    %664 = vsyncpa [#allocation3], 1
    %s665 = scalar_lea.sflag [#allocation3], 1
    %666 = vsyncpa %s665, 1

// kernel: fan_block_forward.12
$region0: #{fan_block_forward.12}
  #allocation0 [shape = 'u32[]', space=smem, size = 0x4, offset = 0x4, fixed_abs, tag = 'smem constant byte address 0x4 - core index']
  #allocation1 [shape = 'u32[144,128]{1,0:T(1,128)}', space=vmem, size = 0x12000, scoped, tag = 'internal scratch']
  %s0 = inlined_call_operand.vmem [shape: f32[2,16,256], index: 0, kind: input, shape index: {}]
  %s1 = inlined_call_operand.vmem [shape: f32[9,256], index: 1, kind: input, shape index: {}]
  %s2 = inlined_call_operand.vmem [shape: f32[1,256], index: 2, kind: input, shape index: {}]
  %s3 = inlined_call_operand.vmem [shape: f32[1,256], index: 3, kind: input, shape index: {}]
  %s4 = inlined_call_operand.vmem [shape: f32[1,256], index: 4, kind: input, shape index: {}]
  %s5 = inlined_call_operand.vmem [shape: f32[9,256], index: 5, kind: input, shape index: {}]
  %s6 = inlined_call_operand.vmem [shape: f32[1,256], index: 6, kind: input, shape index: {}]
  %s7 = inlined_call_operand.vmem [shape: f32[1,256], index: 7, kind: input, shape index: {}]
  %s8 = inlined_call_operand.vmem [shape: f32[16,1], index: 8, kind: input, shape index: {}]
  %s9 = inlined_call_operand.vmem [shape: f32[16,1], index: 9, kind: input, shape index: {}]
  %s10 = inlined_call_operand.vmem [shape: f32[2,16,256], index: 10, kind: output, shape index: {}]
  %s11 = sld [smem:[#allocation0]]
  $region221: #{fan_block_forward.12} parent=0
    _
  %s13 = ssub.s32 1, %s11
  %s14 = scalar_select 0, %s13, %s11
  $region1: #{fan_block_forward.12} parent=0
    #allocation2 [shape = 'u8[16384]{0}', space=vmem, size = 0x4000, scoped, tag = 'input window, operand 0']
    #allocation3 [shape = 'u8[16384]{0}', space=vmem, size = 0x4000, scoped, tag = 'input window, operand 1']
    #allocation4 [shape = 'u8[16384]{0}', space=vmem, size = 0x4000, scoped, tag = 'input window, operand 5']
    #allocation5 [shape = 'u8[16384]{0}', space=vmem, size = 0x4000, scoped, tag = 'output window, operand 0']
    loop: start=0, step=1, limit=6
    $region2: #{fan_block_forward.12} parent=1 // loop_pre_header
      _
    $region3: #{fan_block_forward.12} parent=1 // loop_header
      %s16 = sphi 0, %s20
      %p17 = scmp.ge.s32.totalorder %s16, 6
      %s23 = sphi 0, %s35
      %s24 = sphi 0, %s31
      %s25 = sphi 0, %s23
      %s26 = sphi 0, %s24
      %s27 = sphi 0, %s25
      %s28 = sphi 0, %s26
      %s40 = sphi 0, %s42
      %s43 = sphi 0, %s40
      %s44 = sphi 0, %s43
      %s60 = sphi 0, %s44
      %s66 = sphi 0, %s68
      %s69 = sphi 0, %s66
      %s70 = sphi 0, %s69
      %s86 = sphi 0, %s70
      %s92 = sphi 0, %s94
      %s95 = sphi 0, %s92
      %s96 = sphi 0, %s95
      %s112 = sphi 0, %s96
      %s118 = sphi 0, %s120
      %s121 = sphi 0, %s118
      %s122 = sphi 0, %s121
      %s138 = sphi 0, %s122
      %s144 = sphi 0, %s146
      %s147 = sphi 0, %s144
      %s148 = sphi 0, %s147
      %s164 = sphi 0, %s148
      %s170 = sphi 0, %s172
      %s173 = sphi 0, %s170
      %s174 = sphi 0, %s173
      %s190 = sphi 0, %s174
      %s196 = sphi 0, %s198
      %s199 = sphi 0, %s196
      %s200 = sphi 0, %s199
      %s216 = sphi 0, %s200
      %s222 = sphi 0, %s224
      %s225 = sphi 0, %s222
      %s226 = sphi 0, %s225
      %s242 = sphi 0, %s226
      %s246 = sphi 0, %s246
      %s248 = sphi 0, %s246
      %s249 = sphi 0, %s248
      %s263 = sphi 0, %s249
      %s267 = sphi 0, %s267
      %s269 = sphi 0, %s267
      %s270 = sphi 0, %s269
      %s284 = sphi 0, %s270
      %s292 = sphi 0, %s294
      %s295 = sphi 0, %s292
      %s296 = sphi 0, %s295
      %s312 = sphi 0, %s296
    $region4: #{fan_block_forward.12} parent=1 // loop_header_branch
      %19 = sbr.rel (%p17) target = $region8
    $region5: #{fan_block_forward.12} parent=1 // loop_body
      %s21 = ssub.s32 %s16, 1
      %s22 = ssub.s32 %s16, 2
      %s29 = sadd.s32 1, %s24
      %p30 = scmp.ge.s32.totalorder %s29, 2
      %s31 = scalar_select %p30, 0, %s29
      %s32 = sadd.s32 1, %s23
      %s33 = scalar_select %p30, %s32, %s23
      %p34 = scmp.ge.s32.totalorder %s33, 2
      %s35 = scalar_select %p34, 0, %s33
      %s36 = ssub.s32 %s23, %s35
      %s37 = ssub.s32 %s24, %s31
      %s38 = sor.u32 %s36, %s37
      %p39 = scmp.eq.s32.totalorder %s38, 0
      %s41 = sadd.s32 %s40, 1
      %s42 = scalar_select %p39, %s40, %s41
      %p45 = pneg %p39
      %p46 = scmp.eq.s32.totalorder %s16, 3
      %p47 = por %p45, %p46
      %p48 = scmp.ne.s32.totalorder %s40, %s43
      %p49 = scmp.eq.s32.totalorder %s16, 0
      %p50 = por %p48, %p49
      %p51 = scmp.ne.s32.totalorder %s40, %s43
      %p52 = scmp.eq.s32.totalorder %s21, 3
      %p53 = por %p51, %p52
      %p54 = scmp.ne.s32.totalorder %s43, %s44
      %p55 = scmp.eq.s32.totalorder %s21, 0
      %p56 = por %p54, %p55
      %p57 = scmp.ne.s32.totalorder %s43, %s44
      %p58 = scmp.eq.s32.totalorder %s22, 3
      %p59 = por %p57, %p58
      %p61 = scmp.ne.s32.totalorder %s44, %s60
      %p62 = scmp.eq.s32.totalorder %s22, 0
      %p63 = por %p61, %p62
      %s64 = ssub.s32 %s24, %s31
      %p65 = scmp.eq.s32.totalorder %s64, 0
      %s67 = sadd.s32 %s66, 1
      %s68 = scalar_select %p65, %s66, %s67
      %p71 = pneg %p65
      %p72 = scmp.eq.s32.totalorder %s16, 3
      %p73 = por %p71, %p72
      %p74 = scmp.ne.s32.totalorder %s66, %s69
      %p75 = scmp.eq.s32.totalorder %s16, 0
      %p76 = por %p74, %p75
      %p77 = scmp.ne.s32.totalorder %s66, %s69
      %p78 = scmp.eq.s32.totalorder %s21, 3
      %p79 = por %p77, %p78
      %p80 = scmp.ne.s32.totalorder %s69, %s70
      %p81 = scmp.eq.s32.totalorder %s21, 0
      %p82 = por %p80, %p81
      %p83 = scmp.ne.s32.totalorder %s69, %s70
      %p84 = scmp.eq.s32.totalorder %s22, 3
      %p85 = por %p83, %p84
      %p87 = scmp.ne.s32.totalorder %s70, %s86
      %p88 = scmp.eq.s32.totalorder %s22, 0
      %p89 = por %p87, %p88
      %s90 = ssub.s32 %s24, %s31
      %p91 = scmp.eq.s32.totalorder %s90, 0
      %s93 = sadd.s32 %s92, 1
      %s94 = scalar_select %p91, %s92, %s93
      %p97 = pneg %p91
      %p98 = scmp.eq.s32.totalorder %s16, 3
      %p99 = por %p97, %p98
      %p100 = scmp.ne.s32.totalorder %s92, %s95
      %p101 = scmp.eq.s32.totalorder %s16, 0
      %p102 = por %p100, %p101
      %p103 = scmp.ne.s32.totalorder %s92, %s95
      %p104 = scmp.eq.s32.totalorder %s21, 3
      %p105 = por %p103, %p104
      %p106 = scmp.ne.s32.totalorder %s95, %s96
      %p107 = scmp.eq.s32.totalorder %s21, 0
      %p108 = por %p106, %p107
      %p109 = scmp.ne.s32.totalorder %s95, %s96
      %p110 = scmp.eq.s32.totalorder %s22, 3
      %p111 = por %p109, %p110
      %p113 = scmp.ne.s32.totalorder %s96, %s112
      %p114 = scmp.eq.s32.totalorder %s22, 0
      %p115 = por %p113, %p114
      %s116 = ssub.s32 %s24, %s31
      %p117 = scmp.eq.s32.totalorder %s116, 0
      %s119 = sadd.s32 %s118, 1
      %s120 = scalar_select %p117, %s118, %s119
      %p123 = pneg %p117
      %p124 = scmp.eq.s32.totalorder %s16, 3
      %p125 = por %p123, %p124
      %p126 = scmp.ne.s32.totalorder %s118, %s121
      %p127 = scmp.eq.s32.totalorder %s16, 0
      %p128 = por %p126, %p127
      %p129 = scmp.ne.s32.totalorder %s118, %s121
      %p130 = scmp.eq.s32.totalorder %s21, 3
      %p131 = por %p129, %p130
      %p132 = scmp.ne.s32.totalorder %s121, %s122
      %p133 = scmp.eq.s32.totalorder %s21, 0
      %p134 = por %p132, %p133
      %p135 = scmp.ne.s32.totalorder %s121, %s122
      %p136 = scmp.eq.s32.totalorder %s22, 3
      %p137 = por %p135, %p136
      %p139 = scmp.ne.s32.totalorder %s122, %s138
      %p140 = scmp.eq.s32.totalorder %s22, 0
      %p141 = por %p139, %p140
      %s142 = ssub.s32 %s24, %s31
      %p143 = scmp.eq.s32.totalorder %s142, 0
      %s145 = sadd.s32 %s144, 1
      %s146 = scalar_select %p143, %s144, %s145
      %p149 = pneg %p143
      %p150 = scmp.eq.s32.totalorder %s16, 3
      %p151 = por %p149, %p150
      %p152 = scmp.ne.s32.totalorder %s144, %s147
      %p153 = scmp.eq.s32.totalorder %s16, 0
      %p154 = por %p152, %p153
      %p155 = scmp.ne.s32.totalorder %s144, %s147
      %p156 = scmp.eq.s32.totalorder %s21, 3
      %p157 = por %p155, %p156
      %p158 = scmp.ne.s32.totalorder %s147, %s148
      %p159 = scmp.eq.s32.totalorder %s21, 0
      %p160 = por %p158, %p159
      %p161 = scmp.ne.s32.totalorder %s147, %s148
      %p162 = scmp.eq.s32.totalorder %s22, 3
      %p163 = por %p161, %p162
      %p165 = scmp.ne.s32.totalorder %s148, %s164
      %p166 = scmp.eq.s32.totalorder %s22, 0
      %p167 = por %p165, %p166
      %s168 = ssub.s32 %s24, %s31
      %p169 = scmp.eq.s32.totalorder %s168, 0
      %s171 = sadd.s32 %s170, 1
      %s172 = scalar_select %p169, %s170, %s171
      %p175 = pneg %p169
      %p176 = scmp.eq.s32.totalorder %s16, 3
      %p177 = por %p175, %p176
      %p178 = scmp.ne.s32.totalorder %s170, %s173
      %p179 = scmp.eq.s32.totalorder %s16, 0
      %p180 = por %p178, %p179
      %p181 = scmp.ne.s32.totalorder %s170, %s173
      %p182 = scmp.eq.s32.totalorder %s21, 3
      %p183 = por %p181, %p182
      %p184 = scmp.ne.s32.totalorder %s173, %s174
      %p185 = scmp.eq.s32.totalorder %s21, 0
      %p186 = por %p184, %p185
      %p187 = scmp.ne.s32.totalorder %s173, %s174
      %p188 = scmp.eq.s32.totalorder %s22, 3
      %p189 = por %p187, %p188
      %p191 = scmp.ne.s32.totalorder %s174, %s190
      %p192 = scmp.eq.s32.totalorder %s22, 0
      %p193 = por %p191, %p192
      %s194 = ssub.s32 %s24, %s31
      %p195 = scmp.eq.s32.totalorder %s194, 0
      %s197 = sadd.s32 %s196, 1
      %s198 = scalar_select %p195, %s196, %s197
      %p201 = pneg %p195
      %p202 = scmp.eq.s32.totalorder %s16, 3
      %p203 = por %p201, %p202
      %p204 = scmp.ne.s32.totalorder %s196, %s199
      %p205 = scmp.eq.s32.totalorder %s16, 0
      %p206 = por %p204, %p205
      %p207 = scmp.ne.s32.totalorder %s196, %s199
      %p208 = scmp.eq.s32.totalorder %s21, 3
      %p209 = por %p207, %p208
      %p210 = scmp.ne.s32.totalorder %s199, %s200
      %p211 = scmp.eq.s32.totalorder %s21, 0
      %p212 = por %p210, %p211
      %p213 = scmp.ne.s32.totalorder %s199, %s200
      %p214 = scmp.eq.s32.totalorder %s22, 3
      %p215 = por %p213, %p214
      %p217 = scmp.ne.s32.totalorder %s200, %s216
      %p218 = scmp.eq.s32.totalorder %s22, 0
      %p219 = por %p217, %p218
      %s220 = ssub.s32 %s24, %s31
      %p221 = scmp.eq.s32.totalorder %s220, 0
      %s223 = sadd.s32 %s222, 1
      %s224 = scalar_select %p221, %s222, %s223
      %p227 = pneg %p221
      %p228 = scmp.eq.s32.totalorder %s16, 3
      %p229 = por %p227, %p228
      %p230 = scmp.ne.s32.totalorder %s222, %s225
      %p231 = scmp.eq.s32.totalorder %s16, 0
      %p232 = por %p230, %p231
      %p233 = scmp.ne.s32.totalorder %s222, %s225
      %p234 = scmp.eq.s32.totalorder %s21, 3
      %p235 = por %p233, %p234
      %p236 = scmp.ne.s32.totalorder %s225, %s226
      %p237 = scmp.eq.s32.totalorder %s21, 0
      %p238 = por %p236, %p237
      %p239 = scmp.ne.s32.totalorder %s225, %s226
      %p240 = scmp.eq.s32.totalorder %s22, 3
      %p241 = por %p239, %p240
      %p243 = scmp.ne.s32.totalorder %s226, %s242
      %p244 = scmp.eq.s32.totalorder %s22, 0
      %p245 = por %p243, %p244
      %s247 = sadd.s32 %s246, 1
      %p250 = scmp.eq.s32.totalorder %s16, 3
      %p251 = scmp.ne.s32.totalorder %s246, %s248
      %p252 = scmp.eq.s32.totalorder %s16, 0
      %p253 = por %p251, %p252
      %p254 = scmp.ne.s32.totalorder %s246, %s248
      %p255 = scmp.eq.s32.totalorder %s21, 3
      %p256 = por %p254, %p255
      %p257 = scmp.ne.s32.totalorder %s248, %s249
      %p258 = scmp.eq.s32.totalorder %s21, 0
      %p259 = por %p257, %p258
      %p260 = scmp.ne.s32.totalorder %s248, %s249
      %p261 = scmp.eq.s32.totalorder %s22, 3
      %p262 = por %p260, %p261
      %p264 = scmp.ne.s32.totalorder %s249, %s263
      %p265 = scmp.eq.s32.totalorder %s22, 0
      %p266 = por %p264, %p265
      %s268 = sadd.s32 %s267, 1
      %p271 = scmp.eq.s32.totalorder %s16, 3
      %p272 = scmp.ne.s32.totalorder %s267, %s269
      %p273 = scmp.eq.s32.totalorder %s16, 0
      %p274 = por %p272, %p273
      %p275 = scmp.ne.s32.totalorder %s267, %s269
      %p276 = scmp.eq.s32.totalorder %s21, 3
      %p277 = por %p275, %p276
      %p278 = scmp.ne.s32.totalorder %s269, %s270
      %p279 = scmp.eq.s32.totalorder %s21, 0
      %p280 = por %p278, %p279
      %p281 = scmp.ne.s32.totalorder %s269, %s270
      %p282 = scmp.eq.s32.totalorder %s22, 3
      %p283 = por %p281, %p282
      %p285 = scmp.ne.s32.totalorder %s270, %s284
      %p286 = scmp.eq.s32.totalorder %s22, 0
      %p287 = por %p285, %p286
      %s288 = ssub.s32 %s23, %s35
      %s289 = ssub.s32 %s24, %s31
      %s290 = sor.u32 %s288, %s289
      %p291 = scmp.eq.s32.totalorder %s290, 0
      %s293 = sadd.s32 %s292, 1
      %s294 = scalar_select %p291, %s292, %s293
      %p297 = pneg %p291
      %p298 = scmp.eq.s32.totalorder %s16, 3
      %p299 = por %p297, %p298
      %p300 = scmp.ne.s32.totalorder %s292, %s295
      %p301 = scmp.eq.s32.totalorder %s16, 0
      %p302 = por %p300, %p301
      %p303 = scmp.ne.s32.totalorder %s292, %s295
      %p304 = scmp.eq.s32.totalorder %s21, 3
      %p305 = por %p303, %p304
      %p306 = scmp.ne.s32.totalorder %s295, %s296
      %p307 = scmp.eq.s32.totalorder %s21, 0
      %p308 = por %p306, %p307
      %p309 = scmp.ne.s32.totalorder %s295, %s296
      %p310 = scmp.eq.s32.totalorder %s22, 3
      %p311 = por %p309, %p310
      %p313 = scmp.ne.s32.totalorder %s296, %s312
      %p314 = scmp.eq.s32.totalorder %s22, 0
      %p315 = por %p313, %p314
      %p316 = scmp.le.s32.totalorder 1, %s16
      %p317 = scmp.lt.s32.totalorder %s16, 5
      %p318 = pnand %p316, %p317
      %p319 = pneg %p318
      // Predicated region
      $region9: #{fan_block_forward.12} parent=5 // pred_check
        _
      $region10: #{fan_block_forward.12} parent=5 // pred_check_branch
        %321 = sbr.rel (%p318) target = $region12
      $region11: #{fan_block_forward.12} parent=5 // pred_region
        %s322 = ssub.s32 %s16, 1
        // Predicated region
        $region13: #{fan_block_forward.12} parent=11 // pred_check
          %p323 = pneg %p259
        $region14: #{fan_block_forward.12} parent=11 // pred_check_branch
          %325 = sbr.rel (%p323) target = $region16
        $region15: #{fan_block_forward.12} parent=11 // pred_region
          _
        $region16: #{fan_block_forward.12} parent=11 // pred_fallthru
          _
        // Predicated region
        $region17: #{fan_block_forward.12} parent=11 // pred_check
          %p326 = pneg %p280
        $region18: #{fan_block_forward.12} parent=11 // pred_check_branch
          %328 = sbr.rel (%p326) target = $region20
        $region19: #{fan_block_forward.12} parent=11 // pred_region
          _
        $region20: #{fan_block_forward.12} parent=11 // pred_fallthru
          _
      $region12: #{fan_block_forward.12} parent=5 // pred_fallthru
        _
      %p329 = scmp.lt.s32.totalorder %s16, 4
      // Predicated region
      $region21: #{fan_block_forward.12} parent=5 // pred_check
        %p330 = pneg %p329
      $region22: #{fan_block_forward.12} parent=5 // pred_check_branch
        %332 = sbr.rel (%p330) target = $region24
      $region23: #{fan_block_forward.12} parent=5 // pred_region
        // Predicated region
        $region25: #{fan_block_forward.12} parent=23 // pred_check
          %p333 = pneg %p50
        $region26: #{fan_block_forward.12} parent=23 // pred_check_branch
          %335 = sbr.rel (%p333) target = $region28
        $region27: #{fan_block_forward.12} parent=23 // pred_region
          %s336 = sand.u32 %s40, 1
          %s337 = sand.u32 %s40, 1
          %s338 = smul.addr %s337, 16
          %s339 = scalar_lea.vmem [#allocation2], %s338
          %s340 = smul.addr %s23, 4
          %s341 = sadd.s32 %s24, %s340
          %s342 = smul.addr %s341, 8
          %s343 = scalar_lea.vmem %s0, %s342
          // Predicated region
          $region29: #{fan_block_forward.12} parent=27 // pred_check
            _
          $region30: #{fan_block_forward.12} parent=27 // pred_check_branch
            %345 = sbr.rel (0) target = $region32
          $region31: #{fan_block_forward.12} parent=27 // pred_region
            // Predicated region
            $region33: #{fan_block_forward.12} parent=31 // pred_check
              _
            $region34: #{fan_block_forward.12} parent=31 // pred_check_branch
              %347 = sbr.rel (0) target = $region36
            $region35: #{fan_block_forward.12} parent=31 // pred_region
              // Predicated region
              $region48: #{fan_block_forward.12} parent=35 // pred_check
                _
              $region49: #{fan_block_forward.12} parent=35 // pred_check_branch
                %365 = sbr.rel (0) target = $region51
              $region50: #{fan_block_forward.12} parent=35 // pred_region
                loop: start=0, step=1, limit=1
                $region52: #{fan_block_forward.12} parent=50 // loop_pre_header
                  _
                $region53: #{fan_block_forward.12} parent=50 // loop_header
                  %s367 = sphi 0, %s371
                  %p368 = scmp.ge.s32.totalorder %s367, 1
                  %s372 = sphi %s343, %s343
                  %s373 = sphi %s339, %s339
                $region54: #{fan_block_forward.12} parent=50 // loop_header_branch
                  %370 = sbr.rel (%p368) target = $region58
                $region55: #{fan_block_forward.12} parent=50 // loop_body
                  %v374 = vld [vmem:[%s372] sm:$0xff]
                  %375 = vst [vmem:[%s373] sm:$0xff] %v374
                  %v376 = vld [vmem:[%s372 + $0x10] sm:$0xff]
                  %377 = vst [vmem:[%s373 + $0x8] sm:$0xff] %v376
                $region56: #{fan_block_forward.12} parent=50 // loop_footer
                  %s371 = sadd.s32 1, %s367
                $region57: #{fan_block_forward.12} parent=50 // loop_footer_branch
                  %366 = sbr.rel target = $region53
                $region58: #{fan_block_forward.12} parent=50 // loop_exit
                  _
              $region51: #{fan_block_forward.12} parent=35 // pred_fallthru
                _
              // Predicated region
              $region59: #{fan_block_forward.12} parent=35 // pred_check
                _
              $region60: #{fan_block_forward.12} parent=35 // pred_check_branch
                %379 = sbr.rel target = $region62
              $region61: #{fan_block_forward.12} parent=35 // pred_region
                _
              $region62: #{fan_block_forward.12} parent=35 // pred_fallthru
                _
            $region36: #{fan_block_forward.12} parent=31 // pred_fallthru
              _
            // Predicated region
            $region37: #{fan_block_forward.12} parent=31 // pred_check
              _
            $region38: #{fan_block_forward.12} parent=31 // pred_check_branch
              %349 = sbr.rel target = $region40
            $region39: #{fan_block_forward.12} parent=31 // pred_region
              %s351 = ssub.s32 256, 1
              loop: start=0, step=1, limit=1
              $region41: #{fan_block_forward.12} parent=39 // loop_pre_header
                _
              $region42: #{fan_block_forward.12} parent=39 // loop_header
                %s353 = sphi 0, %s357
                %p354 = scmp.ge.s32.totalorder %s353, 1
                %s358 = sphi %s343, %s343
                %s359 = sphi %s339, %s339
              $region43: #{fan_block_forward.12} parent=39 // loop_header_branch
                %356 = sbr.rel (%p354) target = $region47
              $region44: #{fan_block_forward.12} parent=39 // loop_body
                %v360 = vld [vmem:[%s358] sm:%s351]
                %361 = vst [vmem:[%s359] sm:%s351] %v360
                %v362 = vld [vmem:[%s358 + $0x10] sm:%s351]
                %363 = vst [vmem:[%s359 + $0x8] sm:%s351] %v362
              $region45: #{fan_block_forward.12} parent=39 // loop_footer
                %s357 = sadd.s32 1, %s353
              $region46: #{fan_block_forward.12} parent=39 // loop_footer_branch
                %352 = sbr.rel target = $region42
              $region47: #{fan_block_forward.12} parent=39 // loop_exit
                _
            $region40: #{fan_block_forward.12} parent=31 // pred_fallthru
              _
          $region32: #{fan_block_forward.12} parent=27 // pred_fallthru
            _
          %380 = vnop
        $region28: #{fan_block_forward.12} parent=23 // pred_fallthru
          _
        // Predicated region
        $region63: #{fan_block_forward.12} parent=23 // pred_check
          %p381 = pneg %p76
        $region64: #{fan_block_forward.12} parent=23 // pred_check_branch
          %383 = sbr.rel (%p381) target = $region66
        $region65: #{fan_block_forward.12} parent=23 // pred_region
          %s384 = sand.u32 %s66, 1
          %s385 = sand.u32 %s66, 1
          %s386 = smul.addr %s385, 16
          %s387 = scalar_lea.vmem [#allocation3], %s386
          %s388 = smul.addr %s24, 8
          %s389 = scalar_lea.vmem %s1, %s388
          // Predicated region
          $region67: #{fan_block_forward.12} parent=65 // pred_check
            _
          $region68: #{fan_block_forward.12} parent=65 // pred_check_branch
            %391 = sbr.rel (0) target = $region70
          $region69: #{fan_block_forward.12} parent=65 // pred_region
            // Predicated region
            $region71: #{fan_block_forward.12} parent=69 // pred_check
              _
            $region72: #{fan_block_forward.12} parent=69 // pred_check_branch
              %393 = sbr.rel (0) target = $region74
            $region73: #{fan_block_forward.12} parent=69 // pred_region
              // Predicated region
              $region86: #{fan_block_forward.12} parent=73 // pred_check
                _
              $region87: #{fan_block_forward.12} parent=73 // pred_check_branch
                %411 = sbr.rel (0) target = $region89
              $region88: #{fan_block_forward.12} parent=73 // pred_region
                loop: start=0, step=1, limit=1
                $region90: #{fan_block_forward.12} parent=88 // loop_pre_header
                  _
                $region91: #{fan_block_forward.12} parent=88 // loop_header
                  %s413 = sphi 0, %s417
                  %p414 = scmp.ge.s32.totalorder %s413, 1
                  %s418 = sphi %s389, %s389
                  %s419 = sphi %s387, %s387
                $region92: #{fan_block_forward.12} parent=88 // loop_header_branch
                  %416 = sbr.rel (%p414) target = $region96
                $region93: #{fan_block_forward.12} parent=88 // loop_body
                  %v420 = vld [vmem:[%s418] sm:$0xff]
                  %421 = vst [vmem:[%s419] sm:$0xff] %v420
                  %v422 = vld [vmem:[%s418 + $0x10] sm:$0xff]
                  %423 = vst [vmem:[%s419 + $0x8] sm:$0xff] %v422
                $region94: #{fan_block_forward.12} parent=88 // loop_footer
                  %s417 = sadd.s32 1, %s413
                $region95: #{fan_block_forward.12} parent=88 // loop_footer_branch
                  %412 = sbr.rel target = $region91
                $region96: #{fan_block_forward.12} parent=88 // loop_exit
                  _
              $region89: #{fan_block_forward.12} parent=73 // pred_fallthru
                _
              // Predicated region
              $region97: #{fan_block_forward.12} parent=73 // pred_check
                _
              $region98: #{fan_block_forward.12} parent=73 // pred_check_branch
                %425 = sbr.rel target = $region100
              $region99: #{fan_block_forward.12} parent=73 // pred_region
                _
              $region100: #{fan_block_forward.12} parent=73 // pred_fallthru
                _
            $region74: #{fan_block_forward.12} parent=69 // pred_fallthru
              _
            // Predicated region
            $region75: #{fan_block_forward.12} parent=69 // pred_check
              _
            $region76: #{fan_block_forward.12} parent=69 // pred_check_branch
              %395 = sbr.rel target = $region78
            $region77: #{fan_block_forward.12} parent=69 // pred_region
              %s397 = ssub.s32 256, 1
              loop: start=0, step=1, limit=1
              $region79: #{fan_block_forward.12} parent=77 // loop_pre_header
                _
              $region80: #{fan_block_forward.12} parent=77 // loop_header
                %s399 = sphi 0, %s403
                %p400 = scmp.ge.s32.totalorder %s399, 1
                %s404 = sphi %s389, %s389
                %s405 = sphi %s387, %s387
              $region81: #{fan_block_forward.12} parent=77 // loop_header_branch
                %402 = sbr.rel (%p400) target = $region85
              $region82: #{fan_block_forward.12} parent=77 // loop_body
                %v406 = vld [vmem:[%s404] sm:%s397]
                %407 = vst [vmem:[%s405] sm:%s397] %v406
                %v408 = vld [vmem:[%s404 + $0x10] sm:%s397]
                %409 = vst [vmem:[%s405 + $0x8] sm:%s397] %v408
              $region83: #{fan_block_forward.12} parent=77 // loop_footer
                %s403 = sadd.s32 1, %s399
              $region84: #{fan_block_forward.12} parent=77 // loop_footer_branch
                %398 = sbr.rel target = $region80
              $region85: #{fan_block_forward.12} parent=77 // loop_exit
                _
            $region78: #{fan_block_forward.12} parent=69 // pred_fallthru
              _
          $region70: #{fan_block_forward.12} parent=65 // pred_fallthru
            _
          %426 = vnop
        $region66: #{fan_block_forward.12} parent=23 // pred_fallthru
          _
        // Predicated region
        $region101: #{fan_block_forward.12} parent=23 // pred_check
          %p427 = pneg %p102
        $region102: #{fan_block_forward.12} parent=23 // pred_check_branch
          %429 = sbr.rel (%p427) target = $region104
        $region103: #{fan_block_forward.12} parent=23 // pred_region
          %p430 = scmp.lt.s32.totalorder %s24, 1
          %s431 = scalar_select %p430, %s24, 1
          %s432 = scalar_lea.vmem %s2, %s431
        $region104: #{fan_block_forward.12} parent=23 // pred_fallthru
          _
        // Predicated region
        $region105: #{fan_block_forward.12} parent=23 // pred_check
          %p433 = pneg %p128
        $region106: #{fan_block_forward.12} parent=23 // pred_check_branch
          %435 = sbr.rel (%p433) target = $region108
        $region107: #{fan_block_forward.12} parent=23 // pred_region
          %p436 = scmp.lt.s32.totalorder %s24, 1
          %s437 = scalar_select %p436, %s24, 1
          %s438 = scalar_lea.vmem %s3, %s437
        $region108: #{fan_block_forward.12} parent=23 // pred_fallthru
          _
        // Predicated region
        $region109: #{fan_block_forward.12} parent=23 // pred_check
          %p439 = pneg %p154
        $region110: #{fan_block_forward.12} parent=23 // pred_check_branch
          %441 = sbr.rel (%p439) target = $region112
        $region111: #{fan_block_forward.12} parent=23 // pred_region
          %p442 = scmp.lt.s32.totalorder %s24, 1
          %s443 = scalar_select %p442, %s24, 1
          %s444 = scalar_lea.vmem %s4, %s443
        $region112: #{fan_block_forward.12} parent=23 // pred_fallthru
          _
        // Predicated region
        $region113: #{fan_block_forward.12} parent=23 // pred_check
          %p445 = pneg %p180
        $region114: #{fan_block_forward.12} parent=23 // pred_check_branch
          %447 = sbr.rel (%p445) target = $region116
        $region115: #{fan_block_forward.12} parent=23 // pred_region
          %s448 = sand.u32 %s170, 1
          %s449 = sand.u32 %s170, 1
          %s450 = smul.addr %s449, 16
          %s451 = scalar_lea.vmem [#allocation4], %s450
          %s452 = smul.addr %s24, 8
          %s453 = scalar_lea.vmem %s5, %s452
          // Predicated region
          $region117: #{fan_block_forward.12} parent=115 // pred_check
            _
          $region118: #{fan_block_forward.12} parent=115 // pred_check_branch
            %455 = sbr.rel (0) target = $region120
          $region119: #{fan_block_forward.12} parent=115 // pred_region
            // Predicated region
            $region121: #{fan_block_forward.12} parent=119 // pred_check
              _
            $region122: #{fan_block_forward.12} parent=119 // pred_check_branch
              %457 = sbr.rel (0) target = $region124
            $region123: #{fan_block_forward.12} parent=119 // pred_region
              // Predicated region
              $region136: #{fan_block_forward.12} parent=123 // pred_check
                _
              $region137: #{fan_block_forward.12} parent=123 // pred_check_branch
                %475 = sbr.rel (0) target = $region139
              $region138: #{fan_block_forward.12} parent=123 // pred_region
                loop: start=0, step=1, limit=1
                $region140: #{fan_block_forward.12} parent=138 // loop_pre_header
                  _
                $region141: #{fan_block_forward.12} parent=138 // loop_header
                  %s477 = sphi 0, %s481
                  %p478 = scmp.ge.s32.totalorder %s477, 1
                  %s482 = sphi %s453, %s453
                  %s483 = sphi %s451, %s451
                $region142: #{fan_block_forward.12} parent=138 // loop_header_branch
                  %480 = sbr.rel (%p478) target = $region146
                $region143: #{fan_block_forward.12} parent=138 // loop_body
                  %v484 = vld [vmem:[%s482] sm:$0xff]
                  %485 = vst [vmem:[%s483] sm:$0xff] %v484
                  %v486 = vld [vmem:[%s482 + $0x10] sm:$0xff]
                  %487 = vst [vmem:[%s483 + $0x8] sm:$0xff] %v486
                $region144: #{fan_block_forward.12} parent=138 // loop_footer
                  %s481 = sadd.s32 1, %s477
                $region145: #{fan_block_forward.12} parent=138 // loop_footer_branch
                  %476 = sbr.rel target = $region141
                $region146: #{fan_block_forward.12} parent=138 // loop_exit
                  _
              $region139: #{fan_block_forward.12} parent=123 // pred_fallthru
                _
              // Predicated region
              $region147: #{fan_block_forward.12} parent=123 // pred_check
                _
              $region148: #{fan_block_forward.12} parent=123 // pred_check_branch
                %489 = sbr.rel target = $region150
              $region149: #{fan_block_forward.12} parent=123 // pred_region
                _
              $region150: #{fan_block_forward.12} parent=123 // pred_fallthru
                _
            $region124: #{fan_block_forward.12} parent=119 // pred_fallthru
              _
            // Predicated region
            $region125: #{fan_block_forward.12} parent=119 // pred_check
              _
            $region126: #{fan_block_forward.12} parent=119 // pred_check_branch
              %459 = sbr.rel target = $region128
            $region127: #{fan_block_forward.12} parent=119 // pred_region
              %s461 = ssub.s32 256, 1
              loop: start=0, step=1, limit=1
              $region129: #{fan_block_forward.12} parent=127 // loop_pre_header
                _
              $region130: #{fan_block_forward.12} parent=127 // loop_header
                %s463 = sphi 0, %s467
                %p464 = scmp.ge.s32.totalorder %s463, 1
                %s468 = sphi %s453, %s453
                %s469 = sphi %s451, %s451
              $region131: #{fan_block_forward.12} parent=127 // loop_header_branch
                %466 = sbr.rel (%p464) target = $region135
              $region132: #{fan_block_forward.12} parent=127 // loop_body
                %v470 = vld [vmem:[%s468] sm:%s461]
                %471 = vst [vmem:[%s469] sm:%s461] %v470
                %v472 = vld [vmem:[%s468 + $0x10] sm:%s461]
                %473 = vst [vmem:[%s469 + $0x8] sm:%s461] %v472
              $region133: #{fan_block_forward.12} parent=127 // loop_footer
                %s467 = sadd.s32 1, %s463
              $region134: #{fan_block_forward.12} parent=127 // loop_footer_branch
                %462 = sbr.rel target = $region130
              $region135: #{fan_block_forward.12} parent=127 // loop_exit
                _
            $region128: #{fan_block_forward.12} parent=119 // pred_fallthru
              _
          $region120: #{fan_block_forward.12} parent=115 // pred_fallthru
            _
          %490 = vnop
        $region116: #{fan_block_forward.12} parent=23 // pred_fallthru
          _
        // Predicated region
        $region151: #{fan_block_forward.12} parent=23 // pred_check
          %p491 = pneg %p206
        $region152: #{fan_block_forward.12} parent=23 // pred_check_branch
          %493 = sbr.rel (%p491) target = $region154
        $region153: #{fan_block_forward.12} parent=23 // pred_region
          %p494 = scmp.lt.s32.totalorder %s24, 1
          %s495 = scalar_select %p494, %s24, 1
          %s496 = scalar_lea.vmem %s6, %s495
        $region154: #{fan_block_forward.12} parent=23 // pred_fallthru
          _
        // Predicated region
        $region155: #{fan_block_forward.12} parent=23 // pred_check
          %p497 = pneg %p232
        $region156: #{fan_block_forward.12} parent=23 // pred_check_branch
          %499 = sbr.rel (%p497) target = $region158
        $region157: #{fan_block_forward.12} parent=23 // pred_region
          %p500 = scmp.lt.s32.totalorder %s24, 1
          %s501 = scalar_select %p500, %s24, 1
          %s502 = scalar_lea.vmem %s7, %s501
        $region158: #{fan_block_forward.12} parent=23 // pred_fallthru
          _
      $region24: #{fan_block_forward.12} parent=5 // pred_fallthru
        _
      %p503 = scmp.le.s32.totalorder 1, %s16
      %p504 = scmp.lt.s32.totalorder %s16, 5
      %p505 = pnand %p503, %p504
      %p506 = pneg %p505
      // Predicated region
      $region159: #{fan_block_forward.12} parent=5 // pred_check
        _
      $region160: #{fan_block_forward.12} parent=5 // pred_check_branch
        %508 = sbr.rel (%p505) target = $region162
      $region161: #{fan_block_forward.12} parent=5 // pred_region
        %s509 = ssub.s32 %s16, 1
        %s510 = sand.u32 %s43, 1
        %s511 = sand.u32 %s43, 1
        %s512 = smul.addr %s511, 16
        %s513 = scalar_lea.vmem [#allocation2], %s512
        // Predicated region
        $region163: #{fan_block_forward.12} parent=161 // pred_check
          %p514 = pneg %p56
        $region164: #{fan_block_forward.12} parent=161 // pred_check_branch
          %516 = sbr.rel (%p514) target = $region166
        $region165: #{fan_block_forward.12} parent=161 // pred_region
          _
        $region166: #{fan_block_forward.12} parent=161 // pred_fallthru
          _
        %s517 = sand.u32 %s69, 1
        %s518 = sand.u32 %s69, 1
        %s519 = smul.addr %s518, 16
        %s520 = scalar_lea.vmem [#allocation3], %s519
        // Predicated region
        $region167: #{fan_block_forward.12} parent=161 // pred_check
          %p521 = pneg %p82
        $region168: #{fan_block_forward.12} parent=161 // pred_check_branch
          %523 = sbr.rel (%p521) target = $region170
        $region169: #{fan_block_forward.12} parent=161 // pred_region
          _
        $region170: #{fan_block_forward.12} parent=161 // pred_fallthru
          _
        %s524 = sand.u32 %s173, 1
        %s525 = sand.u32 %s173, 1
        %s526 = smul.addr %s525, 16
        %s527 = scalar_lea.vmem [#allocation4], %s526
        // Predicated region
        $region171: #{fan_block_forward.12} parent=161 // pred_check
          %p528 = pneg %p186
        $region172: #{fan_block_forward.12} parent=161 // pred_check_branch
          %530 = sbr.rel (%p528) target = $region174
        $region173: #{fan_block_forward.12} parent=161 // pred_region
          _
        $region174: #{fan_block_forward.12} parent=161 // pred_fallthru
          _
        %s531 = sand.u32 %s43, 1
        %s532 = sand.u32 %s43, 1
        %s533 = smul.addr %s532, 16
        %s534 = scalar_lea.vmem [#allocation2], %s533
        %p535 = pneg %p56
        %p536 = pneg %p53
        %s537 = sand.u32 %s69, 1
        %s538 = sand.u32 %s69, 1
        %s539 = smul.addr %s538, 16
        %s540 = scalar_lea.vmem [#allocation3], %s539
        %p541 = pneg %p82
        %p542 = pneg %p79
        %p543 = scmp.lt.s32.totalorder %s26, 1
        %s544 = scalar_select %p543, %s26, 1
        %s545 = scalar_lea.vmem %s2, %s544
        %p546 = pneg %p108
        %p547 = pneg %p105
        %p548 = scmp.lt.s32.totalorder %s26, 1
        %s549 = scalar_select %p548, %s26, 1
        %s550 = scalar_lea.vmem %s3, %s549
        %p551 = pneg %p134
        %p552 = pneg %p131
        %p553 = scmp.lt.s32.totalorder %s26, 1
        %s554 = scalar_select %p553, %s26, 1
        %s555 = scalar_lea.vmem %s4, %s554
        %p556 = pneg %p160
        %p557 = pneg %p157
        %s558 = sand.u32 %s173, 1
        %s559 = sand.u32 %s173, 1
        %s560 = smul.addr %s559, 16
        %s561 = scalar_lea.vmem [#allocation4], %s560
        %p562 = pneg %p186
        %p563 = pneg %p183
        %p564 = scmp.lt.s32.totalorder %s26, 1
        %s565 = scalar_select %p564, %s26, 1
        %s566 = scalar_lea.vmem %s6, %s565
        %p567 = pneg %p212
        %p568 = pneg %p209
        %p569 = scmp.lt.s32.totalorder %s26, 1
        %s570 = scalar_select %p569, %s26, 1
        %s571 = scalar_lea.vmem %s7, %s570
        %p572 = pneg %p238
        %p573 = pneg %p235
        %p574 = pneg %p259
        %p575 = pneg %p256
        %p576 = pneg %p280
        %p577 = pneg %p277
        %p578 = pneg %p308
        %p579 = pneg %p305
        %s580 = sand.u32 %s295, 1
        %s581 = sand.u32 %s295, 1
        %s582 = smul.addr %s581, 16
        %s583 = scalar_lea.vmem [#allocation5], %s582
        %p584 = scmp.lt.s32.totalorder %s26, 1
        %s585 = scalar_select %p584, %s26, 1
        %s586 = scalar_lea.vmem %s2, %s585
        %p587 = scmp.lt.s32.totalorder %s26, 1
        %s588 = scalar_select %p587, %s26, 1
        %s589 = scalar_lea.vmem %s3, %s588
        %p590 = scmp.lt.s32.totalorder %s26, 1
        %s591 = scalar_select %p590, %s26, 1
        %s592 = scalar_lea.vmem %s4, %s591
        %p593 = scmp.lt.s32.totalorder %s26, 1
        %s594 = scalar_select %p593, %s26, 1
        %s595 = scalar_lea.vmem %s6, %s594
        %p596 = scmp.lt.s32.totalorder %s26, 1
        %s597 = scalar_select %p596, %s26, 1
        %s598 = scalar_lea.vmem %s7, %s597
        %v599 = vld [vmem:[%s513] sm:$0xff]
        %v600 = vld [vmem:[%s513 + $0x8] sm:$0xff]
        %v601 = vld [vmem:[%s8] sm:$0xff]
        %v602 = vld [vmem:[%s8 + $0x8] sm:$0xff]
        %v603 = vld [vmem:[%s9] sm:$0xff]
        %v604 = vld [vmem:[%s9 + $0x8] sm:$0xff]
        %v605 = vld [vmem:[%s520] sm:$0xff]
        %v606 = vld [vmem:[%s520 + $0x8] sm:$0x1]
        %v607 = vlaneseq
        %v608 = vshrl.u32 %v607, 7
        %v609 = vsub.s32 4, %v608
        %v610 = vrot.slane %v605, %v609
        %v611 = vmul.f32 %v599, %v610
        %v612 = vmul.f32 %v600, %v610
        %vm615 = vcmask 1044480
        %v616 = vrot.slane %v599, 3
        %v617 = vrot.slane %v600, 3
        %v618 = vsel %vm615, %v616, %v617
        %v621 = vsel %vm615, 0.0, %v616
        %623 = vset.pattern.permute.xlu0 0
        %624 = vperm.xlu0 %623, %v603
        %v625 = vpop.permute.xlu0 %624
        %628 = vset.pattern.permute.xlu0 0
        %629 = vperm.xlu0 %628, %v604
        %v630 = vpop.permute.xlu0 %629
        %v632 = vmul.f32 %v621, %v625
        %v633 = vmul.f32 %v618, %v630
        %v634 = vlaneseq
        %v635 = vshrl.u32 %v634, 7
        %v636 = vsub.s32 0, %v635
        %v637 = vrot.slane %v605, %v636
        %v638 = vmul.f32 %v632, %v637
        %v639 = vmul.f32 %v633, %v637
        %v640 = vadd.f32 %v611, %v638
        %v641 = vadd.f32 %v612, %v639
        %vm642 = vcmask 1043456
        %v643 = vrot.slane %v599, 4
        %v644 = vrot.slane %v600, 4
        %v645 = vsel %vm642, %v643, %v644
        %v648 = vsel %vm642, 0.0, %v643
        %v649 = vlaneseq
        %v650 = vshrl.u32 %v649, 7
        %v651 = vsub.s32 1, %v650
        %v652 = vrot.slane %v605, %v651
        %v653 = vmul.f32 %v648, %v652
        %v654 = vmul.f32 %v645, %v652
        %v655 = vadd.f32 %v640, %v653
        %v656 = vadd.f32 %v641, %v654
        %vm657 = vcmask 1042432
        %v658 = vrot.slane %v599, 5
        %v659 = vrot.slane %v600, 5
        %v660 = vsel %vm657, %v658, %v659
        %v663 = vsel %vm657, 0.0, %v658
        %665 = vset.pattern.permute.xlu0 0
        %666 = vperm.xlu0 %665, %v601
        %v667 = vpop.permute.xlu0 %666
        %670 = vset.pattern.permute.xlu0 0
        %671 = vperm.xlu0 %670, %v602
        %v672 = vpop.permute.xlu0 %671
        %v674 = vmul.f32 %v663, %v667
        %v675 = vmul.f32 %v660, %v672
        %v676 = vlaneseq
        %v677 = vshrl.u32 %v676, 7
        %v678 = vsub.s32 2, %v677
        %v679 = vrot.slane %v605, %v678
        %v680 = vmul.f32 %v674, %v679
        %v681 = vmul.f32 %v675, %v679
        %v682 = vadd.f32 %v655, %v680
        %v683 = vadd.f32 %v656, %v681
        %vm684 = vcmask 1040384
        %v685 = vrot.slane %v599, 7
        %v686 = vrot.slane %v600, 7
        %v687 = vsel %vm684, %v685, %v686
        %v690 = vsel %vm684, 0.0, %v685
        %v691 = vmul.f32 %v690, %v625
        %v692 = vmul.f32 %v687, %v630
        %v693 = vlaneseq
        %v694 = vshrl.u32 %v693, 7
        %v695 = vsub.s32 3, %v694
        %v696 = vrot.slane %v605, %v695
        %v697 = vmul.f32 %v691, %v696
        %v698 = vmul.f32 %v692, %v696
        %v699 = vadd.f32 %v682, %v697
        %v700 = vadd.f32 %v683, %v698
        %vm701 = vcmask 1046528
        %v702 = vrot.slane %v599, 1
        %v703 = vrot.slane %v600, 1
        %v704 = vsel %vm701, %v702, %v703
        %v707 = vsel %vm701, %v703, 0.0
        %v708 = vmul.f32 %v704, %v667
        %v709 = vmul.f32 %v707, %v672
        %v710 = vlaneseq
        %v711 = vshrl.u32 %v710, 7
        %v712 = vsub.s32 5, %v711
        %v713 = vrot.slane %v605, %v712
        %v714 = vmul.f32 %v708, %v713
        %v715 = vmul.f32 %v709, %v713
        %v716 = vadd.f32 %v699, %v714
        %v717 = vadd.f32 %v700, %v715
        %v719 = vsel %vm615, %v617, 0.0
        %v720 = vmul.f32 %v618, %v625
        %v721 = vmul.f32 %v719, %v630
        %v722 = vlaneseq
        %v723 = vshrl.u32 %v722, 7
        %v724 = vsub.s32 6, %v723
        %v725 = vrot.slane %v605, %v724
        %v726 = vmul.f32 %v720, %v725
        %v727 = vmul.f32 %v721, %v725
        %v728 = vadd.f32 %v716, %v726
        %v729 = vadd.f32 %v717, %v727
        %v731 = vsel %vm642, %v644, 0.0
        %v732 = vlaneseq
        %v733 = vshrl.u32 %v732, 7
        %v734 = vsub.s32 7, %v733
        %v735 = vrot.slane %v605, %v734
        %v736 = vmul.f32 %v645, %v735
        %v737 = vmul.f32 %v731, %v735
        %v738 = vadd.f32 %v728, %v736
        %v739 = vadd.f32 %v729, %v737
        %v741 = vsel %vm657, %v659, 0.0
        %v742 = vmul.f32 %v660, %v667
        %v743 = vmul.f32 %v741, %v672
        %v744 = vlaneseq
        %v745 = vshrl.u32 %v744, 7
        %v746 = vsub.s32 0, %v745
        %v747 = vrot.slane %v606, %v746
        %v748 = vmul.f32 %v742, %v747
        %v749 = vmul.f32 %v743, %v747
        %v750 = vadd.f32 %v738, %v748
        %v751 = vadd.f32 %v739, %v749
        %v752 = vld [vmem:[%s586] sm:$0x1]
        %v754 = vlaneseq
        %v755 = vshrl.u32 %v754, 7
        %v756 = vsub.s32 0, %v755
        %v757 = vrot.slane %v752, %v756
        %v759 = vadd.f32 %v750, %v757
        %v760 = vadd.f32 %v751, %v757
        %v761 = vmul.f32 %v759, 0.5
        %v762 = vmul.f32 %v760, 0.5
        %v763 = vmul.f32 %v759, 0.044715
        %v764 = vmul.f32 %v760, 0.044715
        %v765 = vmul.f32 %v763, %v759
        %v766 = vmul.f32 %v764, %v760
        %v767 = vmul.f32 %v765, %v759
        %v768 = vmul.f32 %v766, %v760
        %v769 = vadd.f32 %v759, %v767
        %v770 = vadd.f32 %v760, %v768
        %v771 = vmul.f32 %v769, 0.7978846
        %v772 = vmul.f32 %v770, 0.7978846
        %v773 = vtanh.pop %v771
        %v774 = vtanh.pop %v772
        %v775 = vadd.f32 %v773, 1.0
        %v776 = vadd.f32 %v774, 1.0
        %v777 = vmul.f32 %v761, %v775
        %v778 = vmul.f32 %v762, %v776
        %v779 = vld [vmem:[%s589] sm:$0x1]
        %v781 = vlaneseq
        %v782 = vshrl.u32 %v781, 7
        %v783 = vsub.s32 0, %v782
        %v784 = vrot.slane %v779, %v783
        %v786 = vmul.f32 %v777, %v784
        %v787 = vmul.f32 %v778, %v784
        %v788 = vld [vmem:[%s592] sm:$0x1]
        %v790 = vlaneseq
        %v791 = vshrl.u32 %v790, 7
        %v792 = vsub.s32 0, %v791
        %v793 = vrot.slane %v788, %v792
        %v795 = vadd.f32 %v786, %v793
        %v796 = vadd.f32 %v787, %v793
        %v797 = vld [vmem:[%s527] sm:$0xff]
        %v798 = vld [vmem:[%s527 + $0x8] sm:$0x1]
        %v799 = vlaneseq
        %v800 = vshrl.u32 %v799, 7
        %v801 = vsub.s32 4, %v800
        %v802 = vrot.slane %v797, %v801
        %v803 = vmul.f32 %v795, %v802
        %v804 = vmul.f32 %v796, %v802
        %v807 = vrot.slane %v795, 3
        %v808 = vrot.slane %v796, 3
        %v809 = vsel %vm615, %v807, %v808
        %v812 = vsel %vm615, 0.0, %v807
        %v813 = vmul.f32 %v812, %v625
        %v814 = vmul.f32 %v809, %v630
        %v815 = vlaneseq
        %v816 = vshrl.u32 %v815, 7
        %v817 = vsub.s32 0, %v816
        %v818 = vrot.slane %v797, %v817
        %v819 = vmul.f32 %v813, %v818
        %v820 = vmul.f32 %v814, %v818
        %v821 = vadd.f32 %v803, %v819
        %v822 = vadd.f32 %v804, %v820
        %v823 = vrot.slane %v795, 4
        %v824 = vrot.slane %v796, 4
        %v825 = vsel %vm642, %v823, %v824
        %v828 = vsel %vm642, 0.0, %v823
        %v829 = vlaneseq
        %v830 = vshrl.u32 %v829, 7
        %v831 = vsub.s32 1, %v830
        %v832 = vrot.slane %v797, %v831
        %v833 = vmul.f32 %v828, %v832
        %v834 = vmul.f32 %v825, %v832
        %v835 = vadd.f32 %v821, %v833
        %v836 = vadd.f32 %v822, %v834
        %v837 = vrot.slane %v795, 5
        %v838 = vrot.slane %v796, 5
        %v839 = vsel %vm657, %v837, %v838
        %v842 = vsel %vm657, 0.0, %v837
        %v843 = vmul.f32 %v842, %v667
        %v844 = vmul.f32 %v839, %v672
        %v845 = vlaneseq
        %v846 = vshrl.u32 %v845, 7
        %v847 = vsub.s32 2, %v846
        %v848 = vrot.slane %v797, %v847
        %v849 = vmul.f32 %v843, %v848
        %v850 = vmul.f32 %v844, %v848
        %v851 = vadd.f32 %v835, %v849
        %v852 = vadd.f32 %v836, %v850
        %v853 = vrot.slane %v795, 7
        %v854 = vrot.slane %v796, 7
        %v855 = vsel %vm684, %v853, %v854
        %v858 = vsel %vm684, 0.0, %v853
        %v859 = vmul.f32 %v858, %v625
        %v860 = vmul.f32 %v855, %v630
        %v861 = vlaneseq
        %v862 = vshrl.u32 %v861, 7
        %v863 = vsub.s32 3, %v862
        %v864 = vrot.slane %v797, %v863
        %v865 = vmul.f32 %v859, %v864
        %v866 = vmul.f32 %v860, %v864
        %v867 = vadd.f32 %v851, %v865
        %v868 = vadd.f32 %v852, %v866
        %v869 = vrot.slane %v795, 1
        %v870 = vrot.slane %v796, 1
        %v871 = vsel %vm701, %v869, %v870
        %v874 = vsel %vm701, %v870, 0.0
        %v875 = vmul.f32 %v871, %v667
        %v876 = vmul.f32 %v874, %v672
        %v877 = vlaneseq
        %v878 = vshrl.u32 %v877, 7
        %v879 = vsub.s32 5, %v878
        %v880 = vrot.slane %v797, %v879
        %v881 = vmul.f32 %v875, %v880
        %v882 = vmul.f32 %v876, %v880
        %v883 = vadd.f32 %v867, %v881
        %v884 = vadd.f32 %v868, %v882
        %v886 = vsel %vm615, %v808, 0.0
        %v887 = vmul.f32 %v809, %v625
        %v888 = vmul.f32 %v886, %v630
        %v889 = vlaneseq
        %v890 = vshrl.u32 %v889, 7
        %v891 = vsub.s32 6, %v890
        %v892 = vrot.slane %v797, %v891
        %v893 = vmul.f32 %v887, %v892
        %v894 = vmul.f32 %v888, %v892
        %v895 = vadd.f32 %v883, %v893
        %v896 = vadd.f32 %v884, %v894
        %v898 = vsel %vm642, %v824, 0.0
        %v899 = vlaneseq
        %v900 = vshrl.u32 %v899, 7
        %v901 = vsub.s32 7, %v900
        %v902 = vrot.slane %v797, %v901
        %v903 = vmul.f32 %v825, %v902
        %v904 = vmul.f32 %v898, %v902
        %v905 = vadd.f32 %v895, %v903
        %v906 = vadd.f32 %v896, %v904
        %v908 = vsel %vm657, %v838, 0.0
        %v909 = vmul.f32 %v839, %v667
        %v910 = vmul.f32 %v908, %v672
        %v911 = vlaneseq
        %v912 = vshrl.u32 %v911, 7
        %v913 = vsub.s32 0, %v912
        %v914 = vrot.slane %v798, %v913
        %v915 = vmul.f32 %v909, %v914
        %v916 = vmul.f32 %v910, %v914
        %v917 = vadd.f32 %v905, %v915
        %v918 = vadd.f32 %v906, %v916
        %v919 = vld [vmem:[%s595] sm:$0x1]
        %v921 = vlaneseq
        %v922 = vshrl.u32 %v921, 7
        %v923 = vsub.s32 0, %v922
        %v924 = vrot.slane %v919, %v923
        %v926 = vadd.f32 %v917, %v924
        %v927 = vadd.f32 %v918, %v924
        %v928 = vld [vmem:[%s598] sm:$0x1]
        %v930 = vlaneseq
        %v931 = vshrl.u32 %v930, 7
        %v932 = vsub.s32 0, %v931
        %v933 = vrot.slane %v928, %v932
        %v935 = vmul.f32 %v933, %v926
        %v936 = vmul.f32 %v933, %v927
        %v937 = vadd.f32 %v599, %v935
        %v938 = vadd.f32 %v600, %v936
        %939 = vst [vmem:[%s583] sm:$0xff] %v937
        %940 = vst [vmem:[%s583 + $0x8] sm:$0xff] %v938
        %s941 = sand.u32 %s295, 1
        %s942 = sand.u32 %s295, 1
        %s943 = smul.addr %s942, 16
        %s944 = scalar_lea.vmem [#allocation5], %s943
        // Predicated region
        $region175: #{fan_block_forward.12} parent=161 // pred_check
          %p945 = pneg %p305
        $region176: #{fan_block_forward.12} parent=161 // pred_check_branch
          %947 = sbr.rel (%p945) target = $region178
        $region177: #{fan_block_forward.12} parent=161 // pred_region
          %s948 = smul.addr %s25, 4
          %s949 = sadd.s32 %s26, %s948
          %s950 = smul.addr %s949, 8
          %s951 = scalar_lea.vmem %s10, %s950
          // Predicated region
          $region179: #{fan_block_forward.12} parent=177 // pred_check
            _
          $region180: #{fan_block_forward.12} parent=177 // pred_check_branch
            %953 = sbr.rel (0) target = $region182
          $region181: #{fan_block_forward.12} parent=177 // pred_region
            // Predicated region
            $region183: #{fan_block_forward.12} parent=181 // pred_check
              _
            $region184: #{fan_block_forward.12} parent=181 // pred_check_branch
              %955 = sbr.rel (0) target = $region186
            $region185: #{fan_block_forward.12} parent=181 // pred_region
              // Predicated region
              $region198: #{fan_block_forward.12} parent=185 // pred_check
                _
              $region199: #{fan_block_forward.12} parent=185 // pred_check_branch
                %973 = sbr.rel (0) target = $region201
              $region200: #{fan_block_forward.12} parent=185 // pred_region
                loop: start=0, step=1, limit=1
                $region202: #{fan_block_forward.12} parent=200 // loop_pre_header
                  _
                $region203: #{fan_block_forward.12} parent=200 // loop_header
                  %s975 = sphi 0, %s979
                  %p976 = scmp.ge.s32.totalorder %s975, 1
                  %s980 = sphi %s944, %s944
                  %s981 = sphi %s951, %s951
                $region204: #{fan_block_forward.12} parent=200 // loop_header_branch
                  %978 = sbr.rel (%p976) target = $region208
                $region205: #{fan_block_forward.12} parent=200 // loop_body
                  %v982 = vld [vmem:[%s980] sm:$0xff]
                  %983 = vst [vmem:[%s981] sm:$0xff] %v982
                  %v984 = vld [vmem:[%s980 + $0x8] sm:$0xff]
                  %985 = vst [vmem:[%s981 + $0x10] sm:$0xff] %v984
                $region206: #{fan_block_forward.12} parent=200 // loop_footer
                  %s979 = sadd.s32 1, %s975
                $region207: #{fan_block_forward.12} parent=200 // loop_footer_branch
                  %974 = sbr.rel target = $region203
                $region208: #{fan_block_forward.12} parent=200 // loop_exit
                  _
              $region201: #{fan_block_forward.12} parent=185 // pred_fallthru
                _
              // Predicated region
              $region209: #{fan_block_forward.12} parent=185 // pred_check
                _
              $region210: #{fan_block_forward.12} parent=185 // pred_check_branch
                %987 = sbr.rel target = $region212
              $region211: #{fan_block_forward.12} parent=185 // pred_region
                _
              $region212: #{fan_block_forward.12} parent=185 // pred_fallthru
                _
            $region186: #{fan_block_forward.12} parent=181 // pred_fallthru
              _
            // Predicated region
            $region187: #{fan_block_forward.12} parent=181 // pred_check
              _
            $region188: #{fan_block_forward.12} parent=181 // pred_check_branch
              %957 = sbr.rel target = $region190
            $region189: #{fan_block_forward.12} parent=181 // pred_region
              %s959 = ssub.s32 256, 1
              loop: start=0, step=1, limit=1
              $region191: #{fan_block_forward.12} parent=189 // loop_pre_header
                _
              $region192: #{fan_block_forward.12} parent=189 // loop_header
                %s961 = sphi 0, %s965
                %p962 = scmp.ge.s32.totalorder %s961, 1
                %s966 = sphi %s944, %s944
                %s967 = sphi %s951, %s951
              $region193: #{fan_block_forward.12} parent=189 // loop_header_branch
                %964 = sbr.rel (%p962) target = $region197
              $region194: #{fan_block_forward.12} parent=189 // loop_body
                %v968 = vld [vmem:[%s966] sm:%s959]
                %969 = vst [vmem:[%s967] sm:%s959] %v968
                %v970 = vld [vmem:[%s966 + $0x8] sm:%s959]
                %971 = vst [vmem:[%s967 + $0x10] sm:%s959] %v970
              $region195: #{fan_block_forward.12} parent=189 // loop_footer
                %s965 = sadd.s32 1, %s961
              $region196: #{fan_block_forward.12} parent=189 // loop_footer_branch
                %960 = sbr.rel target = $region192
              $region197: #{fan_block_forward.12} parent=189 // loop_exit
                _
            $region190: #{fan_block_forward.12} parent=181 // pred_fallthru
              _
          $region182: #{fan_block_forward.12} parent=177 // pred_fallthru
            _
          %988 = vnop
        $region178: #{fan_block_forward.12} parent=161 // pred_fallthru
          _
      $region162: #{fan_block_forward.12} parent=5 // pred_fallthru
        _
      %p989 = scmp.le.s32.totalorder 2, %s16
      // Predicated region
      $region213: #{fan_block_forward.12} parent=5 // pred_check
        %p990 = pneg %p989
      $region214: #{fan_block_forward.12} parent=5 // pred_check_branch
        %992 = sbr.rel (%p990) target = $region216
      $region215: #{fan_block_forward.12} parent=5 // pred_region
        %s993 = ssub.s32 %s16, 2
        // Predicated region
        $region217: #{fan_block_forward.12} parent=215 // pred_check
          %p994 = pneg %p311
        $region218: #{fan_block_forward.12} parent=215 // pred_check_branch
          %996 = sbr.rel (%p994) target = $region220
        $region219: #{fan_block_forward.12} parent=215 // pred_region
          %s997 = sand.u32 %s296, 1
          %s998 = sand.u32 %s296, 1
          %s999 = smul.addr %s998, 16
          %s1000 = scalar_lea.vmem [#allocation5], %s999
        $region220: #{fan_block_forward.12} parent=215 // pred_fallthru
          _
      $region216: #{fan_block_forward.12} parent=5 // pred_fallthru
        _
    $region6: #{fan_block_forward.12} parent=1 // loop_footer
      %s20 = sadd.s32 1, %s16
    $region7: #{fan_block_forward.12} parent=1 // loop_footer_branch
      %15 = sbr.rel target = $region3
    $region8: #{fan_block_forward.12} parent=1 // loop_exit
      _

</llo_original>
